<compile_context>
chip_gen: v6e
topology: v6e:2x2x1
jax: 0.10.0
libtpu: 0.0.40
codegen_flags: <defaults>
</compile_context>

<pallas_src>
import functools

import jax
import jax.numpy as jnp
import numpy as np
from jax import lax
from jax.experimental import pallas as pl
from jax.experimental.pallas import tpu as pltpu


# ----------------------------------------------------------------------------
# Fused kernel: expand(1x1)+BN+ReLU6 -> depthwise(3x3)+BN+ReLU6 -> project(1x1)
# +BN (+residual).  Operates on a flattened (H*W, C) row block with a +-1
# image-row halo; channels map to TPU lanes.
# ----------------------------------------------------------------------------
def _fused_kernel(*refs, RB, W, Chid, has_expand, use_res):
    if has_expand:
        (x_ref, xt_ref, xb_ref,
         we_ref, s1_ref, b1_ref,
         wd_ref, s2_ref, b2_ref,
         wp_ref, s3_ref, b3_ref, o_ref) = refs
    else:
        (x_ref, xt_ref, xb_ref,
         wd_ref, s2_ref, b2_ref,
         wp_ref, s3_ref, b3_ref, o_ref) = refs

    r = pl.program_id(1)
    n_rb = pl.num_programs(1)
    rows = RB * W               # output rows in this block (flattened H*W)
    hrows = (RB + 2) * W        # rows including the +-1 image-row halo

    x_main = x_ref[0]                                              # (rows, Cin)
    x_all = jnp.concatenate([xt_ref[0], x_main, xb_ref[0]], axis=0)  # (hrows, Cin)

    # ---- 1x1 expand + folded BN + ReLU6 (MXU); halo rows recomputed locally ----
    if has_expand:
        h = jnp.dot(x_all, we_ref[...], preferred_element_type=jnp.float32)
        h = jnp.clip(h * s1_ref[...] + b1_ref[...], 0.0, 6.0)
    else:
        h = x_all.astype(jnp.float32)

    # Zero the halo rows that fall outside the image: the depthwise conv pads
    # the *post-ReLU6* hidden tensor with zeros.
    ridx = lax.broadcasted_iota(jnp.int32, (hrows, 1), 0)
    halo_ok = ((ridx >= W) | (r > 0)) & ((ridx < hrows - W) | (r < n_rb - 1))
    h = jnp.where(halo_ok, h, 0.0)

    # ---- 3x3 depthwise + folded BN + ReLU6 (VPU MACs, f32) ----
    # In the flat row-major (H*W) layout the +-1 column neighbours are +-1 flat
    # rows, so the kw taps become two whole-buffer sublane rotations (XLU)
    # instead of per-tap misaligned slice copies; W boundaries are masked below.
    w_dw = wd_ref[...].astype(jnp.float32)          # (9, Chid), read once
    h_l = pltpu.roll(h, 1, 0)                       # h_l[f] = h[f - 1]  (kw = 0)
    h_r = pltpu.roll(h, hrows - 1, 0)               # h_r[f] = h[f + 1]  (kw = 2)

    acc_c = jnp.zeros((rows, Chid), jnp.float32)
    acc_l = jnp.zeros((rows, Chid), jnp.float32)
    acc_r = jnp.zeros((rows, Chid), jnp.float32)
    for kh in range(3):                             # unrolled at trace time
        lo = kh * W                                 # sublane-aligned (W % 8 == 0)
        acc_l = acc_l + h_l[lo:lo + rows] * w_dw[3 * kh + 0:3 * kh + 1]
        acc_c = acc_c + h[lo:lo + rows] * w_dw[3 * kh + 1:3 * kh + 2]
        acc_r = acc_r + h_r[lo:lo + rows] * w_dw[3 * kh + 2:3 * kh + 3]

    wpos = lax.broadcasted_iota(jnp.int32, (rows, 1), 0) % W
    acc = (acc_c
           + jnp.where(wpos > 0, acc_l, 0.0)        # kw=0 invalid at w == 0
           + jnp.where(wpos < W - 1, acc_r, 0.0))   # kw=2 invalid at w == W-1
    y = jnp.clip(acc * s2_ref[...] + b2_ref[...], 0.0, 6.0)

    # ---- 1x1 projection + folded BN (+ residual) (MXU) ----
    out = jnp.dot(y, wp_ref[...], preferred_element_type=jnp.float32)
    out = out * s3_ref[...] + b3_ref[...]
    if use_res:
        out = out + x_main.astype(jnp.float32)
    o_ref[0] = out.astype(o_ref.dtype)


# ----------------------------------------------------------------------------
# Module wrapper
# ----------------------------------------------------------------------------
def fold_bn(gamma, beta, mean, var, eps=1e-5):
    scale = gamma / jnp.sqrt(var + eps)
    shift = beta - mean * scale
    return scale.astype(jnp.float32), shift.astype(jnp.float32)


def _pick_row_block(H, max_rows=32):
    rb = min(H, max_rows)
    while H % rb:
        rb -= 1
    return rb


def inverted_residual_forward(x_nchw, params, *, stride, expand_ratio,
                              act_dtype=jnp.float32):
    # TODO(synk): stride=2 depthwise path (strided taps, no residual) is not
    # implemented; the blocks exercised here use stride=1.
    assert stride == 1
    N, Cin, H, W = x_nchw.shape
    assert W % 8 == 0, "W must be a multiple of 8 (TPU sublane tile)"

    Cout = params["w_proj"].shape[1]
    has_expand = expand_ratio != 1
    Chid = params["w_expand"].shape[1] if has_expand else Cin
    use_res = (stride == 1) and (Cin == Cout)

    # NCHW -> NHWC -> flat (N, H*W, C): channels on lanes, flat rows on sublanes.
    x = jnp.transpose(x_nchw, (0, 2, 3, 1)).astype(act_dtype)
    x2d = x.reshape(N, H * W, Cin)

    RB = _pick_row_block(H)           # <=32 image rows per step (v7x VMEM budget)
    grid = (N, H // RB)

    s2, b2 = fold_bn(*params["bn2"])
    s3, b3 = fold_bn(*params["bn3"])

    # dim 1 of x2d is blocked in units of W rows (halo views) / RB*W rows (main).
    main_map = lambda n, r: (n, r, 0)
    top_map = lambda n, r: (n, jnp.maximum(r * RB - 1, 0), 0)
    bot_map = lambda n, r: (n, jnp.minimum(r * RB + RB, H - 1), 0)
    whole = lambda n, r: (0, 0)

    in_specs = [
        pl.BlockSpec((1, RB * W, Cin), main_map),   # current row block
        pl.BlockSpec((1, W, Cin), top_map),         # 1-row halo above (clamped)
        pl.BlockSpec((1, W, Cin), bot_map),         # 1-row halo below (clamped)
    ]
    args = [x2d, x2d, x2d]

    if has_expand:
        s1, b1 = fold_bn(*params["bn1"])
        in_specs += [pl.BlockSpec((Cin, Chid), whole),
                     pl.BlockSpec((1, Chid), whole),
                     pl.BlockSpec((1, Chid), whole)]
        args += [params["w_expand"].astype(act_dtype),
                 s1.reshape(1, Chid), b1.reshape(1, Chid)]

    in_specs += [pl.BlockSpec((9, Chid), whole),
                 pl.BlockSpec((1, Chid), whole),
                 pl.BlockSpec((1, Chid), whole),
                 pl.BlockSpec((Chid, Cout), whole),
                 pl.BlockSpec((1, Cout), whole),
                 pl.BlockSpec((1, Cout), whole)]
    args += [params["w_dw"].reshape(9, Chid).astype(jnp.float32),  # dw math stays f32
             s2.reshape(1, Chid), b2.reshape(1, Chid),
             params["w_proj"].astype(act_dtype),
             s3.reshape(1, Cout), b3.reshape(1, Cout)]

    kernel = functools.partial(_fused_kernel, RB=RB, W=W, Chid=Chid,
                               has_expand=has_expand, use_res=use_res)

    out2d = pl.pallas_call(
        kernel,
        out_shape=jax.ShapeDtypeStruct((N, H * W, Cout), jnp.float32),
        grid_spec=pltpu.PrefetchScalarGridSpec(
            num_scalar_prefetch=0,
            grid=grid,
            in_specs=in_specs,
            out_specs=pl.BlockSpec((1, RB * W, Cout), main_map),
        ),
        compiler_params=pltpu.CompilerParams(
            dimension_semantics=("parallel", "parallel")),
    )(*args)

    out = out2d.reshape(N, H, W, Cout)
    return jnp.transpose(out, (0, 3, 1, 2))  # back to NCHW


# ----------------------------------------------------------------------------
# Pure-JAX reference (lax.conv) for validation.
# ----------------------------------------------------------------------------
def reference_forward(x_nchw, params, *, stride, expand_ratio):
    x = jnp.transpose(x_nchw, (0, 2, 3, 1)).astype(jnp.float32)
    Cin = x.shape[-1]
    Cout = params["w_proj"].shape[1]
    use_res = (stride == 1) and (Cin == Cout)

    h = x
    if expand_ratio != 1:
        s1, b1 = fold_bn(*params["bn1"])
        h = jnp.einsum("nhwc,cd->nhwd", h, params["w_expand"]) * s1 + b1
        h = jnp.clip(h, 0.0, 6.0)

    Chid = h.shape[-1]
    s2, b2 = fold_bn(*params["bn2"])
    rhs = params["w_dw"].reshape(3, 3, 1, Chid)
    h = lax.conv_general_dilated(
        h, rhs, window_strides=(stride, stride), padding=((1, 1), (1, 1)),
        dimension_numbers=("NHWC", "HWIO", "NHWC"), feature_group_count=Chid)
    h = jnp.clip(h * s2 + b2, 0.0, 6.0)

    s3, b3 = fold_bn(*params["bn3"])
    out = jnp.einsum("nhwc,cd->nhwd", h, params["w_proj"]) * s3 + b3
    if use_res:
        out = out + x
    return jnp.transpose(out, (0, 3, 1, 2))


def make_params(key, inp, oup, expand_ratio):
    hidden = round(inp * expand_ratio)
    keys = jax.random.split(key, 16)

    def bn(kg, kb, km, kv, c):
        gamma = jax.random.uniform(kg, (c,), jnp.float32, 0.8, 1.2)
        beta = 0.1 * jax.random.normal(kb, (c,), jnp.float32)
        mean = 0.1 * jax.random.normal(km, (c,), jnp.float32)
        var = jax.random.uniform(kv, (c,), jnp.float32, 0.5, 1.5)
        return (gamma, beta, mean, var)

    return {
        # PyTorch conv weight [out, in, 1, 1] stored transposed as [in, out]
        "w_expand": 0.1 * jax.random.normal(keys[0], (inp, hidden), jnp.float32),
        "bn1": bn(keys[1], keys[2], keys[3], keys[4], hidden),
        # depthwise weight [hidden, 1, 3, 3] stored as [3, 3, hidden]
        "w_dw": 0.1 * jax.random.normal(keys[5], (3, 3, hidden), jnp.float32),
        "bn2": bn(keys[6], keys[7], keys[8], keys[9], hidden),
        "w_proj": 0.1 * jax.random.normal(keys[10], (hidden, oup), jnp.float32),
        "bn3": bn(keys[11], keys[12], keys[13], keys[14], oup),
    }


if __name__ == "__main__":
    N, H, W = 2, 16, 16
    key = jax.random.PRNGKey(0)
    kx, kp, kp2 = jax.random.split(key, 3)

    # Case 1: InvertedResidual(inp=8, oup=8, stride=1, expand_ratio=4):
    # hidden=32, use_res_connect=True.  Input is PyTorch-style NCHW.
    inp, oup, stride, expand_ratio = 8, 8, 1, 4
    x = jax.random.normal(kx, (N, inp, H, W), jnp.float32)
    params = make_params(kp, inp, oup, expand_ratio)

    out = jax.block_until_ready(
        inverted_residual_forward(x, params, stride=stride,
                                  expand_ratio=expand_ratio))
    ref = jax.block_until_ready(
        reference_forward(x, params, stride=stride, expand_ratio=expand_ratio))
    assert out.shape == (N, oup, H, W), out.shape
    np.testing.assert_allclose(np.asarray(out), np.asarray(ref),
                               rtol=1e-3, atol=1e-3)

    # Case 2: expand_ratio=1 path (no expand conv), still with residual.
    params1 = make_params(kp2, inp, oup, 1)
    out1 = jax.block_until_ready(
        inverted_residual_forward(x, params1, stride=1, expand_ratio=1))
    ref1 = jax.block_until_ready(
        reference_forward(x, params1, stride=1, expand_ratio=1))
    np.testing.assert_allclose(np.asarray(out1), np.asarray(ref1),
                               rtol=1e-3, atol=1e-3)

    print("KERNEL_OK")
</pallas_src>

<mosaic_0001>
module attributes {stable_mosaic.version = 11 : i64} {
  func.func @_fused_kernel(%arg0: i32, %arg1: i32, %arg2: memref<1x256x8xf32, #tpu.memory_space<vmem>>, %arg3: memref<1x16x8xf32, #tpu.memory_space<vmem>>, %arg4: memref<1x16x8xf32, #tpu.memory_space<vmem>>, %arg5: memref<8x32xf32, #tpu.memory_space<vmem>>, %arg6: memref<1x32xf32, #tpu.memory_space<vmem>>, %arg7: memref<1x32xf32, #tpu.memory_space<vmem>>, %arg8: memref<9x32xf32, #tpu.memory_space<vmem>>, %arg9: memref<1x32xf32, #tpu.memory_space<vmem>>, %arg10: memref<1x32xf32, #tpu.memory_space<vmem>>, %arg11: memref<32x8xf32, #tpu.memory_space<vmem>>, %arg12: memref<1x8xf32, #tpu.memory_space<vmem>>, %arg13: memref<1x8xf32, #tpu.memory_space<vmem>>, %arg14: memref<1x256x8xf32, #tpu.memory_space<vmem>>) attributes {dimension_semantics = [#tpu.dimension_semantics<parallel>, #tpu.dimension_semantics<parallel>], iteration_bounds = array<i64: 2, 1>, scalar_prefetch = 0 : i64, scratch_operands = 0 : i64, tpu.core_type = #tpu.core_type<tc>, window_params = [{transform_indices = @transform_0, window_bounds = array<i64: 1, 256, 8>}, {transform_indices = @transform_1, window_bounds = array<i64: 1, 16, 8>}, {transform_indices = @transform_2, window_bounds = array<i64: 1, 16, 8>}, {pipeline_mode = #tpu.pipeline_mode<synchronous>, transform_indices = @transform_3, window_bounds = array<i64: 8, 32>}, {pipeline_mode = #tpu.pipeline_mode<synchronous>, transform_indices = @transform_4, window_bounds = array<i64: 1, 32>}, {pipeline_mode = #tpu.pipeline_mode<synchronous>, transform_indices = @transform_5, window_bounds = array<i64: 1, 32>}, {pipeline_mode = #tpu.pipeline_mode<synchronous>, transform_indices = @transform_6, window_bounds = array<i64: 9, 32>}, {pipeline_mode = #tpu.pipeline_mode<synchronous>, transform_indices = @transform_7, window_bounds = array<i64: 1, 32>}, {pipeline_mode = #tpu.pipeline_mode<synchronous>, transform_indices = @transform_8, window_bounds = array<i64: 1, 32>}, {pipeline_mode = #tpu.pipeline_mode<synchronous>, transform_indices = @transform_9, window_bounds = array<i64: 32, 8>}, {pipeline_mode = #tpu.pipeline_mode<synchronous>, transform_indices = @transform_10, window_bounds = array<i64: 1, 8>}, {pipeline_mode = #tpu.pipeline_mode<synchronous>, transform_indices = @transform_11, window_bounds = array<i64: 1, 8>}, {transform_indices = @transform_12, window_bounds = array<i64: 1, 256, 8>}]} {
    %c0 = arith.constant 0 : index
    %c0_0 = arith.constant 0 : index
    %c0_1 = arith.constant 0 : index
    %0 = vector.load %arg2[%c0, %c0_0, %c0_1] : memref<1x256x8xf32, #tpu.memory_space<vmem>>, vector<1x256x8xf32>
    %1 = vector.shape_cast %0 : vector<1x256x8xf32> to vector<256x8xf32>
    %c0_2 = arith.constant 0 : index
    %c0_3 = arith.constant 0 : index
    %c0_4 = arith.constant 0 : index
    %2 = vector.load %arg3[%c0_2, %c0_3, %c0_4] : memref<1x16x8xf32, #tpu.memory_space<vmem>>, vector<1x16x8xf32>
    %3 = vector.shape_cast %2 : vector<1x16x8xf32> to vector<16x8xf32>
    %c0_5 = arith.constant 0 : index
    %c0_6 = arith.constant 0 : index
    %c0_7 = arith.constant 0 : index
    %4 = vector.load %arg4[%c0_5, %c0_6, %c0_7] : memref<1x16x8xf32, #tpu.memory_space<vmem>>, vector<1x16x8xf32>
    %5 = vector.shape_cast %4 : vector<1x16x8xf32> to vector<16x8xf32>
    %6 = tpu.concatenate %3, %1, %5 in 0 : vector<16x8xf32>, vector<256x8xf32>, vector<16x8xf32> -> vector<288x8xf32>
    %c0_8 = arith.constant 0 : index
    %c0_9 = arith.constant 0 : index
    %7 = vector.load %arg5[%c0_8, %c0_9] : memref<8x32xf32, #tpu.memory_space<vmem>>, vector<8x32xf32>
    %cst = arith.constant dense<0.000000e+00> : vector<288x32xf32>
    %8 = tpu.matmul %6, %7, %cst {dimension_numbers = #tpu.dot_dimension_numbers<[1], [0], [0], [1], [0, 0, 1, 1], [], []>} : vector<288x8xf32>, vector<8x32xf32>, vector<288x32xf32> -> vector<288x32xf32>
    %c0_10 = arith.constant 0 : index
    %c0_11 = arith.constant 0 : index
    %9 = vector.load %arg6[%c0_10, %c0_11] : memref<1x32xf32, #tpu.memory_space<vmem>>, vector<1x32xf32>
    %10 = vector.broadcast %9 : vector<1x32xf32> to vector<288x32xf32>
    %11 = arith.mulf %8, %10 : vector<288x32xf32>
    %c0_12 = arith.constant 0 : index
    %c0_13 = arith.constant 0 : index
    %12 = vector.load %arg7[%c0_12, %c0_13] : memref<1x32xf32, #tpu.memory_space<vmem>>, vector<1x32xf32>
    %13 = vector.broadcast %12 : vector<1x32xf32> to vector<288x32xf32>
    %14 = arith.addf %11, %13 : vector<288x32xf32>
    %cst_14 = arith.constant 0.000000e+00 : f32
    %cst_15 = arith.constant 6.000000e+00 : f32
    %15 = vector.broadcast %cst_14 : f32 to vector<288x32xf32>
    %16 = arith.maximumf %15, %14 : vector<288x32xf32>
    %17 = vector.broadcast %cst_15 : f32 to vector<288x32xf32>
    %18 = arith.minimumf %17, %16 : vector<288x32xf32>
    %19 = tpu.iota {dimensions = array<i32: 0>} : vector<288x1xi32>
    %c16_i32 = arith.constant 16 : i32
    %20 = vector.broadcast %c16_i32 : i32 to vector<288x1xi32>
    %21 = arith.cmpi sge, %19, %20 : vector<288x1xi32>
    %c0_i32 = arith.constant 0 : i32
    %22 = arith.cmpi sgt, %arg1, %c0_i32 : i32
    %23 = vector.broadcast %22 : i1 to vector<288x1xi1>
    %24 = arith.ori %21, %23 : vector<288x1xi1>
    %c272_i32 = arith.constant 272 : i32
    %25 = vector.broadcast %c272_i32 : i32 to vector<288x1xi32>
    %26 = arith.cmpi slt, %19, %25 : vector<288x1xi32>
    %c0_i32_16 = arith.constant 0 : i32
    %27 = arith.cmpi slt, %arg1, %c0_i32_16 : i32
    %28 = vector.broadcast %27 : i1 to vector<288x1xi1>
    %29 = arith.ori %26, %28 : vector<288x1xi1>
    %30 = arith.andi %24, %29 : vector<288x1xi1>
    %cst_17 = arith.constant 0.000000e+00 : f32
    %31 = vector.shape_cast %30 : vector<288x1xi1> to vector<288x1xi1>
    %32 = vector.broadcast %31 : vector<288x1xi1> to vector<288x32xi1>
    %33 = vector.broadcast %cst_17 : f32 to vector<288x32xf32>
    %34 = arith.select %32, %18, %33 : vector<288x32xi1>, vector<288x32xf32>
    %c0_18 = arith.constant 0 : index
    %c0_19 = arith.constant 0 : index
    %35 = vector.load %arg8[%c0_18, %c0_19] : memref<9x32xf32, #tpu.memory_space<vmem>>, vector<9x32xf32>
    %c1_i32 = arith.constant 1 : i32
    %36 = tpu.dynamic_rotate %34 by %c1_i32 dim 0 : vector<288x32xf32>, i32 -> vector<288x32xf32>
    %c287_i32 = arith.constant 287 : i32
    %37 = tpu.dynamic_rotate %34 by %c287_i32 dim 0 : vector<288x32xf32>, i32 -> vector<288x32xf32>
    %cst_20 = arith.constant 0.000000e+00 : f32
    %38 = vector.broadcast %cst_20 : f32 to vector<256x32xf32>
    %cst_21 = arith.constant 0.000000e+00 : f32
    %39 = vector.broadcast %cst_21 : f32 to vector<256x32xf32>
    %cst_22 = arith.constant 0.000000e+00 : f32
    %40 = vector.broadcast %cst_22 : f32 to vector<256x32xf32>
    %41 = vector.extract_strided_slice %36 {offsets = [0, 0], sizes = [256, 32], strides = [1, 1]} : vector<288x32xf32> to vector<256x32xf32>
    %42 = vector.extract_strided_slice %35 {offsets = [0, 0], sizes = [1, 32], strides = [1, 1]} : vector<9x32xf32> to vector<1x32xf32>
    %43 = vector.broadcast %42 : vector<1x32xf32> to vector<256x32xf32>
    %44 = arith.mulf %41, %43 : vector<256x32xf32>
    %45 = arith.addf %39, %44 : vector<256x32xf32>
    %46 = vector.extract_strided_slice %34 {offsets = [0, 0], sizes = [256, 32], strides = [1, 1]} : vector<288x32xf32> to vector<256x32xf32>
    %47 = vector.extract_strided_slice %35 {offsets = [1, 0], sizes = [1, 32], strides = [1, 1]} : vector<9x32xf32> to vector<1x32xf32>
    %48 = vector.broadcast %47 : vector<1x32xf32> to vector<256x32xf32>
    %49 = arith.mulf %46, %48 : vector<256x32xf32>
    %50 = arith.addf %38, %49 : vector<256x32xf32>
    %51 = vector.extract_strided_slice %37 {offsets = [0, 0], sizes = [256, 32], strides = [1, 1]} : vector<288x32xf32> to vector<256x32xf32>
    %52 = vector.extract_strided_slice %35 {offsets = [2, 0], sizes = [1, 32], strides = [1, 1]} : vector<9x32xf32> to vector<1x32xf32>
    %53 = vector.broadcast %52 : vector<1x32xf32> to vector<256x32xf32>
    %54 = arith.mulf %51, %53 : vector<256x32xf32>
    %55 = arith.addf %40, %54 : vector<256x32xf32>
    %56 = vector.extract_strided_slice %36 {offsets = [16, 0], sizes = [256, 32], strides = [1, 1]} : vector<288x32xf32> to vector<256x32xf32>
    %57 = vector.extract_strided_slice %35 {offsets = [3, 0], sizes = [1, 32], strides = [1, 1]} : vector<9x32xf32> to vector<1x32xf32>
    %58 = vector.broadcast %57 : vector<1x32xf32> to vector<256x32xf32>
    %59 = arith.mulf %56, %58 : vector<256x32xf32>
    %60 = arith.addf %45, %59 : vector<256x32xf32>
    %61 = vector.extract_strided_slice %34 {offsets = [16, 0], sizes = [256, 32], strides = [1, 1]} : vector<288x32xf32> to vector<256x32xf32>
    %62 = vector.extract_strided_slice %35 {offsets = [4, 0], sizes = [1, 32], strides = [1, 1]} : vector<9x32xf32> to vector<1x32xf32>
    %63 = vector.broadcast %62 : vector<1x32xf32> to vector<256x32xf32>
    %64 = arith.mulf %61, %63 : vector<256x32xf32>
    %65 = arith.addf %50, %64 : vector<256x32xf32>
    %66 = vector.extract_strided_slice %37 {offsets = [16, 0], sizes = [256, 32], strides = [1, 1]} : vector<288x32xf32> to vector<256x32xf32>
    %67 = vector.extract_strided_slice %35 {offsets = [5, 0], sizes = [1, 32], strides = [1, 1]} : vector<9x32xf32> to vector<1x32xf32>
    %68 = vector.broadcast %67 : vector<1x32xf32> to vector<256x32xf32>
    %69 = arith.mulf %66, %68 : vector<256x32xf32>
    %70 = arith.addf %55, %69 : vector<256x32xf32>
    %71 = vector.extract_strided_slice %36 {offsets = [32, 0], sizes = [256, 32], strides = [1, 1]} : vector<288x32xf32> to vector<256x32xf32>
    %72 = vector.extract_strided_slice %35 {offsets = [6, 0], sizes = [1, 32], strides = [1, 1]} : vector<9x32xf32> to vector<1x32xf32>
    %73 = vector.broadcast %72 : vector<1x32xf32> to vector<256x32xf32>
    %74 = arith.mulf %71, %73 : vector<256x32xf32>
    %75 = arith.addf %60, %74 : vector<256x32xf32>
    %76 = vector.extract_strided_slice %34 {offsets = [32, 0], sizes = [256, 32], strides = [1, 1]} : vector<288x32xf32> to vector<256x32xf32>
    %77 = vector.extract_strided_slice %35 {offsets = [7, 0], sizes = [1, 32], strides = [1, 1]} : vector<9x32xf32> to vector<1x32xf32>
    %78 = vector.broadcast %77 : vector<1x32xf32> to vector<256x32xf32>
    %79 = arith.mulf %76, %78 : vector<256x32xf32>
    %80 = arith.addf %65, %79 : vector<256x32xf32>
    %81 = vector.extract_strided_slice %37 {offsets = [32, 0], sizes = [256, 32], strides = [1, 1]} : vector<288x32xf32> to vector<256x32xf32>
    %82 = vector.extract_strided_slice %35 {offsets = [8, 0], sizes = [1, 32], strides = [1, 1]} : vector<9x32xf32> to vector<1x32xf32>
    %83 = vector.broadcast %82 : vector<1x32xf32> to vector<256x32xf32>
    %84 = arith.mulf %81, %83 : vector<256x32xf32>
    %85 = arith.addf %70, %84 : vector<256x32xf32>
    %86 = tpu.iota {dimensions = array<i32: 0>} : vector<256x1xi32>
    %c16_i32_23 = arith.constant 16 : i32
    %c0_i32_24 = arith.constant 0 : i32
    %87 = arith.cmpi eq, %c16_i32_23, %c0_i32_24 : i32
    %c1_i32_25 = arith.constant 1 : i32
    %88 = arith.select %87, %c1_i32_25, %c16_i32_23 : i32
    %89 = vector.broadcast %88 : i32 to vector<256x1xi32>
    %90 = arith.remsi %86, %89 : vector<256x1xi32>
    %c0_i32_26 = arith.constant 0 : i32
    %91 = vector.broadcast %c0_i32_26 : i32 to vector<256x1xi32>
    %92 = arith.cmpi ne, %90, %91 : vector<256x1xi32>
    %c0_i32_27 = arith.constant 0 : i32
    %93 = vector.broadcast %c0_i32_27 : i32 to vector<256x1xi32>
    %94 = arith.cmpi slt, %90, %93 : vector<256x1xi32>
    %c0_i32_28 = arith.constant 0 : i32
    %95 = arith.cmpi slt, %88, %c0_i32_28 : i32
    %96 = vector.broadcast %95 : i1 to vector<256x1xi1>
    %97 = vector.broadcast %96 : vector<256x1xi1> to vector<256x1xi1>
    %98 = arith.xori %94, %97 : vector<256x1xi1>
    %99 = arith.andi %98, %92 : vector<256x1xi1>
    %100 = vector.broadcast %88 : i32 to vector<256x1xi32>
    %101 = arith.addi %90, %100 : vector<256x1xi32>
    %102 = arith.select %99, %101, %90 : vector<256x1xi1>, vector<256x1xi32>
    %c0_i32_29 = arith.constant 0 : i32
    %103 = vector.broadcast %c0_i32_29 : i32 to vector<256x1xi32>
    %104 = arith.cmpi sgt, %102, %103 : vector<256x1xi32>
    %cst_30 = arith.constant 0.000000e+00 : f32
    %105 = vector.shape_cast %104 : vector<256x1xi1> to vector<256x1xi1>
    %106 = vector.broadcast %105 : vector<256x1xi1> to vector<256x32xi1>
    %107 = vector.broadcast %cst_30 : f32 to vector<256x32xf32>
    %108 = arith.select %106, %75, %107 : vector<256x32xi1>, vector<256x32xf32>
    %109 = arith.addf %80, %108 : vector<256x32xf32>
    %c15_i32 = arith.constant 15 : i32
    %110 = vector.broadcast %c15_i32 : i32 to vector<256x1xi32>
    %111 = arith.cmpi slt, %102, %110 : vector<256x1xi32>
    %cst_31 = arith.constant 0.000000e+00 : f32
    %112 = vector.shape_cast %111 : vector<256x1xi1> to vector<256x1xi1>
    %113 = vector.broadcast %112 : vector<256x1xi1> to vector<256x32xi1>
    %114 = vector.broadcast %cst_31 : f32 to vector<256x32xf32>
    %115 = arith.select %113, %85, %114 : vector<256x32xi1>, vector<256x32xf32>
    %116 = arith.addf %109, %115 : vector<256x32xf32>
    %c0_32 = arith.constant 0 : index
    %c0_33 = arith.constant 0 : index
    %117 = vector.load %arg9[%c0_32, %c0_33] : memref<1x32xf32, #tpu.memory_space<vmem>>, vector<1x32xf32>
    %118 = vector.broadcast %117 : vector<1x32xf32> to vector<256x32xf32>
    %119 = arith.mulf %116, %118 : vector<256x32xf32>
    %c0_34 = arith.constant 0 : index
    %c0_35 = arith.constant 0 : index
    %120 = vector.load %arg10[%c0_34, %c0_35] : memref<1x32xf32, #tpu.memory_space<vmem>>, vector<1x32xf32>
    %121 = vector.broadcast %120 : vector<1x32xf32> to vector<256x32xf32>
    %122 = arith.addf %119, %121 : vector<256x32xf32>
    %cst_36 = arith.constant 0.000000e+00 : f32
    %cst_37 = arith.constant 6.000000e+00 : f32
    %123 = vector.broadcast %cst_36 : f32 to vector<256x32xf32>
    %124 = arith.maximumf %123, %122 : vector<256x32xf32>
    %125 = vector.broadcast %cst_37 : f32 to vector<256x32xf32>
    %126 = arith.minimumf %125, %124 : vector<256x32xf32>
    %c0_38 = arith.constant 0 : index
    %c0_39 = arith.constant 0 : index
    %127 = vector.load %arg11[%c0_38, %c0_39] : memref<32x8xf32, #tpu.memory_space<vmem>>, vector<32x8xf32>
    %cst_40 = arith.constant dense<0.000000e+00> : vector<256x8xf32>
    %128 = tpu.matmul %126, %127, %cst_40 {dimension_numbers = #tpu.dot_dimension_numbers<[1], [0], [0], [1], [0, 0, 1, 1], [], []>} : vector<256x32xf32>, vector<32x8xf32>, vector<256x8xf32> -> vector<256x8xf32>
    %c0_41 = arith.constant 0 : index
    %c0_42 = arith.constant 0 : index
    %129 = vector.load %arg12[%c0_41, %c0_42] : memref<1x8xf32, #tpu.memory_space<vmem>>, vector<1x8xf32>
    %130 = vector.broadcast %129 : vector<1x8xf32> to vector<256x8xf32>
    %131 = arith.mulf %128, %130 : vector<256x8xf32>
    %c0_43 = arith.constant 0 : index
    %c0_44 = arith.constant 0 : index
    %132 = vector.load %arg13[%c0_43, %c0_44] : memref<1x8xf32, #tpu.memory_space<vmem>>, vector<1x8xf32>
    %133 = vector.broadcast %132 : vector<1x8xf32> to vector<256x8xf32>
    %134 = arith.addf %131, %133 : vector<256x8xf32>
    %135 = arith.addf %134, %1 : vector<256x8xf32>
    %c0_45 = arith.constant 0 : index
    %c0_46 = arith.constant 0 : index
    %c0_47 = arith.constant 0 : index
    %136 = vector.load %arg14[%c0_45, %c0_46, %c0_47] : memref<1x256x8xf32, #tpu.memory_space<vmem>>, vector<1x256x8xf32>
    %137 = vector.shape_cast %136 : vector<1x256x8xf32> to vector<256x8xf32>
    %138 = vector.shape_cast %135 : vector<256x8xf32> to vector<1x256x8xf32>
    tpu.vector_store %arg14[%c0_45, %c0_46, %c0_47], %138 {strides = array<i32>} : memref<1x256x8xf32, #tpu.memory_space<vmem>>, vector<1x256x8xf32>,
    return
  }
  func.func @transform_0(%arg0: i32, %arg1: i32) -> (i32, i32, i32) {
    %c0_i32 = arith.constant 0 : i32
    %c0_i32_0 = arith.constant 0 : i32
    return %arg0, %arg1, %c0_i32 : i32, i32, i32
  }
  func.func @transform_1(%arg0: i32, %arg1: i32) -> (i32, i32, i32) {
    %c16_i32 = arith.constant 16 : i32
    %0 = arith.muli %arg1, %c16_i32 : i32
    %c1_i32 = arith.constant 1 : i32
    %1 = arith.subi %0, %c1_i32 : i32
    %c0_i32 = arith.constant 0 : i32
    %2 = arith.maxsi %1, %c0_i32 : i32
    %c0_i32_0 = arith.constant 0 : i32
    %c0_i32_1 = arith.constant 0 : i32
    return %arg0, %2, %c0_i32_0 : i32, i32, i32
  }
  func.func @transform_2(%arg0: i32, %arg1: i32) -> (i32, i32, i32) {
    %c16_i32 = arith.constant 16 : i32
    %0 = arith.muli %arg1, %c16_i32 : i32
    %c16_i32_0 = arith.constant 16 : i32
    %1 = arith.addi %0, %c16_i32_0 : i32
    %c15_i32 = arith.constant 15 : i32
    %2 = arith.minsi %1, %c15_i32 : i32
    %c0_i32 = arith.constant 0 : i32
    %c0_i32_1 = arith.constant 0 : i32
    return %arg0, %2, %c0_i32 : i32, i32, i32
  }
  func.func @transform_3(%arg0: i32, %arg1: i32) -> (i32, i32) {
    %c0_i32 = arith.constant 0 : i32
    %c0_i32_0 = arith.constant 0 : i32
    %c0_i32_1 = arith.constant 0 : i32
    return %c0_i32, %c0_i32_0 : i32, i32
  }
  func.func @transform_4(%arg0: i32, %arg1: i32) -> (i32, i32) {
    %c0_i32 = arith.constant 0 : i32
    %c0_i32_0 = arith.constant 0 : i32
    %c0_i32_1 = arith.constant 0 : i32
    return %c0_i32, %c0_i32_0 : i32, i32
  }
  func.func @transform_5(%arg0: i32, %arg1: i32) -> (i32, i32) {
    %c0_i32 = arith.constant 0 : i32
    %c0_i32_0 = arith.constant 0 : i32
    %c0_i32_1 = arith.constant 0 : i32
    return %c0_i32, %c0_i32_0 : i32, i32
  }
  func.func @transform_6(%arg0: i32, %arg1: i32) -> (i32, i32) {
    %c0_i32 = arith.constant 0 : i32
    %c0_i32_0 = arith.constant 0 : i32
    %c0_i32_1 = arith.constant 0 : i32
    return %c0_i32, %c0_i32_0 : i32, i32
  }
  func.func @transform_7(%arg0: i32, %arg1: i32) -> (i32, i32) {
    %c0_i32 = arith.constant 0 : i32
    %c0_i32_0 = arith.constant 0 : i32
    %c0_i32_1 = arith.constant 0 : i32
    return %c0_i32, %c0_i32_0 : i32, i32
  }
  func.func @transform_8(%arg0: i32, %arg1: i32) -> (i32, i32) {
    %c0_i32 = arith.constant 0 : i32
    %c0_i32_0 = arith.constant 0 : i32
    %c0_i32_1 = arith.constant 0 : i32
    return %c0_i32, %c0_i32_0 : i32, i32
  }
  func.func @transform_9(%arg0: i32, %arg1: i32) -> (i32, i32) {
    %c0_i32 = arith.constant 0 : i32
    %c0_i32_0 = arith.constant 0 : i32
    %c0_i32_1 = arith.constant 0 : i32
    return %c0_i32, %c0_i32_0 : i32, i32
  }
  func.func @transform_10(%arg0: i32, %arg1: i32) -> (i32, i32) {
    %c0_i32 = arith.constant 0 : i32
    %c0_i32_0 = arith.constant 0 : i32
    %c0_i32_1 = arith.constant 0 : i32
    return %c0_i32, %c0_i32_0 : i32, i32
  }
  func.func @transform_11(%arg0: i32, %arg1: i32) -> (i32, i32) {
    %c0_i32 = arith.constant 0 : i32
    %c0_i32_0 = arith.constant 0 : i32
    %c0_i32_1 = arith.constant 0 : i32
    return %c0_i32, %c0_i32_0 : i32, i32
  }
  func.func @transform_12(%arg0: i32, %arg1: i32) -> (i32, i32, i32) {
    %c0_i32 = arith.constant 0 : i32
    %c0_i32_0 = arith.constant 0 : i32
    return %arg0, %arg1, %c0_i32 : i32, i32, i32
  }
}

</mosaic_0001>

<llo_original>
// kernel: tpu_custom_call.1
$region0: #{tpu_custom_call.1}
  #allocation0 [shape = 'u32[]', space=smem, size = 0x4, offset = 0x4, fixed_abs, tag = 'smem constant byte address 0x4 - core index']
  #allocation1 [shape = 'u32[144,128]{1,0:T(1,128)}', space=vmem, size = 0x12000, scoped, tag = 'internal scratch']
  %s0 = inlined_call_operand.vmem [shape: f32[2,256,8], index: 0, kind: input, shape index: {}]
  %s1 = inlined_call_operand.vmem [shape: f32[2,256,8], index: 1, kind: input, shape index: {}]
  %s2 = inlined_call_operand.vmem [shape: f32[2,256,8], index: 2, kind: input, shape index: {}]
  %s3 = inlined_call_operand.vmem [shape: f32[8,32], index: 3, kind: input, shape index: {}]
  %s4 = inlined_call_operand.vmem [shape: f32[1,32], index: 4, kind: input, shape index: {}]
  %s5 = inlined_call_operand.vmem [shape: f32[1,32], index: 5, kind: input, shape index: {}]
  %s6 = inlined_call_operand.vmem [shape: f32[9,32], index: 6, kind: input, shape index: {}]
  %s7 = inlined_call_operand.vmem [shape: f32[1,32], index: 7, kind: input, shape index: {}]
  %s8 = inlined_call_operand.vmem [shape: f32[1,32], index: 8, kind: input, shape index: {}]
  %s9 = inlined_call_operand.vmem [shape: f32[32,8], index: 9, kind: input, shape index: {}]
  %s10 = inlined_call_operand.vmem [shape: f32[1,8], index: 10, kind: input, shape index: {}]
  %s11 = inlined_call_operand.vmem [shape: f32[1,8], index: 11, kind: input, shape index: {}]
  %s12 = inlined_call_operand.vmem [shape: f32[2,256,8], index: 12, kind: output, shape index: {}]
  %s13 = sld [smem:[#allocation0]]
  $region81: #{tpu_custom_call.1} parent=0
    _
  %s15 = ssub.s32 1, %s13
  %s16 = scalar_select 0, %s15, %s13
  loop: start=0, step=1, limit=4
  $region2: #{tpu_custom_call.1} parent=0 // loop_pre_header
    _
  $region3: #{tpu_custom_call.1} parent=0 // loop_header
    %s18 = sphi 0, %s22
    %p19 = scmp.ge.s32.totalorder %s18, 4
    %s25 = sphi 0, %s37
    %s26 = sphi 0, %s33
    %s27 = sphi 0, %s25
    %s28 = sphi 0, %s26
    %s29 = sphi 0, %s27
    %s30 = sphi 0, %s28
    %s42 = sphi 0, %s44
    %s45 = sphi 0, %s42
    %s46 = sphi 0, %s45
    %s62 = sphi 0, %s46
    %s78 = sphi 0, %s80
    %s81 = sphi 0, %s78
    %s82 = sphi 0, %s81
    %s98 = sphi 0, %s82
    %s114 = sphi 0, %s116
    %s117 = sphi 0, %s114
    %s118 = sphi 0, %s117
    %s134 = sphi 0, %s118
    %s138 = sphi 0, %s138
    %s140 = sphi 0, %s138
    %s141 = sphi 0, %s140
    %s155 = sphi 0, %s141
    %s159 = sphi 0, %s159
    %s161 = sphi 0, %s159
    %s162 = sphi 0, %s161
    %s176 = sphi 0, %s162
    %s180 = sphi 0, %s180
    %s182 = sphi 0, %s180
    %s183 = sphi 0, %s182
    %s197 = sphi 0, %s183
    %s201 = sphi 0, %s201
    %s203 = sphi 0, %s201
    %s204 = sphi 0, %s203
    %s218 = sphi 0, %s204
    %s222 = sphi 0, %s222
    %s224 = sphi 0, %s222
    %s225 = sphi 0, %s224
    %s239 = sphi 0, %s225
    %s243 = sphi 0, %s243
    %s245 = sphi 0, %s243
    %s246 = sphi 0, %s245
    %s260 = sphi 0, %s246
    %s264 = sphi 0, %s264
    %s266 = sphi 0, %s264
    %s267 = sphi 0, %s266
    %s281 = sphi 0, %s267
    %s285 = sphi 0, %s285
    %s287 = sphi 0, %s285
    %s288 = sphi 0, %s287
    %s302 = sphi 0, %s288
    %s306 = sphi 0, %s306
    %s308 = sphi 0, %s306
    %s309 = sphi 0, %s308
    %s323 = sphi 0, %s309
    %s331 = sphi 0, %s333
    %s334 = sphi 0, %s331
    %s335 = sphi 0, %s334
    %s351 = sphi 0, %s335
  $region4: #{tpu_custom_call.1} parent=0 // loop_header_branch
    %21 = sbr.rel (%p19) target = $region8
  $region5: #{tpu_custom_call.1} parent=0 // loop_body
    %s23 = ssub.s32 %s18, 1
    %s24 = ssub.s32 %s18, 2
    %s31 = sadd.s32 1, %s26
    %p32 = scmp.ge.s32.totalorder %s31, 1
    %s33 = scalar_select %p32, 0, %s31
    %s34 = sadd.s32 1, %s25
    %s35 = scalar_select %p32, %s34, %s25
    %p36 = scmp.ge.s32.totalorder %s35, 2
    %s37 = scalar_select %p36, 0, %s35
    %s38 = ssub.s32 %s25, %s37
    %s39 = ssub.s32 %s26, %s33
    %s40 = sor.u32 %s38, %s39
    %p41 = scmp.eq.s32.totalorder %s40, 0
    %s43 = sadd.s32 %s42, 1
    %s44 = scalar_select %p41, %s42, %s43
    %p47 = pneg %p41
    %p48 = scmp.eq.s32.totalorder %s18, 1
    %p49 = por %p47, %p48
    %p50 = scmp.ne.s32.totalorder %s42, %s45
    %p51 = scmp.eq.s32.totalorder %s18, 0
    %p52 = por %p50, %p51
    %p53 = scmp.ne.s32.totalorder %s42, %s45
    %p54 = scmp.eq.s32.totalorder %s23, 1
    %p55 = por %p53, %p54
    %p56 = scmp.ne.s32.totalorder %s45, %s46
    %p57 = scmp.eq.s32.totalorder %s23, 0
    %p58 = por %p56, %p57
    %p59 = scmp.ne.s32.totalorder %s45, %s46
    %p60 = scmp.eq.s32.totalorder %s24, 1
    %p61 = por %p59, %p60
    %p63 = scmp.ne.s32.totalorder %s46, %s62
    %p64 = scmp.eq.s32.totalorder %s24, 0
    %p65 = por %p63, %p64
    %s66 = smul.u32 %s26, 16
    %s67 = ssub.s32 %s66, 1
    %p68 = scmp.gt.s32.totalorder %s67, 0
    %s69 = scalar_select %p68, %s67, 0
    %s70 = smul.u32 %s33, 16
    %s71 = ssub.s32 %s70, 1
    %p72 = scmp.gt.s32.totalorder %s71, 0
    %s73 = scalar_select %p72, %s71, 0
    %s74 = ssub.s32 %s25, %s37
    %s75 = ssub.s32 %s69, %s73
    %s76 = sor.u32 %s74, %s75
    %p77 = scmp.eq.s32.totalorder %s76, 0
    %s79 = sadd.s32 %s78, 1
    %s80 = scalar_select %p77, %s78, %s79
    %p83 = pneg %p77
    %p84 = scmp.eq.s32.totalorder %s18, 1
    %p85 = por %p83, %p84
    %p86 = scmp.ne.s32.totalorder %s78, %s81
    %p87 = scmp.eq.s32.totalorder %s18, 0
    %p88 = por %p86, %p87
    %p89 = scmp.ne.s32.totalorder %s78, %s81
    %p90 = scmp.eq.s32.totalorder %s23, 1
    %p91 = por %p89, %p90
    %p92 = scmp.ne.s32.totalorder %s81, %s82
    %p93 = scmp.eq.s32.totalorder %s23, 0
    %p94 = por %p92, %p93
    %p95 = scmp.ne.s32.totalorder %s81, %s82
    %p96 = scmp.eq.s32.totalorder %s24, 1
    %p97 = por %p95, %p96
    %p99 = scmp.ne.s32.totalorder %s82, %s98
    %p100 = scmp.eq.s32.totalorder %s24, 0
    %p101 = por %p99, %p100
    %s102 = smul.u32 %s26, 16
    %s103 = sadd.s32 %s102, 16
    %p104 = scmp.lt.s32.totalorder %s103, 15
    %s105 = scalar_select %p104, %s103, 15
    %s106 = smul.u32 %s33, 16
    %s107 = sadd.s32 %s106, 16
    %p108 = scmp.lt.s32.totalorder %s107, 15
    %s109 = scalar_select %p108, %s107, 15
    %s110 = ssub.s32 %s25, %s37
    %s111 = ssub.s32 %s105, %s109
    %s112 = sor.u32 %s110, %s111
    %p113 = scmp.eq.s32.totalorder %s112, 0
    %s115 = sadd.s32 %s114, 1
    %s116 = scalar_select %p113, %s114, %s115
    %p119 = pneg %p113
    %p120 = scmp.eq.s32.totalorder %s18, 1
    %p121 = por %p119, %p120
    %p122 = scmp.ne.s32.totalorder %s114, %s117
    %p123 = scmp.eq.s32.totalorder %s18, 0
    %p124 = por %p122, %p123
    %p125 = scmp.ne.s32.totalorder %s114, %s117
    %p126 = scmp.eq.s32.totalorder %s23, 1
    %p127 = por %p125, %p126
    %p128 = scmp.ne.s32.totalorder %s117, %s118
    %p129 = scmp.eq.s32.totalorder %s23, 0
    %p130 = por %p128, %p129
    %p131 = scmp.ne.s32.totalorder %s117, %s118
    %p132 = scmp.eq.s32.totalorder %s24, 1
    %p133 = por %p131, %p132
    %p135 = scmp.ne.s32.totalorder %s118, %s134
    %p136 = scmp.eq.s32.totalorder %s24, 0
    %p137 = por %p135, %p136
    %s139 = sadd.s32 %s138, 1
    %p142 = scmp.eq.s32.totalorder %s18, 1
    %p143 = scmp.ne.s32.totalorder %s138, %s140
    %p144 = scmp.eq.s32.totalorder %s18, 0
    %p145 = por %p143, %p144
    %p146 = scmp.ne.s32.totalorder %s138, %s140
    %p147 = scmp.eq.s32.totalorder %s23, 1
    %p148 = por %p146, %p147
    %p149 = scmp.ne.s32.totalorder %s140, %s141
    %p150 = scmp.eq.s32.totalorder %s23, 0
    %p151 = por %p149, %p150
    %p152 = scmp.ne.s32.totalorder %s140, %s141
    %p153 = scmp.eq.s32.totalorder %s24, 1
    %p154 = por %p152, %p153
    %p156 = scmp.ne.s32.totalorder %s141, %s155
    %p157 = scmp.eq.s32.totalorder %s24, 0
    %p158 = por %p156, %p157
    %s160 = sadd.s32 %s159, 1
    %p163 = scmp.eq.s32.totalorder %s18, 1
    %p164 = scmp.ne.s32.totalorder %s159, %s161
    %p165 = scmp.eq.s32.totalorder %s18, 0
    %p166 = por %p164, %p165
    %p167 = scmp.ne.s32.totalorder %s159, %s161
    %p168 = scmp.eq.s32.totalorder %s23, 1
    %p169 = por %p167, %p168
    %p170 = scmp.ne.s32.totalorder %s161, %s162
    %p171 = scmp.eq.s32.totalorder %s23, 0
    %p172 = por %p170, %p171
    %p173 = scmp.ne.s32.totalorder %s161, %s162
    %p174 = scmp.eq.s32.totalorder %s24, 1
    %p175 = por %p173, %p174
    %p177 = scmp.ne.s32.totalorder %s162, %s176
    %p178 = scmp.eq.s32.totalorder %s24, 0
    %p179 = por %p177, %p178
    %s181 = sadd.s32 %s180, 1
    %p184 = scmp.eq.s32.totalorder %s18, 1
    %p185 = scmp.ne.s32.totalorder %s180, %s182
    %p186 = scmp.eq.s32.totalorder %s18, 0
    %p187 = por %p185, %p186
    %p188 = scmp.ne.s32.totalorder %s180, %s182
    %p189 = scmp.eq.s32.totalorder %s23, 1
    %p190 = por %p188, %p189
    %p191 = scmp.ne.s32.totalorder %s182, %s183
    %p192 = scmp.eq.s32.totalorder %s23, 0
    %p193 = por %p191, %p192
    %p194 = scmp.ne.s32.totalorder %s182, %s183
    %p195 = scmp.eq.s32.totalorder %s24, 1
    %p196 = por %p194, %p195
    %p198 = scmp.ne.s32.totalorder %s183, %s197
    %p199 = scmp.eq.s32.totalorder %s24, 0
    %p200 = por %p198, %p199
    %s202 = sadd.s32 %s201, 1
    %p205 = scmp.eq.s32.totalorder %s18, 1
    %p206 = scmp.ne.s32.totalorder %s201, %s203
    %p207 = scmp.eq.s32.totalorder %s18, 0
    %p208 = por %p206, %p207
    %p209 = scmp.ne.s32.totalorder %s201, %s203
    %p210 = scmp.eq.s32.totalorder %s23, 1
    %p211 = por %p209, %p210
    %p212 = scmp.ne.s32.totalorder %s203, %s204
    %p213 = scmp.eq.s32.totalorder %s23, 0
    %p214 = por %p212, %p213
    %p215 = scmp.ne.s32.totalorder %s203, %s204
    %p216 = scmp.eq.s32.totalorder %s24, 1
    %p217 = por %p215, %p216
    %p219 = scmp.ne.s32.totalorder %s204, %s218
    %p220 = scmp.eq.s32.totalorder %s24, 0
    %p221 = por %p219, %p220
    %s223 = sadd.s32 %s222, 1
    %p226 = scmp.eq.s32.totalorder %s18, 1
    %p227 = scmp.ne.s32.totalorder %s222, %s224
    %p228 = scmp.eq.s32.totalorder %s18, 0
    %p229 = por %p227, %p228
    %p230 = scmp.ne.s32.totalorder %s222, %s224
    %p231 = scmp.eq.s32.totalorder %s23, 1
    %p232 = por %p230, %p231
    %p233 = scmp.ne.s32.totalorder %s224, %s225
    %p234 = scmp.eq.s32.totalorder %s23, 0
    %p235 = por %p233, %p234
    %p236 = scmp.ne.s32.totalorder %s224, %s225
    %p237 = scmp.eq.s32.totalorder %s24, 1
    %p238 = por %p236, %p237
    %p240 = scmp.ne.s32.totalorder %s225, %s239
    %p241 = scmp.eq.s32.totalorder %s24, 0
    %p242 = por %p240, %p241
    %s244 = sadd.s32 %s243, 1
    %p247 = scmp.eq.s32.totalorder %s18, 1
    %p248 = scmp.ne.s32.totalorder %s243, %s245
    %p249 = scmp.eq.s32.totalorder %s18, 0
    %p250 = por %p248, %p249
    %p251 = scmp.ne.s32.totalorder %s243, %s245
    %p252 = scmp.eq.s32.totalorder %s23, 1
    %p253 = por %p251, %p252
    %p254 = scmp.ne.s32.totalorder %s245, %s246
    %p255 = scmp.eq.s32.totalorder %s23, 0
    %p256 = por %p254, %p255
    %p257 = scmp.ne.s32.totalorder %s245, %s246
    %p258 = scmp.eq.s32.totalorder %s24, 1
    %p259 = por %p257, %p258
    %p261 = scmp.ne.s32.totalorder %s246, %s260
    %p262 = scmp.eq.s32.totalorder %s24, 0
    %p263 = por %p261, %p262
    %s265 = sadd.s32 %s264, 1
    %p268 = scmp.eq.s32.totalorder %s18, 1
    %p269 = scmp.ne.s32.totalorder %s264, %s266
    %p270 = scmp.eq.s32.totalorder %s18, 0
    %p271 = por %p269, %p270
    %p272 = scmp.ne.s32.totalorder %s264, %s266
    %p273 = scmp.eq.s32.totalorder %s23, 1
    %p274 = por %p272, %p273
    %p275 = scmp.ne.s32.totalorder %s266, %s267
    %p276 = scmp.eq.s32.totalorder %s23, 0
    %p277 = por %p275, %p276
    %p278 = scmp.ne.s32.totalorder %s266, %s267
    %p279 = scmp.eq.s32.totalorder %s24, 1
    %p280 = por %p278, %p279
    %p282 = scmp.ne.s32.totalorder %s267, %s281
    %p283 = scmp.eq.s32.totalorder %s24, 0
    %p284 = por %p282, %p283
    %s286 = sadd.s32 %s285, 1
    %p289 = scmp.eq.s32.totalorder %s18, 1
    %p290 = scmp.ne.s32.totalorder %s285, %s287
    %p291 = scmp.eq.s32.totalorder %s18, 0
    %p292 = por %p290, %p291
    %p293 = scmp.ne.s32.totalorder %s285, %s287
    %p294 = scmp.eq.s32.totalorder %s23, 1
    %p295 = por %p293, %p294
    %p296 = scmp.ne.s32.totalorder %s287, %s288
    %p297 = scmp.eq.s32.totalorder %s23, 0
    %p298 = por %p296, %p297
    %p299 = scmp.ne.s32.totalorder %s287, %s288
    %p300 = scmp.eq.s32.totalorder %s24, 1
    %p301 = por %p299, %p300
    %p303 = scmp.ne.s32.totalorder %s288, %s302
    %p304 = scmp.eq.s32.totalorder %s24, 0
    %p305 = por %p303, %p304
    %s307 = sadd.s32 %s306, 1
    %p310 = scmp.eq.s32.totalorder %s18, 1
    %p311 = scmp.ne.s32.totalorder %s306, %s308
    %p312 = scmp.eq.s32.totalorder %s18, 0
    %p313 = por %p311, %p312
    %p314 = scmp.ne.s32.totalorder %s306, %s308
    %p315 = scmp.eq.s32.totalorder %s23, 1
    %p316 = por %p314, %p315
    %p317 = scmp.ne.s32.totalorder %s308, %s309
    %p318 = scmp.eq.s32.totalorder %s23, 0
    %p319 = por %p317, %p318
    %p320 = scmp.ne.s32.totalorder %s308, %s309
    %p321 = scmp.eq.s32.totalorder %s24, 1
    %p322 = por %p320, %p321
    %p324 = scmp.ne.s32.totalorder %s309, %s323
    %p325 = scmp.eq.s32.totalorder %s24, 0
    %p326 = por %p324, %p325
    %s327 = ssub.s32 %s25, %s37
    %s328 = ssub.s32 %s26, %s33
    %s329 = sor.u32 %s327, %s328
    %p330 = scmp.eq.s32.totalorder %s329, 0
    %s332 = sadd.s32 %s331, 1
    %s333 = scalar_select %p330, %s331, %s332
    %p336 = pneg %p330
    %p337 = scmp.eq.s32.totalorder %s18, 1
    %p338 = por %p336, %p337
    %p339 = scmp.ne.s32.totalorder %s331, %s334
    %p340 = scmp.eq.s32.totalorder %s18, 0
    %p341 = por %p339, %p340
    %p342 = scmp.ne.s32.totalorder %s331, %s334
    %p343 = scmp.eq.s32.totalorder %s23, 1
    %p344 = por %p342, %p343
    %p345 = scmp.ne.s32.totalorder %s334, %s335
    %p346 = scmp.eq.s32.totalorder %s23, 0
    %p347 = por %p345, %p346
    %p348 = scmp.ne.s32.totalorder %s334, %s335
    %p349 = scmp.eq.s32.totalorder %s24, 1
    %p350 = por %p348, %p349
    %p352 = scmp.ne.s32.totalorder %s335, %s351
    %p353 = scmp.eq.s32.totalorder %s24, 0
    %p354 = por %p352, %p353
    %p355 = scmp.le.s32.totalorder 1, %s18
    %p356 = scmp.lt.s32.totalorder %s18, 3
    %p357 = pnand %p355, %p356
    %p358 = pneg %p357
    // Predicated region
    $region9: #{tpu_custom_call.1} parent=5 // pred_check
      _
    $region10: #{tpu_custom_call.1} parent=5 // pred_check_branch
      %360 = sbr.rel (%p357) target = $region12
    $region11: #{tpu_custom_call.1} parent=5 // pred_region
      %s361 = ssub.s32 %s18, 1
      // Predicated region
      $region13: #{tpu_custom_call.1} parent=11 // pred_check
        %p362 = pneg %p151
      $region14: #{tpu_custom_call.1} parent=11 // pred_check_branch
        %364 = sbr.rel (%p362) target = $region16
      $region15: #{tpu_custom_call.1} parent=11 // pred_region
        _
      $region16: #{tpu_custom_call.1} parent=11 // pred_fallthru
        _
      // Predicated region
      $region17: #{tpu_custom_call.1} parent=11 // pred_check
        %p365 = pneg %p172
      $region18: #{tpu_custom_call.1} parent=11 // pred_check_branch
        %367 = sbr.rel (%p365) target = $region20
      $region19: #{tpu_custom_call.1} parent=11 // pred_region
        _
      $region20: #{tpu_custom_call.1} parent=11 // pred_fallthru
        _
      // Predicated region
      $region21: #{tpu_custom_call.1} parent=11 // pred_check
        %p368 = pneg %p193
      $region22: #{tpu_custom_call.1} parent=11 // pred_check_branch
        %370 = sbr.rel (%p368) target = $region24
      $region23: #{tpu_custom_call.1} parent=11 // pred_region
        _
      $region24: #{tpu_custom_call.1} parent=11 // pred_fallthru
        _
      // Predicated region
      $region25: #{tpu_custom_call.1} parent=11 // pred_check
        %p371 = pneg %p214
      $region26: #{tpu_custom_call.1} parent=11 // pred_check_branch
        %373 = sbr.rel (%p371) target = $region28
      $region27: #{tpu_custom_call.1} parent=11 // pred_region
        _
      $region28: #{tpu_custom_call.1} parent=11 // pred_fallthru
        _
      // Predicated region
      $region29: #{tpu_custom_call.1} parent=11 // pred_check
        %p374 = pneg %p235
      $region30: #{tpu_custom_call.1} parent=11 // pred_check_branch
        %376 = sbr.rel (%p374) target = $region32
      $region31: #{tpu_custom_call.1} parent=11 // pred_region
        _
      $region32: #{tpu_custom_call.1} parent=11 // pred_fallthru
        _
      // Predicated region
      $region33: #{tpu_custom_call.1} parent=11 // pred_check
        %p377 = pneg %p256
      $region34: #{tpu_custom_call.1} parent=11 // pred_check_branch
        %379 = sbr.rel (%p377) target = $region36
      $region35: #{tpu_custom_call.1} parent=11 // pred_region
        _
      $region36: #{tpu_custom_call.1} parent=11 // pred_fallthru
        _
      // Predicated region
      $region37: #{tpu_custom_call.1} parent=11 // pred_check
        %p380 = pneg %p277
      $region38: #{tpu_custom_call.1} parent=11 // pred_check_branch
        %382 = sbr.rel (%p380) target = $region40
      $region39: #{tpu_custom_call.1} parent=11 // pred_region
        _
      $region40: #{tpu_custom_call.1} parent=11 // pred_fallthru
        _
      // Predicated region
      $region41: #{tpu_custom_call.1} parent=11 // pred_check
        %p383 = pneg %p298
      $region42: #{tpu_custom_call.1} parent=11 // pred_check_branch
        %385 = sbr.rel (%p383) target = $region44
      $region43: #{tpu_custom_call.1} parent=11 // pred_region
        _
      $region44: #{tpu_custom_call.1} parent=11 // pred_fallthru
        _
      // Predicated region
      $region45: #{tpu_custom_call.1} parent=11 // pred_check
        %p386 = pneg %p319
      $region46: #{tpu_custom_call.1} parent=11 // pred_check_branch
        %388 = sbr.rel (%p386) target = $region48
      $region47: #{tpu_custom_call.1} parent=11 // pred_region
        _
      $region48: #{tpu_custom_call.1} parent=11 // pred_fallthru
        _
    $region12: #{tpu_custom_call.1} parent=5 // pred_fallthru
      _
    %p389 = scmp.lt.s32.totalorder %s18, 2
    // Predicated region
    $region49: #{tpu_custom_call.1} parent=5 // pred_check
      %p390 = pneg %p389
    $region50: #{tpu_custom_call.1} parent=5 // pred_check_branch
      %392 = sbr.rel (%p390) target = $region52
    $region51: #{tpu_custom_call.1} parent=5 // pred_region
      // Predicated region
      $region53: #{tpu_custom_call.1} parent=51 // pred_check
        %p393 = pneg %p52
      $region54: #{tpu_custom_call.1} parent=51 // pred_check_branch
        %395 = sbr.rel (%p393) target = $region56
      $region55: #{tpu_custom_call.1} parent=51 // pred_region
        %s396 = smul.u32 32, %s26
        %p397 = scmp.lt.s32.totalorder %s25, 1
        %s398 = scalar_select %p397, %s25, 1
        %p399 = scmp.lt.s32.totalorder %s396, 31
        %s400 = scalar_select %p399, %s396, 31
        %s401 = smul.addr %s398, 32
        %s402 = sadd.s32 %s400, %s401
        %s403 = smul.addr %s402, 8
        %s404 = scalar_lea.vmem %s0, %s403
        %s405 = smul.u32 32, %s26
      $region56: #{tpu_custom_call.1} parent=51 // pred_fallthru
        _
      // Predicated region
      $region57: #{tpu_custom_call.1} parent=51 // pred_check
        %p406 = pneg %p88
      $region58: #{tpu_custom_call.1} parent=51 // pred_check_branch
        %408 = sbr.rel (%p406) target = $region60
      $region59: #{tpu_custom_call.1} parent=51 // pred_region
        %s409 = smul.u32 %s26, 16
        %s410 = ssub.s32 %s409, 1
        %p411 = scmp.gt.s32.totalorder %s410, 0
        %s412 = scalar_select %p411, %s410, 0
        %s413 = smul.u32 2, %s412
        %p414 = scmp.lt.s32.totalorder %s25, 1
        %s415 = scalar_select %p414, %s25, 1
        %p416 = scmp.lt.s32.totalorder %s413, 31
        %s417 = scalar_select %p416, %s413, 31
        %s418 = smul.addr %s415, 32
        %s419 = sadd.s32 %s417, %s418
        %s420 = smul.addr %s419, 8
        %s421 = scalar_lea.vmem %s1, %s420
        %s422 = smul.u32 %s26, 16
        %s423 = ssub.s32 %s422, 1
        %p424 = scmp.gt.s32.totalorder %s423, 0
        %s425 = scalar_select %p424, %s423, 0
        %s426 = smul.u32 2, %s425
      $region60: #{tpu_custom_call.1} parent=51 // pred_fallthru
        _
      // Predicated region
      $region61: #{tpu_custom_call.1} parent=51 // pred_check
        %p427 = pneg %p124
      $region62: #{tpu_custom_call.1} parent=51 // pred_check_branch
        %429 = sbr.rel (%p427) target = $region64
      $region63: #{tpu_custom_call.1} parent=51 // pred_region
        %s430 = smul.u32 %s26, 16
        %s431 = sadd.s32 %s430, 16
        %p432 = scmp.lt.s32.totalorder %s431, 15
        %s433 = scalar_select %p432, %s431, 15
        %s434 = smul.u32 2, %s433
        %p435 = scmp.lt.s32.totalorder %s25, 1
        %s436 = scalar_select %p435, %s25, 1
        %p437 = scmp.lt.s32.totalorder %s434, 31
        %s438 = scalar_select %p437, %s434, 31
        %s439 = smul.addr %s436, 32
        %s440 = sadd.s32 %s438, %s439
        %s441 = smul.addr %s440, 8
        %s442 = scalar_lea.vmem %s2, %s441
        %s443 = smul.u32 %s26, 16
        %s444 = sadd.s32 %s443, 16
        %p445 = scmp.lt.s32.totalorder %s444, 15
        %s446 = scalar_select %p445, %s444, 15
        %s447 = smul.u32 2, %s446
      $region64: #{tpu_custom_call.1} parent=51 // pred_fallthru
        _
    $region52: #{tpu_custom_call.1} parent=5 // pred_fallthru
      _
    %p448 = scmp.le.s32.totalorder 1, %s18
    %p449 = scmp.lt.s32.totalorder %s18, 3
    %p450 = pnand %p448, %p449
    %p451 = pneg %p450
    // Predicated region
    $region65: #{tpu_custom_call.1} parent=5 // pred_check
      _
    $region66: #{tpu_custom_call.1} parent=5 // pred_check_branch
      %453 = sbr.rel (%p450) target = $region68
    $region67: #{tpu_custom_call.1} parent=5 // pred_region
      %s454 = ssub.s32 %s18, 1
      %s455 = smul.u32 32, %s28
      %p456 = scmp.lt.s32.totalorder %s27, 1
      %s457 = scalar_select %p456, %s27, 1
      %p458 = scmp.lt.s32.totalorder %s455, 31
      %s459 = scalar_select %p458, %s455, 31
      %s460 = smul.addr %s457, 32
      %s461 = sadd.s32 %s459, %s460
      %s462 = smul.addr %s461, 8
      %s463 = scalar_lea.vmem %s0, %s462
      %p464 = pneg %p58
      %p465 = pneg %p55
      %s466 = smul.u32 %s28, 16
      %s467 = ssub.s32 %s466, 1
      %p468 = scmp.gt.s32.totalorder %s467, 0
      %s469 = scalar_select %p468, %s467, 0
      %s470 = smul.u32 2, %s469
      %p471 = scmp.lt.s32.totalorder %s27, 1
      %s472 = scalar_select %p471, %s27, 1
      %p473 = scmp.lt.s32.totalorder %s470, 31
      %s474 = scalar_select %p473, %s470, 31
      %s475 = smul.addr %s472, 32
      %s476 = sadd.s32 %s474, %s475
      %s477 = smul.addr %s476, 8
      %s478 = scalar_lea.vmem %s1, %s477
      %p479 = pneg %p94
      %p480 = pneg %p91
      %s481 = smul.u32 %s28, 16
      %s482 = sadd.s32 %s481, 16
      %p483 = scmp.lt.s32.totalorder %s482, 15
      %s484 = scalar_select %p483, %s482, 15
      %s485 = smul.u32 2, %s484
      %p486 = scmp.lt.s32.totalorder %s27, 1
      %s487 = scalar_select %p486, %s27, 1
      %p488 = scmp.lt.s32.totalorder %s485, 31
      %s489 = scalar_select %p488, %s485, 31
      %s490 = smul.addr %s487, 32
      %s491 = sadd.s32 %s489, %s490
      %s492 = smul.addr %s491, 8
      %s493 = scalar_lea.vmem %s2, %s492
      %p494 = pneg %p130
      %p495 = pneg %p127
      %p496 = pneg %p151
      %p497 = pneg %p148
      %p498 = pneg %p172
      %p499 = pneg %p169
      %p500 = pneg %p193
      %p501 = pneg %p190
      %p502 = pneg %p214
      %p503 = pneg %p211
      %p504 = pneg %p235
      %p505 = pneg %p232
      %p506 = pneg %p256
      %p507 = pneg %p253
      %p508 = pneg %p277
      %p509 = pneg %p274
      %p510 = pneg %p298
      %p511 = pneg %p295
      %p512 = pneg %p319
      %p513 = pneg %p316
      %p514 = pneg %p347
      %p515 = pneg %p344
      %s516 = smul.u32 32, %s28
      %p517 = scmp.lt.s32.totalorder %s27, 1
      %s518 = scalar_select %p517, %s27, 1
      %p519 = scmp.lt.s32.totalorder %s516, 31
      %s520 = scalar_select %p519, %s516, 31
      %s521 = smul.addr %s518, 32
      %s522 = sadd.s32 %s520, %s521
      %s523 = smul.addr %s522, 8
      %s524 = scalar_lea.vmem %s12, %s523
      %s525 = smul.u32 32, %s28
      %p526 = scmp.lt.s32.totalorder %s27, 1
      %s527 = scalar_select %p526, %s27, 1
      %p528 = scmp.lt.s32.totalorder %s525, 31
      %s529 = scalar_select %p528, %s525, 31
      %s530 = smul.addr %s527, 32
      %s531 = sadd.s32 %s529, %s530
      %s532 = smul.addr %s531, 8
      %s533 = scalar_lea.vmem %s0, %s532
      %s534 = smul.u32 32, %s28
      %s535 = smul.u32 %s28, 16
      %s536 = ssub.s32 %s535, 1
      %p537 = scmp.gt.s32.totalorder %s536, 0
      %s538 = scalar_select %p537, %s536, 0
      %s539 = smul.u32 2, %s538
      %p540 = scmp.lt.s32.totalorder %s27, 1
      %s541 = scalar_select %p540, %s27, 1
      %p542 = scmp.lt.s32.totalorder %s539, 31
      %s543 = scalar_select %p542, %s539, 31
      %s544 = smul.addr %s541, 32
      %s545 = sadd.s32 %s543, %s544
      %s546 = smul.addr %s545, 8
      %s547 = scalar_lea.vmem %s1, %s546
      %s548 = smul.u32 %s28, 16
      %s549 = ssub.s32 %s548, 1
      %p550 = scmp.gt.s32.totalorder %s549, 0
      %s551 = scalar_select %p550, %s549, 0
      %s552 = smul.u32 2, %s551
      %s553 = smul.u32 %s28, 16
      %s554 = sadd.s32 %s553, 16
      %p555 = scmp.lt.s32.totalorder %s554, 15
      %s556 = scalar_select %p555, %s554, 15
      %s557 = smul.u32 2, %s556
      %p558 = scmp.lt.s32.totalorder %s27, 1
      %s559 = scalar_select %p558, %s27, 1
      %p560 = scmp.lt.s32.totalorder %s557, 31
      %s561 = scalar_select %p560, %s557, 31
      %s562 = smul.addr %s559, 32
      %s563 = sadd.s32 %s561, %s562
      %s564 = smul.addr %s563, 8
      %s565 = scalar_lea.vmem %s2, %s564
      %s566 = smul.u32 %s28, 16
      %s567 = sadd.s32 %s566, 16
      %p568 = scmp.lt.s32.totalorder %s567, 15
      %s569 = scalar_select %p568, %s567, 15
      %s570 = smul.u32 2, %s569
      %s571 = smul.u32 32, %s28
      %p572 = scmp.lt.s32.totalorder %s27, 1
      %s573 = scalar_select %p572, %s27, 1
      %p574 = scmp.lt.s32.totalorder %s571, 31
      %s575 = scalar_select %p574, %s571, 31
      %s576 = smul.addr %s573, 32
      %s577 = sadd.s32 %s575, %s576
      %s578 = smul.addr %s577, 8
      %s579 = scalar_lea.vmem %s12, %s578
      %s580 = smul.u32 32, %s28
      %v581 = vld [vmem:[%s533] sm:$0xff]
      %v582 = vld [vmem:[%s533 + $0x8] sm:$0xff]
      %v583 = vld [vmem:[%s533 + $0x10] sm:$0xff]
      %v584 = vld [vmem:[%s533 + $0x18] sm:$0xff]
      %v585 = vld [vmem:[%s533 + $0x20] sm:$0xff]
      %v586 = vld [vmem:[%s533 + $0x28] sm:$0xff]
      %v587 = vld [vmem:[%s533 + $0x30] sm:$0xff]
      %v588 = vld [vmem:[%s533 + $0x38] sm:$0xff]
      %v589 = vld [vmem:[%s533 + $0x40] sm:$0xff]
      %v590 = vld [vmem:[%s533 + $0x48] sm:$0xff]
      %v591 = vld [vmem:[%s533 + $0x50] sm:$0xff]
      %v592 = vld [vmem:[%s533 + $0x58] sm:$0xff]
      %v593 = vld [vmem:[%s533 + $0x60] sm:$0xff]
      %v594 = vld [vmem:[%s533 + $0x68] sm:$0xff]
      %v595 = vld [vmem:[%s533 + $0x70] sm:$0xff]
      %v596 = vld [vmem:[%s533 + $0x78] sm:$0xff]
      %v597 = vld [vmem:[%s533 + $0x80] sm:$0xff]
      %v598 = vld [vmem:[%s533 + $0x88] sm:$0xff]
      %v599 = vld [vmem:[%s533 + $0x90] sm:$0xff]
      %v600 = vld [vmem:[%s533 + $0x98] sm:$0xff]
      %v601 = vld [vmem:[%s533 + $0xa0] sm:$0xff]
      %v602 = vld [vmem:[%s533 + $0xa8] sm:$0xff]
      %v603 = vld [vmem:[%s533 + $0xb0] sm:$0xff]
      %v604 = vld [vmem:[%s533 + $0xb8] sm:$0xff]
      %v605 = vld [vmem:[%s533 + $0xc0] sm:$0xff]
      %v606 = vld [vmem:[%s533 + $0xc8] sm:$0xff]
      %v607 = vld [vmem:[%s533 + $0xd0] sm:$0xff]
      %v608 = vld [vmem:[%s533 + $0xd8] sm:$0xff]
      %v609 = vld [vmem:[%s533 + $0xe0] sm:$0xff]
      %v610 = vld [vmem:[%s533 + $0xe8] sm:$0xff]
      %v611 = vld [vmem:[%s533 + $0xf0] sm:$0xff]
      %v612 = vld [vmem:[%s533 + $0xf8] sm:$0xff]
      %v613 = vld [vmem:[%s547] sm:$0xff]
      %v614 = vld [vmem:[%s547 + $0x8] sm:$0xff]
      %v615 = vld [vmem:[%s565] sm:$0xff]
      %v616 = vld [vmem:[%s565 + $0x8] sm:$0xff]
      %v617 = vld [vmem:[%s3] sm:$0xff]
      %vm618 = vcmask 64512
      %v620 = vsel %vm618, %v613, 0
      %v623 = vsel %vm618, %v614, 0
      %v626 = vsel %vm618, %v581, 0
      %v629 = vsel %vm618, %v582, 0
      %v632 = vsel %vm618, %v583, 0
      %v635 = vsel %vm618, %v584, 0
      %v638 = vsel %vm618, %v585, 0
      %v641 = vsel %vm618, %v586, 0
      %v644 = vsel %vm618, %v587, 0
      %v647 = vsel %vm618, %v588, 0
      %v650 = vsel %vm618, %v589, 0
      %v653 = vsel %vm618, %v590, 0
      %v656 = vsel %vm618, %v591, 0
      %v659 = vsel %vm618, %v592, 0
      %v662 = vsel %vm618, %v593, 0
      %v665 = vsel %vm618, %v594, 0
      %v668 = vsel %vm618, %v595, 0
      %v671 = vsel %vm618, %v596, 0
      %v674 = vsel %vm618, %v597, 0
      %v677 = vsel %vm618, %v598, 0
      %v680 = vsel %vm618, %v599, 0
      %v683 = vsel %vm618, %v600, 0
      %v686 = vsel %vm618, %v601, 0
      %v689 = vsel %vm618, %v602, 0
      %v692 = vsel %vm618, %v603, 0
      %v695 = vsel %vm618, %v604, 0
      %v698 = vsel %vm618, %v605, 0
      %v701 = vsel %vm618, %v606, 0
      %v704 = vsel %vm618, %v607, 0
      %v707 = vsel %vm618, %v608, 0
      %v710 = vsel %vm618, %v609, 0
      %v713 = vsel %vm618, %v610, 0
      %v716 = vsel %vm618, %v611, 0
      %v719 = vsel %vm618, %v612, 0
      %v722 = vsel %vm618, %v615, 0
      %v725 = vsel %vm618, %v616, 0
      %727 = vmatprep.subr.mxu0 0.0
      %728 = vmatpush1.msra.mxu0 0.0
      %729 = vmatprep.subr.mxu0 0.0
      %730 = vmatpush1.msra.mxu0 0.0
      %731 = vmatprep.subr.mxu0 0.0
      %732 = vmatpush1.msra.mxu0 0.0
      %733 = vmatprep.subr.mxu0 0.0
      %734 = vmatpush1.msra.mxu0 0.0
      %735 = vmatprep.subr.mxu0 0.0
      %736 = vmatpush1.msra.mxu0 0.0
      %737 = vmatprep.subr.mxu0 0.0
      %738 = vmatpush1.msra.mxu0 0.0
      %739 = vmatprep.subr.mxu0 0.0
      %740 = vmatpush1.msra.mxu0 0.0
      %741 = vmatprep.subr.mxu0 0.0
      %742 = vmatpush1.msra.mxu0 0.0
      %743 = vmatprep.subr.mxu0 0.0
      %744 = vmatpush1.msra.mxu0 0.0
      %745 = vmatprep.subr.mxu0 0.0
      %746 = vmatpush1.msra.mxu0 0.0
      %747 = vmatprep.subr.mxu0 0.0
      %748 = vmatpush1.msra.mxu0 0.0
      %749 = vmatprep.subr.mxu0 0.0
      %750 = vmatpush1.msra.mxu0 0.0
      %751 = vmatprep.subr.mxu0 0.0
      %752 = vmatpush1.msra.mxu0 0.0
      %753 = vmatprep.subr.mxu0 0.0
      %754 = vmatpush1.msra.mxu0 0.0
      %755 = vmatprep.subr.mxu0 0.0
      %756 = vmatpush1.msra.mxu0 0.0
      %757 = vmatprep.subr.mxu0 0.0
      %758 = vmatpush1.msra.mxu0 %v617
      %759 = vmatprep.subr.mxu0 0.0
      %760 = vmatpush2.msra.mxu0 0.0
      %761 = vmatprep.subr.mxu0 0.0
      %762 = vmatpush2.msra.mxu0 0.0
      %763 = vmatprep.subr.mxu0 0.0
      %764 = vmatpush2.msra.mxu0 0.0
      %765 = vmatprep.subr.mxu0 0.0
      %766 = vmatpush2.msra.mxu0 0.0
      %767 = vmatprep.subr.mxu0 0.0
      %768 = vmatpush2.msra.mxu0 0.0
      %769 = vmatprep.subr.mxu0 0.0
      %770 = vmatpush2.msra.mxu0 0.0
      %771 = vmatprep.subr.mxu0 0.0
      %772 = vmatpush2.msra.mxu0 0.0
      %773 = vmatprep.subr.mxu0 0.0
      %774 = vmatpush2.msra.mxu0 0.0
      %775 = vmatprep.subr.mxu0 0.0
      %776 = vmatpush2.msra.mxu0 0.0
      %777 = vmatprep.subr.mxu0 0.0
      %778 = vmatpush2.msra.mxu0 0.0
      %779 = vmatprep.subr.mxu0 0.0
      %780 = vmatpush2.msra.mxu0 0.0
      %781 = vmatprep.subr.mxu0 0.0
      %782 = vmatpush2.msra.mxu0 0.0
      %783 = vmatprep.subr.mxu0 0.0
      %784 = vmatpush2.msra.mxu0 0.0
      %785 = vmatprep.subr.mxu0 0.0
      %786 = vmatpush2.msra.mxu0 0.0
      %787 = vmatprep.subr.mxu0 0.0
      %788 = vmatpush2.msra.mxu0 0.0
      %789 = vmatprep.subr.mxu0 0.0
      %790 = vmatpush2.msra.mxu0 0.0
      %791 = vmatprep.mubr.f32.mxu0 0.0
      %792 = vmatmul.mubr.f32.gmra.mxu0 %v620
      %v793 = vpop.f32.mrf.mxu0
      %v794 = vadd.f32 0.0, %v793
      %v795 = vpop.f32.mrf.mxu0
      %796 = vmatprep.mubr.f32.mxu0 0.0
      %797 = vmatmul.mubr.f32.gmra.mxu0 %v623
      %v798 = vpop.f32.mrf.mxu0
      %v799 = vadd.f32 0.0, %v798
      %v800 = vpop.f32.mrf.mxu0
      %801 = vmatprep.mubr.f32.mxu0 0.0
      %802 = vmatmul.mubr.f32.gmra.mxu0 %v626
      %v803 = vpop.f32.mrf.mxu0
      %v804 = vadd.f32 0.0, %v803
      %v805 = vpop.f32.mrf.mxu0
      %806 = vmatprep.mubr.f32.mxu0 0.0
      %807 = vmatmul.mubr.f32.gmra.mxu0 %v629
      %v808 = vpop.f32.mrf.mxu0
      %v809 = vadd.f32 0.0, %v808
      %v810 = vpop.f32.mrf.mxu0
      %811 = vmatprep.mubr.f32.mxu0 0.0
      %812 = vmatmul.mubr.f32.gmra.mxu0 %v632
      %v813 = vpop.f32.mrf.mxu0
      %v814 = vadd.f32 0.0, %v813
      %v815 = vpop.f32.mrf.mxu0
      %816 = vmatprep.mubr.f32.mxu0 0.0
      %817 = vmatmul.mubr.f32.gmra.mxu0 %v635
      %v818 = vpop.f32.mrf.mxu0
      %v819 = vadd.f32 0.0, %v818
      %v820 = vpop.f32.mrf.mxu0
      %821 = vmatprep.mubr.f32.mxu0 0.0
      %822 = vmatmul.mubr.f32.gmra.mxu0 %v638
      %v823 = vpop.f32.mrf.mxu0
      %v824 = vadd.f32 0.0, %v823
      %v825 = vpop.f32.mrf.mxu0
      %826 = vmatprep.mubr.f32.mxu0 0.0
      %827 = vmatmul.mubr.f32.gmra.mxu0 %v641
      %v828 = vpop.f32.mrf.mxu0
      %v829 = vadd.f32 0.0, %v828
      %v830 = vpop.f32.mrf.mxu0
      %831 = vmatprep.mubr.f32.mxu0 0.0
      %832 = vmatmul.mubr.f32.gmra.mxu0 %v644
      %v833 = vpop.f32.mrf.mxu0
      %v834 = vadd.f32 0.0, %v833
      %v835 = vpop.f32.mrf.mxu0
      %836 = vmatprep.mubr.f32.mxu0 0.0
      %837 = vmatmul.mubr.f32.gmra.mxu0 %v647
      %v838 = vpop.f32.mrf.mxu0
      %v839 = vadd.f32 0.0, %v838
      %v840 = vpop.f32.mrf.mxu0
      %841 = vmatprep.mubr.f32.mxu0 0.0
      %842 = vmatmul.mubr.f32.gmra.mxu0 %v650
      %v843 = vpop.f32.mrf.mxu0
      %v844 = vadd.f32 0.0, %v843
      %v845 = vpop.f32.mrf.mxu0
      %846 = vmatprep.mubr.f32.mxu0 0.0
      %847 = vmatmul.mubr.f32.gmra.mxu0 %v653
      %v848 = vpop.f32.mrf.mxu0
      %v849 = vadd.f32 0.0, %v848
      %v850 = vpop.f32.mrf.mxu0
      %851 = vmatprep.mubr.f32.mxu0 0.0
      %852 = vmatmul.mubr.f32.gmra.mxu0 %v656
      %v853 = vpop.f32.mrf.mxu0
      %v854 = vadd.f32 0.0, %v853
      %v855 = vpop.f32.mrf.mxu0
      %856 = vmatprep.mubr.f32.mxu0 0.0
      %857 = vmatmul.mubr.f32.gmra.mxu0 %v659
      %v858 = vpop.f32.mrf.mxu0
      %v859 = vadd.f32 0.0, %v858
      %v860 = vpop.f32.mrf.mxu0
      %861 = vmatprep.mubr.f32.mxu0 0.0
      %862 = vmatmul.mubr.f32.gmra.mxu0 %v662
      %v863 = vpop.f32.mrf.mxu0
      %v864 = vadd.f32 0.0, %v863
      %v865 = vpop.f32.mrf.mxu0
      %866 = vmatprep.mubr.f32.mxu0 0.0
      %867 = vmatmul.mubr.f32.gmra.mxu0 %v665
      %v868 = vpop.f32.mrf.mxu0
      %v869 = vadd.f32 0.0, %v868
      %v870 = vpop.f32.mrf.mxu0
      %871 = vmatprep.mubr.f32.mxu0 0.0
      %872 = vmatmul.mubr.f32.gmra.mxu0 %v668
      %v873 = vpop.f32.mrf.mxu0
      %v874 = vadd.f32 0.0, %v873
      %v875 = vpop.f32.mrf.mxu0
      %876 = vmatprep.mubr.f32.mxu0 0.0
      %877 = vmatmul.mubr.f32.gmra.mxu0 %v671
      %v878 = vpop.f32.mrf.mxu0
      %v879 = vadd.f32 0.0, %v878
      %v880 = vpop.f32.mrf.mxu0
      %881 = vmatprep.mubr.f32.mxu0 0.0
      %882 = vmatmul.mubr.f32.gmra.mxu0 %v674
      %v883 = vpop.f32.mrf.mxu0
      %v884 = vadd.f32 0.0, %v883
      %v885 = vpop.f32.mrf.mxu0
      %886 = vmatprep.mubr.f32.mxu0 0.0
      %887 = vmatmul.mubr.f32.gmra.mxu0 %v677
      %v888 = vpop.f32.mrf.mxu0
      %v889 = vadd.f32 0.0, %v888
      %v890 = vpop.f32.mrf.mxu0
      %891 = vmatprep.mubr.f32.mxu0 0.0
      %892 = vmatmul.mubr.f32.gmra.mxu0 %v680
      %v893 = vpop.f32.mrf.mxu0
      %v894 = vadd.f32 0.0, %v893
      %v895 = vpop.f32.mrf.mxu0
      %896 = vmatprep.mubr.f32.mxu0 0.0
      %897 = vmatmul.mubr.f32.gmra.mxu0 %v683
      %v898 = vpop.f32.mrf.mxu0
      %v899 = vadd.f32 0.0, %v898
      %v900 = vpop.f32.mrf.mxu0
      %901 = vmatprep.mubr.f32.mxu0 0.0
      %902 = vmatmul.mubr.f32.gmra.mxu0 %v686
      %v903 = vpop.f32.mrf.mxu0
      %v904 = vadd.f32 0.0, %v903
      %v905 = vpop.f32.mrf.mxu0
      %906 = vmatprep.mubr.f32.mxu0 0.0
      %907 = vmatmul.mubr.f32.gmra.mxu0 %v689
      %v908 = vpop.f32.mrf.mxu0
      %v909 = vadd.f32 0.0, %v908
      %v910 = vpop.f32.mrf.mxu0
      %911 = vmatprep.mubr.f32.mxu0 0.0
      %912 = vmatmul.mubr.f32.gmra.mxu0 %v692
      %v913 = vpop.f32.mrf.mxu0
      %v914 = vadd.f32 0.0, %v913
      %v915 = vpop.f32.mrf.mxu0
      %916 = vmatprep.mubr.f32.mxu0 0.0
      %917 = vmatmul.mubr.f32.gmra.mxu0 %v695
      %v918 = vpop.f32.mrf.mxu0
      %v919 = vadd.f32 0.0, %v918
      %v920 = vpop.f32.mrf.mxu0
      %921 = vmatprep.mubr.f32.mxu0 0.0
      %922 = vmatmul.mubr.f32.gmra.mxu0 %v698
      %v923 = vpop.f32.mrf.mxu0
      %v924 = vadd.f32 0.0, %v923
      %v925 = vpop.f32.mrf.mxu0
      %926 = vmatprep.mubr.f32.mxu0 0.0
      %927 = vmatmul.mubr.f32.gmra.mxu0 %v701
      %v928 = vpop.f32.mrf.mxu0
      %v929 = vadd.f32 0.0, %v928
      %v930 = vpop.f32.mrf.mxu0
      %931 = vmatprep.mubr.f32.mxu0 0.0
      %932 = vmatmul.mubr.f32.gmra.mxu0 %v704
      %v933 = vpop.f32.mrf.mxu0
      %v934 = vadd.f32 0.0, %v933
      %v935 = vpop.f32.mrf.mxu0
      %936 = vmatprep.mubr.f32.mxu0 0.0
      %937 = vmatmul.mubr.f32.gmra.mxu0 %v707
      %v938 = vpop.f32.mrf.mxu0
      %v939 = vadd.f32 0.0, %v938
      %v940 = vpop.f32.mrf.mxu0
      %941 = vmatprep.mubr.f32.mxu0 0.0
      %942 = vmatmul.mubr.f32.gmra.mxu0 %v710
      %v943 = vpop.f32.mrf.mxu0
      %v944 = vadd.f32 0.0, %v943
      %v945 = vpop.f32.mrf.mxu0
      %946 = vmatprep.mubr.f32.mxu0 0.0
      %947 = vmatmul.mubr.f32.gmra.mxu0 %v713
      %v948 = vpop.f32.mrf.mxu0
      %v949 = vadd.f32 0.0, %v948
      %v950 = vpop.f32.mrf.mxu0
      %951 = vmatprep.mubr.f32.mxu0 0.0
      %952 = vmatmul.mubr.f32.gmra.mxu0 %v716
      %v953 = vpop.f32.mrf.mxu0
      %v954 = vadd.f32 0.0, %v953
      %v955 = vpop.f32.mrf.mxu0
      %956 = vmatprep.mubr.f32.mxu0 0.0
      %957 = vmatmul.mubr.f32.gmra.mxu0 %v719
      %v958 = vpop.f32.mrf.mxu0
      %v959 = vadd.f32 0.0, %v958
      %v960 = vpop.f32.mrf.mxu0
      %961 = vmatprep.mubr.f32.mxu0 0.0
      %962 = vmatmul.mubr.f32.gmra.mxu0 %v722
      %v963 = vpop.f32.mrf.mxu0
      %v964 = vadd.f32 0.0, %v963
      %v965 = vpop.f32.mrf.mxu0
      %966 = vmatprep.mubr.f32.mxu0 0.0
      %967 = vmatmul.mubr.f32.gmra.mxu0 %v725
      %v968 = vpop.f32.mrf.mxu0
      %v969 = vadd.f32 0.0, %v968
      %v970 = vpop.f32.mrf.mxu0
      %971 = vdwg.mxu0
      %v972 = vld [vmem:[%s4] sm:$0x1]
      %v974 = vlaneseq
      %v975 = vshrl.u32 %v974, 7
      %v976 = vsub.s32 0, %v975
      %v977 = vrot.slane %v972, %v976
      %v979 = vmul.f32 %v794, %v977
      %v980 = vmul.f32 %v799, %v977
      %v981 = vmul.f32 %v804, %v977
      %v982 = vmul.f32 %v809, %v977
      %v983 = vmul.f32 %v814, %v977
      %v984 = vmul.f32 %v819, %v977
      %v985 = vmul.f32 %v824, %v977
      %v986 = vmul.f32 %v829, %v977
      %v987 = vmul.f32 %v834, %v977
      %v988 = vmul.f32 %v839, %v977
      %v989 = vmul.f32 %v844, %v977
      %v990 = vmul.f32 %v849, %v977
      %v991 = vmul.f32 %v854, %v977
      %v992 = vmul.f32 %v859, %v977
      %v993 = vmul.f32 %v864, %v977
      %v994 = vmul.f32 %v869, %v977
      %v995 = vmul.f32 %v874, %v977
      %v996 = vmul.f32 %v879, %v977
      %v997 = vmul.f32 %v884, %v977
      %v998 = vmul.f32 %v889, %v977
      %v999 = vmul.f32 %v894, %v977
      %v1000 = vmul.f32 %v899, %v977
      %v1001 = vmul.f32 %v904, %v977
      %v1002 = vmul.f32 %v909, %v977
      %v1003 = vmul.f32 %v914, %v977
      %v1004 = vmul.f32 %v919, %v977
      %v1005 = vmul.f32 %v924, %v977
      %v1006 = vmul.f32 %v929, %v977
      %v1007 = vmul.f32 %v934, %v977
      %v1008 = vmul.f32 %v939, %v977
      %v1009 = vmul.f32 %v944, %v977
      %v1010 = vmul.f32 %v949, %v977
      %v1011 = vmul.f32 %v954, %v977
      %v1012 = vmul.f32 %v959, %v977
      %v1013 = vmul.f32 %v964, %v977
      %v1014 = vmul.f32 %v969, %v977
      %v1015 = vld [vmem:[%s5] sm:$0x1]
      %v1017 = vlaneseq
      %v1018 = vshrl.u32 %v1017, 7
      %v1019 = vsub.s32 0, %v1018
      %v1020 = vrot.slane %v1015, %v1019
      %v1022 = vadd.f32 %v979, %v1020
      %v1023 = vadd.f32 %v980, %v1020
      %v1024 = vadd.f32 %v981, %v1020
      %v1025 = vadd.f32 %v982, %v1020
      %v1026 = vadd.f32 %v983, %v1020
      %v1027 = vadd.f32 %v984, %v1020
      %v1028 = vadd.f32 %v985, %v1020
      %v1029 = vadd.f32 %v986, %v1020
      %v1030 = vadd.f32 %v987, %v1020
      %v1031 = vadd.f32 %v988, %v1020
      %v1032 = vadd.f32 %v989, %v1020
      %v1033 = vadd.f32 %v990, %v1020
      %v1034 = vadd.f32 %v991, %v1020
      %v1035 = vadd.f32 %v992, %v1020
      %v1036 = vadd.f32 %v993, %v1020
      %v1037 = vadd.f32 %v994, %v1020
      %v1038 = vadd.f32 %v995, %v1020
      %v1039 = vadd.f32 %v996, %v1020
      %v1040 = vadd.f32 %v997, %v1020
      %v1041 = vadd.f32 %v998, %v1020
      %v1042 = vadd.f32 %v999, %v1020
      %v1043 = vadd.f32 %v1000, %v1020
      %v1044 = vadd.f32 %v1001, %v1020
      %v1045 = vadd.f32 %v1002, %v1020
      %v1046 = vadd.f32 %v1003, %v1020
      %v1047 = vadd.f32 %v1004, %v1020
      %v1048 = vadd.f32 %v1005, %v1020
      %v1049 = vadd.f32 %v1006, %v1020
      %v1050 = vadd.f32 %v1007, %v1020
      %v1051 = vadd.f32 %v1008, %v1020
      %v1052 = vadd.f32 %v1009, %v1020
      %v1053 = vadd.f32 %v1010, %v1020
      %v1054 = vadd.f32 %v1011, %v1020
      %v1055 = vadd.f32 %v1012, %v1020
      %v1056 = vadd.f32 %v1013, %v1020
      %v1057 = vadd.f32 %v1014, %v1020
      %v1058 = vmax.f32 %v1022, 0.0
      %v1059 = vmax.f32 %v1023, 0.0
      %v1060 = vmax.f32 %v1024, 0.0
      %v1061 = vmax.f32 %v1025, 0.0
      %v1062 = vmax.f32 %v1026, 0.0
      %v1063 = vmax.f32 %v1027, 0.0
      %v1064 = vmax.f32 %v1028, 0.0
      %v1065 = vmax.f32 %v1029, 0.0
      %v1066 = vmax.f32 %v1030, 0.0
      %v1067 = vmax.f32 %v1031, 0.0
      %v1068 = vmax.f32 %v1032, 0.0
      %v1069 = vmax.f32 %v1033, 0.0
      %v1070 = vmax.f32 %v1034, 0.0
      %v1071 = vmax.f32 %v1035, 0.0
      %v1072 = vmax.f32 %v1036, 0.0
      %v1073 = vmax.f32 %v1037, 0.0
      %v1074 = vmax.f32 %v1038, 0.0
      %v1075 = vmax.f32 %v1039, 0.0
      %v1076 = vmax.f32 %v1040, 0.0
      %v1077 = vmax.f32 %v1041, 0.0
      %v1078 = vmax.f32 %v1042, 0.0
      %v1079 = vmax.f32 %v1043, 0.0
      %v1080 = vmax.f32 %v1044, 0.0
      %v1081 = vmax.f32 %v1045, 0.0
      %v1082 = vmax.f32 %v1046, 0.0
      %v1083 = vmax.f32 %v1047, 0.0
      %v1084 = vmax.f32 %v1048, 0.0
      %v1085 = vmax.f32 %v1049, 0.0
      %v1086 = vmax.f32 %v1050, 0.0
      %v1087 = vmax.f32 %v1051, 0.0
      %v1088 = vmax.f32 %v1052, 0.0
      %v1089 = vmax.f32 %v1053, 0.0
      %v1090 = vmax.f32 %v1054, 0.0
      %v1091 = vmax.f32 %v1055, 0.0
      %v1092 = vmax.f32 %v1056, 0.0
      %v1093 = vmax.f32 %v1057, 0.0
      %v1094 = vmin.f32 %v1058, 6.0
      %v1095 = vmin.f32 %v1059, 6.0
      %v1096 = vmin.f32 %v1060, 6.0
      %v1097 = vmin.f32 %v1061, 6.0
      %v1098 = vmin.f32 %v1062, 6.0
      %v1099 = vmin.f32 %v1063, 6.0
      %v1100 = vmin.f32 %v1064, 6.0
      %v1101 = vmin.f32 %v1065, 6.0
      %v1102 = vmin.f32 %v1066, 6.0
      %v1103 = vmin.f32 %v1067, 6.0
      %v1104 = vmin.f32 %v1068, 6.0
      %v1105 = vmin.f32 %v1069, 6.0
      %v1106 = vmin.f32 %v1070, 6.0
      %v1107 = vmin.f32 %v1071, 6.0
      %v1108 = vmin.f32 %v1072, 6.0
      %v1109 = vmin.f32 %v1073, 6.0
      %v1110 = vmin.f32 %v1074, 6.0
      %v1111 = vmin.f32 %v1075, 6.0
      %v1112 = vmin.f32 %v1076, 6.0
      %v1113 = vmin.f32 %v1077, 6.0
      %v1114 = vmin.f32 %v1078, 6.0
      %v1115 = vmin.f32 %v1079, 6.0
      %v1116 = vmin.f32 %v1080, 6.0
      %v1117 = vmin.f32 %v1081, 6.0
      %v1118 = vmin.f32 %v1082, 6.0
      %v1119 = vmin.f32 %v1083, 6.0
      %v1120 = vmin.f32 %v1084, 6.0
      %v1121 = vmin.f32 %v1085, 6.0
      %v1122 = vmin.f32 %v1086, 6.0
      %v1123 = vmin.f32 %v1087, 6.0
      %v1124 = vmin.f32 %v1088, 6.0
      %v1125 = vmin.f32 %v1089, 6.0
      %v1126 = vmin.f32 %v1090, 6.0
      %v1127 = vmin.f32 %v1091, 6.0
      %v1128 = vmin.f32 %v1092, 6.0
      %v1129 = vmin.f32 %v1093, 6.0
      %v1130 = vlaneseq
      %v1131 = vshrl.u32 %v1130, 7
      %v1132 = vadd.s32 %v1131, 8
      %v1133 = vadd.s32 %v1131, 16
      %v1134 = vadd.s32 %v1131, 24
      %v1135 = vadd.s32 %v1131, 32
      %v1136 = vadd.s32 %v1131, 40
      %v1137 = vadd.s32 %v1131, 48
      %v1138 = vadd.s32 %v1131, 56
      %v1139 = vadd.s32 %v1131, 64
      %v1140 = vadd.s32 %v1131, 72
      %v1141 = vadd.s32 %v1131, 80
      %v1142 = vadd.s32 %v1131, 88
      %v1143 = vadd.s32 %v1131, 96
      %v1144 = vadd.s32 %v1131, 104
      %v1145 = vadd.s32 %v1131, 112
      %v1146 = vadd.s32 %v1131, 120
      %v1147 = vadd.s32 %v1131, 128
      %v1148 = vadd.s32 %v1131, 136
      %v1149 = vadd.s32 %v1131, 144
      %v1150 = vadd.s32 %v1131, 152
      %v1151 = vadd.s32 %v1131, 160
      %v1152 = vadd.s32 %v1131, 168
      %v1153 = vadd.s32 %v1131, 176
      %v1154 = vadd.s32 %v1131, 184
      %v1155 = vadd.s32 %v1131, 192
      %v1156 = vadd.s32 %v1131, 200
      %v1157 = vadd.s32 %v1131, 208
      %v1158 = vadd.s32 %v1131, 216
      %v1159 = vadd.s32 %v1131, 224
      %v1160 = vadd.s32 %v1131, 232
      %v1161 = vadd.s32 %v1131, 240
      %v1162 = vadd.s32 %v1131, 248
      %v1163 = vadd.s32 %v1131, 256
      %v1164 = vadd.s32 %v1131, 264
      %v1165 = vadd.s32 %v1131, 272
      %v1166 = vadd.s32 %v1131, 280
      %vm1167 = vcmp.ge.s32.totalorder %v1131, 16
      %vm1168 = vcmp.ge.s32.totalorder %v1132, 16
      %vm1169 = vcmp.ge.s32.totalorder %v1133, 16
      %vm1170 = vcmp.ge.s32.totalorder %v1134, 16
      %vm1171 = vcmp.ge.s32.totalorder %v1135, 16
      %vm1172 = vcmp.ge.s32.totalorder %v1136, 16
      %vm1173 = vcmp.ge.s32.totalorder %v1137, 16
      %vm1174 = vcmp.ge.s32.totalorder %v1138, 16
      %vm1175 = vcmp.ge.s32.totalorder %v1139, 16
      %vm1176 = vcmp.ge.s32.totalorder %v1140, 16
      %vm1177 = vcmp.ge.s32.totalorder %v1141, 16
      %vm1178 = vcmp.ge.s32.totalorder %v1142, 16
      %vm1179 = vcmp.ge.s32.totalorder %v1143, 16
      %vm1180 = vcmp.ge.s32.totalorder %v1144, 16
      %vm1181 = vcmp.ge.s32.totalorder %v1145, 16
      %vm1182 = vcmp.ge.s32.totalorder %v1146, 16
      %vm1183 = vcmp.ge.s32.totalorder %v1147, 16
      %vm1184 = vcmp.ge.s32.totalorder %v1148, 16
      %vm1185 = vcmp.ge.s32.totalorder %v1149, 16
      %vm1186 = vcmp.ge.s32.totalorder %v1150, 16
      %vm1187 = vcmp.ge.s32.totalorder %v1151, 16
      %vm1188 = vcmp.ge.s32.totalorder %v1152, 16
      %vm1189 = vcmp.ge.s32.totalorder %v1153, 16
      %vm1190 = vcmp.ge.s32.totalorder %v1154, 16
      %vm1191 = vcmp.ge.s32.totalorder %v1155, 16
      %vm1192 = vcmp.ge.s32.totalorder %v1156, 16
      %vm1193 = vcmp.ge.s32.totalorder %v1157, 16
      %vm1194 = vcmp.ge.s32.totalorder %v1158, 16
      %vm1195 = vcmp.ge.s32.totalorder %v1159, 16
      %vm1196 = vcmp.ge.s32.totalorder %v1160, 16
      %vm1197 = vcmp.ge.s32.totalorder %v1161, 16
      %vm1198 = vcmp.ge.s32.totalorder %v1162, 16
      %vm1199 = vcmp.ge.s32.totalorder %v1163, 16
      %vm1200 = vcmp.ge.s32.totalorder %v1164, 16
      %vm1201 = vcmp.ge.s32.totalorder %v1165, 16
      %vm1202 = vcmp.ge.s32.totalorder %v1166, 16
      %p1203 = scmp.gt.s32.totalorder %s28, 0
      %s1204 = scalar_select %p1203, 1, 0
      %v1205 = vstv %s1204
      %vm1206 = vcmp.eq.s32.totalorder %v1205, 1
      %vm1207 = vmor %vm1167, %vm1206
      %vm1208 = vmor %vm1168, %vm1206
      %vm1209 = vmor %vm1169, %vm1206
      %vm1210 = vmor %vm1170, %vm1206
      %vm1211 = vmor %vm1171, %vm1206
      %vm1212 = vmor %vm1172, %vm1206
      %vm1213 = vmor %vm1173, %vm1206
      %vm1214 = vmor %vm1174, %vm1206
      %vm1215 = vmor %vm1175, %vm1206
      %vm1216 = vmor %vm1176, %vm1206
      %vm1217 = vmor %vm1177, %vm1206
      %vm1218 = vmor %vm1178, %vm1206
      %vm1219 = vmor %vm1179, %vm1206
      %vm1220 = vmor %vm1180, %vm1206
      %vm1221 = vmor %vm1181, %vm1206
      %vm1222 = vmor %vm1182, %vm1206
      %vm1223 = vmor %vm1183, %vm1206
      %vm1224 = vmor %vm1184, %vm1206
      %vm1225 = vmor %vm1185, %vm1206
      %vm1226 = vmor %vm1186, %vm1206
      %vm1227 = vmor %vm1187, %vm1206
      %vm1228 = vmor %vm1188, %vm1206
      %vm1229 = vmor %vm1189, %vm1206
      %vm1230 = vmor %vm1190, %vm1206
      %vm1231 = vmor %vm1191, %vm1206
      %vm1232 = vmor %vm1192, %vm1206
      %vm1233 = vmor %vm1193, %vm1206
      %vm1234 = vmor %vm1194, %vm1206
      %vm1235 = vmor %vm1195, %vm1206
      %vm1236 = vmor %vm1196, %vm1206
      %vm1237 = vmor %vm1197, %vm1206
      %vm1238 = vmor %vm1198, %vm1206
      %vm1239 = vmor %vm1199, %vm1206
      %vm1240 = vmor %vm1200, %vm1206
      %vm1241 = vmor %vm1201, %vm1206
      %vm1242 = vmor %vm1202, %vm1206
      %vm1243 = vcmp.lt.s32.totalorder %v1131, 272
      %vm1244 = vcmp.lt.s32.totalorder %v1132, 272
      %vm1245 = vcmp.lt.s32.totalorder %v1133, 272
      %vm1246 = vcmp.lt.s32.totalorder %v1134, 272
      %vm1247 = vcmp.lt.s32.totalorder %v1135, 272
      %vm1248 = vcmp.lt.s32.totalorder %v1136, 272
      %vm1249 = vcmp.lt.s32.totalorder %v1137, 272
      %vm1250 = vcmp.lt.s32.totalorder %v1138, 272
      %vm1251 = vcmp.lt.s32.totalorder %v1139, 272
      %vm1252 = vcmp.lt.s32.totalorder %v1140, 272
      %vm1253 = vcmp.lt.s32.totalorder %v1141, 272
      %vm1254 = vcmp.lt.s32.totalorder %v1142, 272
      %vm1255 = vcmp.lt.s32.totalorder %v1143, 272
      %vm1256 = vcmp.lt.s32.totalorder %v1144, 272
      %vm1257 = vcmp.lt.s32.totalorder %v1145, 272
      %vm1258 = vcmp.lt.s32.totalorder %v1146, 272
      %vm1259 = vcmp.lt.s32.totalorder %v1147, 272
      %vm1260 = vcmp.lt.s32.totalorder %v1148, 272
      %vm1261 = vcmp.lt.s32.totalorder %v1149, 272
      %vm1262 = vcmp.lt.s32.totalorder %v1150, 272
      %vm1263 = vcmp.lt.s32.totalorder %v1151, 272
      %vm1264 = vcmp.lt.s32.totalorder %v1152, 272
      %vm1265 = vcmp.lt.s32.totalorder %v1153, 272
      %vm1266 = vcmp.lt.s32.totalorder %v1154, 272
      %vm1267 = vcmp.lt.s32.totalorder %v1155, 272
      %vm1268 = vcmp.lt.s32.totalorder %v1156, 272
      %vm1269 = vcmp.lt.s32.totalorder %v1157, 272
      %vm1270 = vcmp.lt.s32.totalorder %v1158, 272
      %vm1271 = vcmp.lt.s32.totalorder %v1159, 272
      %vm1272 = vcmp.lt.s32.totalorder %v1160, 272
      %vm1273 = vcmp.lt.s32.totalorder %v1161, 272
      %vm1274 = vcmp.lt.s32.totalorder %v1162, 272
      %vm1275 = vcmp.lt.s32.totalorder %v1163, 272
      %vm1276 = vcmp.lt.s32.totalorder %v1164, 272
      %vm1277 = vcmp.lt.s32.totalorder %v1165, 272
      %vm1278 = vcmp.lt.s32.totalorder %v1166, 272
      %p1279 = scmp.lt.s32.totalorder %s28, 0
      %s1280 = scalar_select %p1279, 1, 0
      %v1281 = vstv %s1280
      %vm1282 = vcmp.eq.s32.totalorder %v1281, 1
      %vm1283 = vmor %vm1243, %vm1282
      %vm1284 = vmor %vm1244, %vm1282
      %vm1285 = vmor %vm1245, %vm1282
      %vm1286 = vmor %vm1246, %vm1282
      %vm1287 = vmor %vm1247, %vm1282
      %vm1288 = vmor %vm1248, %vm1282
      %vm1289 = vmor %vm1249, %vm1282
      %vm1290 = vmor %vm1250, %vm1282
      %vm1291 = vmor %vm1251, %vm1282
      %vm1292 = vmor %vm1252, %vm1282
      %vm1293 = vmor %vm1253, %vm1282
      %vm1294 = vmor %vm1254, %vm1282
      %vm1295 = vmor %vm1255, %vm1282
      %vm1296 = vmor %vm1256, %vm1282
      %vm1297 = vmor %vm1257, %vm1282
      %vm1298 = vmor %vm1258, %vm1282
      %vm1299 = vmor %vm1259, %vm1282
      %vm1300 = vmor %vm1260, %vm1282
      %vm1301 = vmor %vm1261, %vm1282
      %vm1302 = vmor %vm1262, %vm1282
      %vm1303 = vmor %vm1263, %vm1282
      %vm1304 = vmor %vm1264, %vm1282
      %vm1305 = vmor %vm1265, %vm1282
      %vm1306 = vmor %vm1266, %vm1282
      %vm1307 = vmor %vm1267, %vm1282
      %vm1308 = vmor %vm1268, %vm1282
      %vm1309 = vmor %vm1269, %vm1282
      %vm1310 = vmor %vm1270, %vm1282
      %vm1311 = vmor %vm1271, %vm1282
      %vm1312 = vmor %vm1272, %vm1282
      %vm1313 = vmor %vm1273, %vm1282
      %vm1314 = vmor %vm1274, %vm1282
      %vm1315 = vmor %vm1275, %vm1282
      %vm1316 = vmor %vm1276, %vm1282
      %vm1317 = vmor %vm1277, %vm1282
      %vm1318 = vmor %vm1278, %vm1282
      %vm1319 = vmand %vm1207, %vm1283
      %vm1320 = vmand %vm1208, %vm1284
      %vm1321 = vmand %vm1209, %vm1285
      %vm1322 = vmand %vm1210, %vm1286
      %vm1323 = vmand %vm1211, %vm1287
      %vm1324 = vmand %vm1212, %vm1288
      %vm1325 = vmand %vm1213, %vm1289
      %vm1326 = vmand %vm1214, %vm1290
      %vm1327 = vmand %vm1215, %vm1291
      %vm1328 = vmand %vm1216, %vm1292
      %vm1329 = vmand %vm1217, %vm1293
      %vm1330 = vmand %vm1218, %vm1294
      %vm1331 = vmand %vm1219, %vm1295
      %vm1332 = vmand %vm1220, %vm1296
      %vm1333 = vmand %vm1221, %vm1297
      %vm1334 = vmand %vm1222, %vm1298
      %vm1335 = vmand %vm1223, %vm1299
      %vm1336 = vmand %vm1224, %vm1300
      %vm1337 = vmand %vm1225, %vm1301
      %vm1338 = vmand %vm1226, %vm1302
      %vm1339 = vmand %vm1227, %vm1303
      %vm1340 = vmand %vm1228, %vm1304
      %vm1341 = vmand %vm1229, %vm1305
      %vm1342 = vmand %vm1230, %vm1306
      %vm1343 = vmand %vm1231, %vm1307
      %vm1344 = vmand %vm1232, %vm1308
      %vm1345 = vmand %vm1233, %vm1309
      %vm1346 = vmand %vm1234, %vm1310
      %vm1347 = vmand %vm1235, %vm1311
      %vm1348 = vmand %vm1236, %vm1312
      %vm1349 = vmand %vm1237, %vm1313
      %vm1350 = vmand %vm1238, %vm1314
      %vm1351 = vmand %vm1239, %vm1315
      %vm1352 = vmand %vm1240, %vm1316
      %vm1353 = vmand %vm1241, %vm1317
      %vm1354 = vmand %vm1242, %vm1318
      %v1355 = vsel %vm1319, 1, 0
      %v1356 = vsel %vm1320, 1, 0
      %v1357 = vsel %vm1321, 1, 0
      %v1358 = vsel %vm1322, 1, 0
      %v1359 = vsel %vm1323, 1, 0
      %v1360 = vsel %vm1324, 1, 0
      %v1361 = vsel %vm1325, 1, 0
      %v1362 = vsel %vm1326, 1, 0
      %v1363 = vsel %vm1327, 1, 0
      %v1364 = vsel %vm1328, 1, 0
      %v1365 = vsel %vm1329, 1, 0
      %v1366 = vsel %vm1330, 1, 0
      %v1367 = vsel %vm1331, 1, 0
      %v1368 = vsel %vm1332, 1, 0
      %v1369 = vsel %vm1333, 1, 0
      %v1370 = vsel %vm1334, 1, 0
      %v1371 = vsel %vm1335, 1, 0
      %v1372 = vsel %vm1336, 1, 0
      %v1373 = vsel %vm1337, 1, 0
      %v1374 = vsel %vm1338, 1, 0
      %v1375 = vsel %vm1339, 1, 0
      %v1376 = vsel %vm1340, 1, 0
      %v1377 = vsel %vm1341, 1, 0
      %v1378 = vsel %vm1342, 1, 0
      %v1379 = vsel %vm1343, 1, 0
      %v1380 = vsel %vm1344, 1, 0
      %v1381 = vsel %vm1345, 1, 0
      %v1382 = vsel %vm1346, 1, 0
      %v1383 = vsel %vm1347, 1, 0
      %v1384 = vsel %vm1348, 1, 0
      %v1385 = vsel %vm1349, 1, 0
      %v1386 = vsel %vm1350, 1, 0
      %v1387 = vsel %vm1351, 1, 0
      %v1388 = vsel %vm1352, 1, 0
      %v1389 = vsel %vm1353, 1, 0
      %v1390 = vsel %vm1354, 1, 0
      %vm1391 = vcmp.eq.s32.totalorder %v1355, 1
      %vm1392 = vcmp.eq.s32.totalorder %v1356, 1
      %vm1393 = vcmp.eq.s32.totalorder %v1357, 1
      %vm1394 = vcmp.eq.s32.totalorder %v1358, 1
      %vm1395 = vcmp.eq.s32.totalorder %v1359, 1
      %vm1396 = vcmp.eq.s32.totalorder %v1360, 1
      %vm1397 = vcmp.eq.s32.totalorder %v1361, 1
      %vm1398 = vcmp.eq.s32.totalorder %v1362, 1
      %vm1399 = vcmp.eq.s32.totalorder %v1363, 1
      %vm1400 = vcmp.eq.s32.totalorder %v1364, 1
      %vm1401 = vcmp.eq.s32.totalorder %v1365, 1
      %vm1402 = vcmp.eq.s32.totalorder %v1366, 1
      %vm1403 = vcmp.eq.s32.totalorder %v1367, 1
      %vm1404 = vcmp.eq.s32.totalorder %v1368, 1
      %vm1405 = vcmp.eq.s32.totalorder %v1369, 1
      %vm1406 = vcmp.eq.s32.totalorder %v1370, 1
      %vm1407 = vcmp.eq.s32.totalorder %v1371, 1
      %vm1408 = vcmp.eq.s32.totalorder %v1372, 1
      %vm1409 = vcmp.eq.s32.totalorder %v1373, 1
      %vm1410 = vcmp.eq.s32.totalorder %v1374, 1
      %vm1411 = vcmp.eq.s32.totalorder %v1375, 1
      %vm1412 = vcmp.eq.s32.totalorder %v1376, 1
      %vm1413 = vcmp.eq.s32.totalorder %v1377, 1
      %vm1414 = vcmp.eq.s32.totalorder %v1378, 1
      %vm1415 = vcmp.eq.s32.totalorder %v1379, 1
      %vm1416 = vcmp.eq.s32.totalorder %v1380, 1
      %vm1417 = vcmp.eq.s32.totalorder %v1381, 1
      %vm1418 = vcmp.eq.s32.totalorder %v1382, 1
      %vm1419 = vcmp.eq.s32.totalorder %v1383, 1
      %vm1420 = vcmp.eq.s32.totalorder %v1384, 1
      %vm1421 = vcmp.eq.s32.totalorder %v1385, 1
      %vm1422 = vcmp.eq.s32.totalorder %v1386, 1
      %vm1423 = vcmp.eq.s32.totalorder %v1387, 1
      %vm1424 = vcmp.eq.s32.totalorder %v1388, 1
      %vm1425 = vcmp.eq.s32.totalorder %v1389, 1
      %vm1426 = vcmp.eq.s32.totalorder %v1390, 1
      %v1427 = vsel %vm1391, %v1094, 0.0
      %v1428 = vsel %vm1392, %v1095, 0.0
      %v1429 = vsel %vm1393, %v1096, 0.0
      %v1430 = vsel %vm1394, %v1097, 0.0
      %v1431 = vsel %vm1395, %v1098, 0.0
      %v1432 = vsel %vm1396, %v1099, 0.0
      %v1433 = vsel %vm1397, %v1100, 0.0
      %v1434 = vsel %vm1398, %v1101, 0.0
      %v1435 = vsel %vm1399, %v1102, 0.0
      %v1436 = vsel %vm1400, %v1103, 0.0
      %v1437 = vsel %vm1401, %v1104, 0.0
      %v1438 = vsel %vm1402, %v1105, 0.0
      %v1439 = vsel %vm1403, %v1106, 0.0
      %v1440 = vsel %vm1404, %v1107, 0.0
      %v1441 = vsel %vm1405, %v1108, 0.0
      %v1442 = vsel %vm1406, %v1109, 0.0
      %v1443 = vsel %vm1407, %v1110, 0.0
      %v1444 = vsel %vm1408, %v1111, 0.0
      %v1445 = vsel %vm1409, %v1112, 0.0
      %v1446 = vsel %vm1410, %v1113, 0.0
      %v1447 = vsel %vm1411, %v1114, 0.0
      %v1448 = vsel %vm1412, %v1115, 0.0
      %v1449 = vsel %vm1413, %v1116, 0.0
      %v1450 = vsel %vm1414, %v1117, 0.0
      %v1451 = vsel %vm1415, %v1118, 0.0
      %v1452 = vsel %vm1416, %v1119, 0.0
      %v1453 = vsel %vm1417, %v1120, 0.0
      %v1454 = vsel %vm1418, %v1121, 0.0
      %v1455 = vsel %vm1419, %v1122, 0.0
      %v1456 = vsel %vm1420, %v1123, 0.0
      %v1457 = vsel %vm1421, %v1124, 0.0
      %v1458 = vsel %vm1422, %v1125, 0.0
      %v1459 = vsel %vm1423, %v1126, 0.0
      %v1460 = vsel %vm1424, %v1127, 0.0
      %v1461 = vsel %vm1425, %v1128, 0.0
      %v1462 = vsel %vm1426, %v1129, 0.0
      %v1463 = vld [vmem:[%s6] sm:$0xff]
      %v1464 = vld [vmem:[%s6 + $0x8] sm:$0x1]
      %v1465 = vrot.slane %v1427, 7
      %v1466 = vrot.slane %v1428, 7
      %v1467 = vrot.slane %v1429, 7
      %v1468 = vrot.slane %v1430, 7
      %v1469 = vrot.slane %v1431, 7
      %v1470 = vrot.slane %v1432, 7
      %v1471 = vrot.slane %v1433, 7
      %v1472 = vrot.slane %v1434, 7
      %v1473 = vrot.slane %v1435, 7
      %v1474 = vrot.slane %v1436, 7
      %v1475 = vrot.slane %v1437, 7
      %v1476 = vrot.slane %v1438, 7
      %v1477 = vrot.slane %v1439, 7
      %v1478 = vrot.slane %v1440, 7
      %v1479 = vrot.slane %v1441, 7
      %v1480 = vrot.slane %v1442, 7
      %v1481 = vrot.slane %v1443, 7
      %v1482 = vrot.slane %v1444, 7
      %v1483 = vrot.slane %v1445, 7
      %v1484 = vrot.slane %v1446, 7
      %v1485 = vrot.slane %v1447, 7
      %v1486 = vrot.slane %v1448, 7
      %v1487 = vrot.slane %v1449, 7
      %v1488 = vrot.slane %v1450, 7
      %v1489 = vrot.slane %v1451, 7
      %v1490 = vrot.slane %v1452, 7
      %v1491 = vrot.slane %v1453, 7
      %v1492 = vrot.slane %v1454, 7
      %v1493 = vrot.slane %v1455, 7
      %v1494 = vrot.slane %v1456, 7
      %v1495 = vrot.slane %v1457, 7
      %v1496 = vrot.slane %v1458, 7
      %v1497 = vrot.slane %v1459, 7
      %v1498 = vrot.slane %v1460, 7
      %v1499 = vrot.slane %v1461, 7
      %v1500 = vrot.slane %v1462, 7
      %vm1501 = vcmp.lt.s32.totalorder %v1131, 1
      %v1502 = vsel %vm1501, %v1499, %v1500
      %v1503 = vsel %vm1501, %v1498, %v1499
      %v1504 = vsel %vm1501, %v1497, %v1498
      %v1505 = vsel %vm1501, %v1496, %v1497
      %v1506 = vsel %vm1501, %v1495, %v1496
      %v1507 = vsel %vm1501, %v1494, %v1495
      %v1508 = vsel %vm1501, %v1493, %v1494
      %v1509 = vsel %vm1501, %v1492, %v1493
      %v1510 = vsel %vm1501, %v1491, %v1492
      %v1511 = vsel %vm1501, %v1490, %v1491
      %v1512 = vsel %vm1501, %v1489, %v1490
      %v1513 = vsel %vm1501, %v1488, %v1489
      %v1514 = vsel %vm1501, %v1487, %v1488
      %v1515 = vsel %vm1501, %v1486, %v1487
      %v1516 = vsel %vm1501, %v1485, %v1486
      %v1517 = vsel %vm1501, %v1484, %v1485
      %v1518 = vsel %vm1501, %v1483, %v1484
      %v1519 = vsel %vm1501, %v1482, %v1483
      %v1520 = vsel %vm1501, %v1481, %v1482
      %v1521 = vsel %vm1501, %v1480, %v1481
      %v1522 = vsel %vm1501, %v1479, %v1480
      %v1523 = vsel %vm1501, %v1478, %v1479
      %v1524 = vsel %vm1501, %v1477, %v1478
      %v1525 = vsel %vm1501, %v1476, %v1477
      %v1526 = vsel %vm1501, %v1475, %v1476
      %v1527 = vsel %vm1501, %v1474, %v1475
      %v1528 = vsel %vm1501, %v1473, %v1474
      %v1529 = vsel %vm1501, %v1472, %v1473
      %v1530 = vsel %vm1501, %v1471, %v1472
      %v1531 = vsel %vm1501, %v1470, %v1471
      %v1532 = vsel %vm1501, %v1469, %v1470
      %v1533 = vsel %vm1501, %v1468, %v1469
      %v1534 = vsel %vm1501, %v1467, %v1468
      %v1535 = vsel %vm1501, %v1466, %v1467
      %v1536 = vsel %vm1501, %v1465, %v1466
      %v1537 = vsel %vm1501, %v1500, %v1465
      %v1538 = vrot.slane %v1427, 1
      %v1539 = vrot.slane %v1428, 1
      %v1540 = vrot.slane %v1429, 1
      %v1541 = vrot.slane %v1430, 1
      %v1542 = vrot.slane %v1431, 1
      %v1543 = vrot.slane %v1432, 1
      %v1544 = vrot.slane %v1433, 1
      %v1545 = vrot.slane %v1434, 1
      %v1546 = vrot.slane %v1435, 1
      %v1547 = vrot.slane %v1436, 1
      %v1548 = vrot.slane %v1437, 1
      %v1549 = vrot.slane %v1438, 1
      %v1550 = vrot.slane %v1439, 1
      %v1551 = vrot.slane %v1440, 1
      %v1552 = vrot.slane %v1441, 1
      %v1553 = vrot.slane %v1442, 1
      %v1554 = vrot.slane %v1443, 1
      %v1555 = vrot.slane %v1444, 1
      %v1556 = vrot.slane %v1445, 1
      %v1557 = vrot.slane %v1446, 1
      %v1558 = vrot.slane %v1447, 1
      %v1559 = vrot.slane %v1448, 1
      %v1560 = vrot.slane %v1449, 1
      %v1561 = vrot.slane %v1450, 1
      %v1562 = vrot.slane %v1451, 1
      %v1563 = vrot.slane %v1452, 1
      %v1564 = vrot.slane %v1453, 1
      %v1565 = vrot.slane %v1454, 1
      %v1566 = vrot.slane %v1455, 1
      %v1567 = vrot.slane %v1456, 1
      %v1568 = vrot.slane %v1457, 1
      %v1569 = vrot.slane %v1458, 1
      %v1570 = vrot.slane %v1459, 1
      %v1571 = vrot.slane %v1460, 1
      %v1572 = vrot.slane %v1461, 1
      %v1573 = vrot.slane %v1462, 1
      %vm1574 = vcmp.lt.s32.totalorder %v1131, 7
      %v1575 = vsel %vm1574, %v1572, %v1573
      %v1576 = vsel %vm1574, %v1571, %v1572
      %v1577 = vsel %vm1574, %v1570, %v1571
      %v1578 = vsel %vm1574, %v1569, %v1570
      %v1579 = vsel %vm1574, %v1568, %v1569
      %v1580 = vsel %vm1574, %v1567, %v1568
      %v1581 = vsel %vm1574, %v1566, %v1567
      %v1582 = vsel %vm1574, %v1565, %v1566
      %v1583 = vsel %vm1574, %v1564, %v1565
      %v1584 = vsel %vm1574, %v1563, %v1564
      %v1585 = vsel %vm1574, %v1562, %v1563
      %v1586 = vsel %vm1574, %v1561, %v1562
      %v1587 = vsel %vm1574, %v1560, %v1561
      %v1588 = vsel %vm1574, %v1559, %v1560
      %v1589 = vsel %vm1574, %v1558, %v1559
      %v1590 = vsel %vm1574, %v1557, %v1558
      %v1591 = vsel %vm1574, %v1556, %v1557
      %v1592 = vsel %vm1574, %v1555, %v1556
      %v1593 = vsel %vm1574, %v1554, %v1555
      %v1594 = vsel %vm1574, %v1553, %v1554
      %v1595 = vsel %vm1574, %v1552, %v1553
      %v1596 = vsel %vm1574, %v1551, %v1552
      %v1597 = vsel %vm1574, %v1550, %v1551
      %v1598 = vsel %vm1574, %v1549, %v1550
      %v1599 = vsel %vm1574, %v1548, %v1549
      %v1600 = vsel %vm1574, %v1547, %v1548
      %v1601 = vsel %vm1574, %v1546, %v1547
      %v1602 = vsel %vm1574, %v1545, %v1546
      %v1603 = vsel %vm1574, %v1544, %v1545
      %v1604 = vsel %vm1574, %v1543, %v1544
      %v1605 = vsel %vm1574, %v1542, %v1543
      %v1606 = vsel %vm1574, %v1541, %v1542
      %v1607 = vsel %vm1574, %v1540, %v1541
      %v1608 = vsel %vm1574, %v1539, %v1540
      %v1609 = vsel %vm1574, %v1538, %v1539
      %v1610 = vsel %vm1574, %v1573, %v1538
      %v1611 = vlaneseq
      %v1612 = vshrl.u32 %v1611, 7
      %v1613 = vsub.s32 0, %v1612
      %v1614 = vrot.slane %v1463, %v1613
      %v1615 = vmul.f32 %v1537, %v1614
      %v1616 = vmul.f32 %v1536, %v1614
      %v1617 = vmul.f32 %v1535, %v1614
      %v1618 = vmul.f32 %v1534, %v1614
      %v1619 = vmul.f32 %v1533, %v1614
      %v1620 = vmul.f32 %v1532, %v1614
      %v1621 = vmul.f32 %v1531, %v1614
      %v1622 = vmul.f32 %v1530, %v1614
      %v1623 = vmul.f32 %v1529, %v1614
      %v1624 = vmul.f32 %v1528, %v1614
      %v1625 = vmul.f32 %v1527, %v1614
      %v1626 = vmul.f32 %v1526, %v1614
      %v1627 = vmul.f32 %v1525, %v1614
      %v1628 = vmul.f32 %v1524, %v1614
      %v1629 = vmul.f32 %v1523, %v1614
      %v1630 = vmul.f32 %v1522, %v1614
      %v1631 = vmul.f32 %v1521, %v1614
      %v1632 = vmul.f32 %v1520, %v1614
      %v1633 = vmul.f32 %v1519, %v1614
      %v1634 = vmul.f32 %v1518, %v1614
      %v1635 = vmul.f32 %v1517, %v1614
      %v1636 = vmul.f32 %v1516, %v1614
      %v1637 = vmul.f32 %v1515, %v1614
      %v1638 = vmul.f32 %v1514, %v1614
      %v1639 = vmul.f32 %v1513, %v1614
      %v1640 = vmul.f32 %v1512, %v1614
      %v1641 = vmul.f32 %v1511, %v1614
      %v1642 = vmul.f32 %v1510, %v1614
      %v1643 = vmul.f32 %v1509, %v1614
      %v1644 = vmul.f32 %v1508, %v1614
      %v1645 = vmul.f32 %v1507, %v1614
      %v1646 = vmul.f32 %v1506, %v1614
      %v1647 = vadd.f32 %v1615, 0.0
      %v1648 = vadd.f32 %v1616, 0.0
      %v1649 = vadd.f32 %v1617, 0.0
      %v1650 = vadd.f32 %v1618, 0.0
      %v1651 = vadd.f32 %v1619, 0.0
      %v1652 = vadd.f32 %v1620, 0.0
      %v1653 = vadd.f32 %v1621, 0.0
      %v1654 = vadd.f32 %v1622, 0.0
      %v1655 = vadd.f32 %v1623, 0.0
      %v1656 = vadd.f32 %v1624, 0.0
      %v1657 = vadd.f32 %v1625, 0.0
      %v1658 = vadd.f32 %v1626, 0.0
      %v1659 = vadd.f32 %v1627, 0.0
      %v1660 = vadd.f32 %v1628, 0.0
      %v1661 = vadd.f32 %v1629, 0.0
      %v1662 = vadd.f32 %v1630, 0.0
      %v1663 = vadd.f32 %v1631, 0.0
      %v1664 = vadd.f32 %v1632, 0.0
      %v1665 = vadd.f32 %v1633, 0.0
      %v1666 = vadd.f32 %v1634, 0.0
      %v1667 = vadd.f32 %v1635, 0.0
      %v1668 = vadd.f32 %v1636, 0.0
      %v1669 = vadd.f32 %v1637, 0.0
      %v1670 = vadd.f32 %v1638, 0.0
      %v1671 = vadd.f32 %v1639, 0.0
      %v1672 = vadd.f32 %v1640, 0.0
      %v1673 = vadd.f32 %v1641, 0.0
      %v1674 = vadd.f32 %v1642, 0.0
      %v1675 = vadd.f32 %v1643, 0.0
      %v1676 = vadd.f32 %v1644, 0.0
      %v1677 = vadd.f32 %v1645, 0.0
      %v1678 = vadd.f32 %v1646, 0.0
      %v1679 = vlaneseq
      %v1680 = vshrl.u32 %v1679, 7
      %v1681 = vsub.s32 1, %v1680
      %v1682 = vrot.slane %v1463, %v1681
      %v1683 = vmul.f32 %v1427, %v1682
      %v1684 = vmul.f32 %v1428, %v1682
      %v1685 = vmul.f32 %v1429, %v1682
      %v1686 = vmul.f32 %v1430, %v1682
      %v1687 = vmul.f32 %v1431, %v1682
      %v1688 = vmul.f32 %v1432, %v1682
      %v1689 = vmul.f32 %v1433, %v1682
      %v1690 = vmul.f32 %v1434, %v1682
      %v1691 = vmul.f32 %v1435, %v1682
      %v1692 = vmul.f32 %v1436, %v1682
      %v1693 = vmul.f32 %v1437, %v1682
      %v1694 = vmul.f32 %v1438, %v1682
      %v1695 = vmul.f32 %v1439, %v1682
      %v1696 = vmul.f32 %v1440, %v1682
      %v1697 = vmul.f32 %v1441, %v1682
      %v1698 = vmul.f32 %v1442, %v1682
      %v1699 = vmul.f32 %v1443, %v1682
      %v1700 = vmul.f32 %v1444, %v1682
      %v1701 = vmul.f32 %v1445, %v1682
      %v1702 = vmul.f32 %v1446, %v1682
      %v1703 = vmul.f32 %v1447, %v1682
      %v1704 = vmul.f32 %v1448, %v1682
      %v1705 = vmul.f32 %v1449, %v1682
      %v1706 = vmul.f32 %v1450, %v1682
      %v1707 = vmul.f32 %v1451, %v1682
      %v1708 = vmul.f32 %v1452, %v1682
      %v1709 = vmul.f32 %v1453, %v1682
      %v1710 = vmul.f32 %v1454, %v1682
      %v1711 = vmul.f32 %v1455, %v1682
      %v1712 = vmul.f32 %v1456, %v1682
      %v1713 = vmul.f32 %v1457, %v1682
      %v1714 = vmul.f32 %v1458, %v1682
      %v1715 = vadd.f32 %v1683, 0.0
      %v1716 = vadd.f32 %v1684, 0.0
      %v1717 = vadd.f32 %v1685, 0.0
      %v1718 = vadd.f32 %v1686, 0.0
      %v1719 = vadd.f32 %v1687, 0.0
      %v1720 = vadd.f32 %v1688, 0.0
      %v1721 = vadd.f32 %v1689, 0.0
      %v1722 = vadd.f32 %v1690, 0.0
      %v1723 = vadd.f32 %v1691, 0.0
      %v1724 = vadd.f32 %v1692, 0.0
      %v1725 = vadd.f32 %v1693, 0.0
      %v1726 = vadd.f32 %v1694, 0.0
      %v1727 = vadd.f32 %v1695, 0.0
      %v1728 = vadd.f32 %v1696, 0.0
      %v1729 = vadd.f32 %v1697, 0.0
      %v1730 = vadd.f32 %v1698, 0.0
      %v1731 = vadd.f32 %v1699, 0.0
      %v1732 = vadd.f32 %v1700, 0.0
      %v1733 = vadd.f32 %v1701, 0.0
      %v1734 = vadd.f32 %v1702, 0.0
      %v1735 = vadd.f32 %v1703, 0.0
      %v1736 = vadd.f32 %v1704, 0.0
      %v1737 = vadd.f32 %v1705, 0.0
      %v1738 = vadd.f32 %v1706, 0.0
      %v1739 = vadd.f32 %v1707, 0.0
      %v1740 = vadd.f32 %v1708, 0.0
      %v1741 = vadd.f32 %v1709, 0.0
      %v1742 = vadd.f32 %v1710, 0.0
      %v1743 = vadd.f32 %v1711, 0.0
      %v1744 = vadd.f32 %v1712, 0.0
      %v1745 = vadd.f32 %v1713, 0.0
      %v1746 = vadd.f32 %v1714, 0.0
      %v1747 = vlaneseq
      %v1748 = vshrl.u32 %v1747, 7
      %v1749 = vsub.s32 2, %v1748
      %v1750 = vrot.slane %v1463, %v1749
      %v1751 = vmul.f32 %v1609, %v1750
      %v1752 = vmul.f32 %v1608, %v1750
      %v1753 = vmul.f32 %v1607, %v1750
      %v1754 = vmul.f32 %v1606, %v1750
      %v1755 = vmul.f32 %v1605, %v1750
      %v1756 = vmul.f32 %v1604, %v1750
      %v1757 = vmul.f32 %v1603, %v1750
      %v1758 = vmul.f32 %v1602, %v1750
      %v1759 = vmul.f32 %v1601, %v1750
      %v1760 = vmul.f32 %v1600, %v1750
      %v1761 = vmul.f32 %v1599, %v1750
      %v1762 = vmul.f32 %v1598, %v1750
      %v1763 = vmul.f32 %v1597, %v1750
      %v1764 = vmul.f32 %v1596, %v1750
      %v1765 = vmul.f32 %v1595, %v1750
      %v1766 = vmul.f32 %v1594, %v1750
      %v1767 = vmul.f32 %v1593, %v1750
      %v1768 = vmul.f32 %v1592, %v1750
      %v1769 = vmul.f32 %v1591, %v1750
      %v1770 = vmul.f32 %v1590, %v1750
      %v1771 = vmul.f32 %v1589, %v1750
      %v1772 = vmul.f32 %v1588, %v1750
      %v1773 = vmul.f32 %v1587, %v1750
      %v1774 = vmul.f32 %v1586, %v1750
      %v1775 = vmul.f32 %v1585, %v1750
      %v1776 = vmul.f32 %v1584, %v1750
      %v1777 = vmul.f32 %v1583, %v1750
      %v1778 = vmul.f32 %v1582, %v1750
      %v1779 = vmul.f32 %v1581, %v1750
      %v1780 = vmul.f32 %v1580, %v1750
      %v1781 = vmul.f32 %v1579, %v1750
      %v1782 = vmul.f32 %v1578, %v1750
      %v1783 = vadd.f32 %v1751, 0.0
      %v1784 = vadd.f32 %v1752, 0.0
      %v1785 = vadd.f32 %v1753, 0.0
      %v1786 = vadd.f32 %v1754, 0.0
      %v1787 = vadd.f32 %v1755, 0.0
      %v1788 = vadd.f32 %v1756, 0.0
      %v1789 = vadd.f32 %v1757, 0.0
      %v1790 = vadd.f32 %v1758, 0.0
      %v1791 = vadd.f32 %v1759, 0.0
      %v1792 = vadd.f32 %v1760, 0.0
      %v1793 = vadd.f32 %v1761, 0.0
      %v1794 = vadd.f32 %v1762, 0.0
      %v1795 = vadd.f32 %v1763, 0.0
      %v1796 = vadd.f32 %v1764, 0.0
      %v1797 = vadd.f32 %v1765, 0.0
      %v1798 = vadd.f32 %v1766, 0.0
      %v1799 = vadd.f32 %v1767, 0.0
      %v1800 = vadd.f32 %v1768, 0.0
      %v1801 = vadd.f32 %v1769, 0.0
      %v1802 = vadd.f32 %v1770, 0.0
      %v1803 = vadd.f32 %v1771, 0.0
      %v1804 = vadd.f32 %v1772, 0.0
      %v1805 = vadd.f32 %v1773, 0.0
      %v1806 = vadd.f32 %v1774, 0.0
      %v1807 = vadd.f32 %v1775, 0.0
      %v1808 = vadd.f32 %v1776, 0.0
      %v1809 = vadd.f32 %v1777, 0.0
      %v1810 = vadd.f32 %v1778, 0.0
      %v1811 = vadd.f32 %v1779, 0.0
      %v1812 = vadd.f32 %v1780, 0.0
      %v1813 = vadd.f32 %v1781, 0.0
      %v1814 = vadd.f32 %v1782, 0.0
      %v1815 = vlaneseq
      %v1816 = vshrl.u32 %v1815, 7
      %v1817 = vsub.s32 3, %v1816
      %v1818 = vrot.slane %v1463, %v1817
      %v1819 = vmul.f32 %v1535, %v1818
      %v1820 = vmul.f32 %v1534, %v1818
      %v1821 = vmul.f32 %v1533, %v1818
      %v1822 = vmul.f32 %v1532, %v1818
      %v1823 = vmul.f32 %v1531, %v1818
      %v1824 = vmul.f32 %v1530, %v1818
      %v1825 = vmul.f32 %v1529, %v1818
      %v1826 = vmul.f32 %v1528, %v1818
      %v1827 = vmul.f32 %v1527, %v1818
      %v1828 = vmul.f32 %v1526, %v1818
      %v1829 = vmul.f32 %v1525, %v1818
      %v1830 = vmul.f32 %v1524, %v1818
      %v1831 = vmul.f32 %v1523, %v1818
      %v1832 = vmul.f32 %v1522, %v1818
      %v1833 = vmul.f32 %v1521, %v1818
      %v1834 = vmul.f32 %v1520, %v1818
      %v1835 = vmul.f32 %v1519, %v1818
      %v1836 = vmul.f32 %v1518, %v1818
      %v1837 = vmul.f32 %v1517, %v1818
      %v1838 = vmul.f32 %v1516, %v1818
      %v1839 = vmul.f32 %v1515, %v1818
      %v1840 = vmul.f32 %v1514, %v1818
      %v1841 = vmul.f32 %v1513, %v1818
      %v1842 = vmul.f32 %v1512, %v1818
      %v1843 = vmul.f32 %v1511, %v1818
      %v1844 = vmul.f32 %v1510, %v1818
      %v1845 = vmul.f32 %v1509, %v1818
      %v1846 = vmul.f32 %v1508, %v1818
      %v1847 = vmul.f32 %v1507, %v1818
      %v1848 = vmul.f32 %v1506, %v1818
      %v1849 = vmul.f32 %v1505, %v1818
      %v1850 = vmul.f32 %v1504, %v1818
      %v1851 = vadd.f32 %v1647, %v1819
      %v1852 = vadd.f32 %v1648, %v1820
      %v1853 = vadd.f32 %v1649, %v1821
      %v1854 = vadd.f32 %v1650, %v1822
      %v1855 = vadd.f32 %v1651, %v1823
      %v1856 = vadd.f32 %v1652, %v1824
      %v1857 = vadd.f32 %v1653, %v1825
      %v1858 = vadd.f32 %v1654, %v1826
      %v1859 = vadd.f32 %v1655, %v1827
      %v1860 = vadd.f32 %v1656, %v1828
      %v1861 = vadd.f32 %v1657, %v1829
      %v1862 = vadd.f32 %v1658, %v1830
      %v1863 = vadd.f32 %v1659, %v1831
      %v1864 = vadd.f32 %v1660, %v1832
      %v1865 = vadd.f32 %v1661, %v1833
      %v1866 = vadd.f32 %v1662, %v1834
      %v1867 = vadd.f32 %v1663, %v1835
      %v1868 = vadd.f32 %v1664, %v1836
      %v1869 = vadd.f32 %v1665, %v1837
      %v1870 = vadd.f32 %v1666, %v1838
      %v1871 = vadd.f32 %v1667, %v1839
      %v1872 = vadd.f32 %v1668, %v1840
      %v1873 = vadd.f32 %v1669, %v1841
      %v1874 = vadd.f32 %v1670, %v1842
      %v1875 = vadd.f32 %v1671, %v1843
      %v1876 = vadd.f32 %v1672, %v1844
      %v1877 = vadd.f32 %v1673, %v1845
      %v1878 = vadd.f32 %v1674, %v1846
      %v1879 = vadd.f32 %v1675, %v1847
      %v1880 = vadd.f32 %v1676, %v1848
      %v1881 = vadd.f32 %v1677, %v1849
      %v1882 = vadd.f32 %v1678, %v1850
      %v1883 = vlaneseq
      %v1884 = vshrl.u32 %v1883, 7
      %v1885 = vsub.s32 4, %v1884
      %v1886 = vrot.slane %v1463, %v1885
      %v1887 = vmul.f32 %v1429, %v1886
      %v1888 = vmul.f32 %v1430, %v1886
      %v1889 = vmul.f32 %v1431, %v1886
      %v1890 = vmul.f32 %v1432, %v1886
      %v1891 = vmul.f32 %v1433, %v1886
      %v1892 = vmul.f32 %v1434, %v1886
      %v1893 = vmul.f32 %v1435, %v1886
      %v1894 = vmul.f32 %v1436, %v1886
      %v1895 = vmul.f32 %v1437, %v1886
      %v1896 = vmul.f32 %v1438, %v1886
      %v1897 = vmul.f32 %v1439, %v1886
      %v1898 = vmul.f32 %v1440, %v1886
      %v1899 = vmul.f32 %v1441, %v1886
      %v1900 = vmul.f32 %v1442, %v1886
      %v1901 = vmul.f32 %v1443, %v1886
      %v1902 = vmul.f32 %v1444, %v1886
      %v1903 = vmul.f32 %v1445, %v1886
      %v1904 = vmul.f32 %v1446, %v1886
      %v1905 = vmul.f32 %v1447, %v1886
      %v1906 = vmul.f32 %v1448, %v1886
      %v1907 = vmul.f32 %v1449, %v1886
      %v1908 = vmul.f32 %v1450, %v1886
      %v1909 = vmul.f32 %v1451, %v1886
      %v1910 = vmul.f32 %v1452, %v1886
      %v1911 = vmul.f32 %v1453, %v1886
      %v1912 = vmul.f32 %v1454, %v1886
      %v1913 = vmul.f32 %v1455, %v1886
      %v1914 = vmul.f32 %v1456, %v1886
      %v1915 = vmul.f32 %v1457, %v1886
      %v1916 = vmul.f32 %v1458, %v1886
      %v1917 = vmul.f32 %v1459, %v1886
      %v1918 = vmul.f32 %v1460, %v1886
      %v1919 = vadd.f32 %v1715, %v1887
      %v1920 = vadd.f32 %v1716, %v1888
      %v1921 = vadd.f32 %v1717, %v1889
      %v1922 = vadd.f32 %v1718, %v1890
      %v1923 = vadd.f32 %v1719, %v1891
      %v1924 = vadd.f32 %v1720, %v1892
      %v1925 = vadd.f32 %v1721, %v1893
      %v1926 = vadd.f32 %v1722, %v1894
      %v1927 = vadd.f32 %v1723, %v1895
      %v1928 = vadd.f32 %v1724, %v1896
      %v1929 = vadd.f32 %v1725, %v1897
      %v1930 = vadd.f32 %v1726, %v1898
      %v1931 = vadd.f32 %v1727, %v1899
      %v1932 = vadd.f32 %v1728, %v1900
      %v1933 = vadd.f32 %v1729, %v1901
      %v1934 = vadd.f32 %v1730, %v1902
      %v1935 = vadd.f32 %v1731, %v1903
      %v1936 = vadd.f32 %v1732, %v1904
      %v1937 = vadd.f32 %v1733, %v1905
      %v1938 = vadd.f32 %v1734, %v1906
      %v1939 = vadd.f32 %v1735, %v1907
      %v1940 = vadd.f32 %v1736, %v1908
      %v1941 = vadd.f32 %v1737, %v1909
      %v1942 = vadd.f32 %v1738, %v1910
      %v1943 = vadd.f32 %v1739, %v1911
      %v1944 = vadd.f32 %v1740, %v1912
      %v1945 = vadd.f32 %v1741, %v1913
      %v1946 = vadd.f32 %v1742, %v1914
      %v1947 = vadd.f32 %v1743, %v1915
      %v1948 = vadd.f32 %v1744, %v1916
      %v1949 = vadd.f32 %v1745, %v1917
      %v1950 = vadd.f32 %v1746, %v1918
      %v1951 = vlaneseq
      %v1952 = vshrl.u32 %v1951, 7
      %v1953 = vsub.s32 5, %v1952
      %v1954 = vrot.slane %v1463, %v1953
      %v1955 = vmul.f32 %v1607, %v1954
      %v1956 = vmul.f32 %v1606, %v1954
      %v1957 = vmul.f32 %v1605, %v1954
      %v1958 = vmul.f32 %v1604, %v1954
      %v1959 = vmul.f32 %v1603, %v1954
      %v1960 = vmul.f32 %v1602, %v1954
      %v1961 = vmul.f32 %v1601, %v1954
      %v1962 = vmul.f32 %v1600, %v1954
      %v1963 = vmul.f32 %v1599, %v1954
      %v1964 = vmul.f32 %v1598, %v1954
      %v1965 = vmul.f32 %v1597, %v1954
      %v1966 = vmul.f32 %v1596, %v1954
      %v1967 = vmul.f32 %v1595, %v1954
      %v1968 = vmul.f32 %v1594, %v1954
      %v1969 = vmul.f32 %v1593, %v1954
      %v1970 = vmul.f32 %v1592, %v1954
      %v1971 = vmul.f32 %v1591, %v1954
      %v1972 = vmul.f32 %v1590, %v1954
      %v1973 = vmul.f32 %v1589, %v1954
      %v1974 = vmul.f32 %v1588, %v1954
      %v1975 = vmul.f32 %v1587, %v1954
      %v1976 = vmul.f32 %v1586, %v1954
      %v1977 = vmul.f32 %v1585, %v1954
      %v1978 = vmul.f32 %v1584, %v1954
      %v1979 = vmul.f32 %v1583, %v1954
      %v1980 = vmul.f32 %v1582, %v1954
      %v1981 = vmul.f32 %v1581, %v1954
      %v1982 = vmul.f32 %v1580, %v1954
      %v1983 = vmul.f32 %v1579, %v1954
      %v1984 = vmul.f32 %v1578, %v1954
      %v1985 = vmul.f32 %v1577, %v1954
      %v1986 = vmul.f32 %v1576, %v1954
      %v1987 = vadd.f32 %v1783, %v1955
      %v1988 = vadd.f32 %v1784, %v1956
      %v1989 = vadd.f32 %v1785, %v1957
      %v1990 = vadd.f32 %v1786, %v1958
      %v1991 = vadd.f32 %v1787, %v1959
      %v1992 = vadd.f32 %v1788, %v1960
      %v1993 = vadd.f32 %v1789, %v1961
      %v1994 = vadd.f32 %v1790, %v1962
      %v1995 = vadd.f32 %v1791, %v1963
      %v1996 = vadd.f32 %v1792, %v1964
      %v1997 = vadd.f32 %v1793, %v1965
      %v1998 = vadd.f32 %v1794, %v1966
      %v1999 = vadd.f32 %v1795, %v1967
      %v2000 = vadd.f32 %v1796, %v1968
      %v2001 = vadd.f32 %v1797, %v1969
      %v2002 = vadd.f32 %v1798, %v1970
      %v2003 = vadd.f32 %v1799, %v1971
      %v2004 = vadd.f32 %v1800, %v1972
      %v2005 = vadd.f32 %v1801, %v1973
      %v2006 = vadd.f32 %v1802, %v1974
      %v2007 = vadd.f32 %v1803, %v1975
      %v2008 = vadd.f32 %v1804, %v1976
      %v2009 = vadd.f32 %v1805, %v1977
      %v2010 = vadd.f32 %v1806, %v1978
      %v2011 = vadd.f32 %v1807, %v1979
      %v2012 = vadd.f32 %v1808, %v1980
      %v2013 = vadd.f32 %v1809, %v1981
      %v2014 = vadd.f32 %v1810, %v1982
      %v2015 = vadd.f32 %v1811, %v1983
      %v2016 = vadd.f32 %v1812, %v1984
      %v2017 = vadd.f32 %v1813, %v1985
      %v2018 = vadd.f32 %v1814, %v1986
      %v2019 = vlaneseq
      %v2020 = vshrl.u32 %v2019, 7
      %v2021 = vsub.s32 6, %v2020
      %v2022 = vrot.slane %v1463, %v2021
      %v2023 = vmul.f32 %v1533, %v2022
      %v2024 = vmul.f32 %v1532, %v2022
      %v2025 = vmul.f32 %v1531, %v2022
      %v2026 = vmul.f32 %v1530, %v2022
      %v2027 = vmul.f32 %v1529, %v2022
      %v2028 = vmul.f32 %v1528, %v2022
      %v2029 = vmul.f32 %v1527, %v2022
      %v2030 = vmul.f32 %v1526, %v2022
      %v2031 = vmul.f32 %v1525, %v2022
      %v2032 = vmul.f32 %v1524, %v2022
      %v2033 = vmul.f32 %v1523, %v2022
      %v2034 = vmul.f32 %v1522, %v2022
      %v2035 = vmul.f32 %v1521, %v2022
      %v2036 = vmul.f32 %v1520, %v2022
      %v2037 = vmul.f32 %v1519, %v2022
      %v2038 = vmul.f32 %v1518, %v2022
      %v2039 = vmul.f32 %v1517, %v2022
      %v2040 = vmul.f32 %v1516, %v2022
      %v2041 = vmul.f32 %v1515, %v2022
      %v2042 = vmul.f32 %v1514, %v2022
      %v2043 = vmul.f32 %v1513, %v2022
      %v2044 = vmul.f32 %v1512, %v2022
      %v2045 = vmul.f32 %v1511, %v2022
      %v2046 = vmul.f32 %v1510, %v2022
      %v2047 = vmul.f32 %v1509, %v2022
      %v2048 = vmul.f32 %v1508, %v2022
      %v2049 = vmul.f32 %v1507, %v2022
      %v2050 = vmul.f32 %v1506, %v2022
      %v2051 = vmul.f32 %v1505, %v2022
      %v2052 = vmul.f32 %v1504, %v2022
      %v2053 = vmul.f32 %v1503, %v2022
      %v2054 = vmul.f32 %v1502, %v2022
      %v2055 = vadd.f32 %v1851, %v2023
      %v2056 = vadd.f32 %v1852, %v2024
      %v2057 = vadd.f32 %v1853, %v2025
      %v2058 = vadd.f32 %v1854, %v2026
      %v2059 = vadd.f32 %v1855, %v2027
      %v2060 = vadd.f32 %v1856, %v2028
      %v2061 = vadd.f32 %v1857, %v2029
      %v2062 = vadd.f32 %v1858, %v2030
      %v2063 = vadd.f32 %v1859, %v2031
      %v2064 = vadd.f32 %v1860, %v2032
      %v2065 = vadd.f32 %v1861, %v2033
      %v2066 = vadd.f32 %v1862, %v2034
      %v2067 = vadd.f32 %v1863, %v2035
      %v2068 = vadd.f32 %v1864, %v2036
      %v2069 = vadd.f32 %v1865, %v2037
      %v2070 = vadd.f32 %v1866, %v2038
      %v2071 = vadd.f32 %v1867, %v2039
      %v2072 = vadd.f32 %v1868, %v2040
      %v2073 = vadd.f32 %v1869, %v2041
      %v2074 = vadd.f32 %v1870, %v2042
      %v2075 = vadd.f32 %v1871, %v2043
      %v2076 = vadd.f32 %v1872, %v2044
      %v2077 = vadd.f32 %v1873, %v2045
      %v2078 = vadd.f32 %v1874, %v2046
      %v2079 = vadd.f32 %v1875, %v2047
      %v2080 = vadd.f32 %v1876, %v2048
      %v2081 = vadd.f32 %v1877, %v2049
      %v2082 = vadd.f32 %v1878, %v2050
      %v2083 = vadd.f32 %v1879, %v2051
      %v2084 = vadd.f32 %v1880, %v2052
      %v2085 = vadd.f32 %v1881, %v2053
      %v2086 = vadd.f32 %v1882, %v2054
      %v2087 = vlaneseq
      %v2088 = vshrl.u32 %v2087, 7
      %v2089 = vsub.s32 7, %v2088
      %v2090 = vrot.slane %v1463, %v2089
      %v2091 = vmul.f32 %v1431, %v2090
      %v2092 = vmul.f32 %v1432, %v2090
      %v2093 = vmul.f32 %v1433, %v2090
      %v2094 = vmul.f32 %v1434, %v2090
      %v2095 = vmul.f32 %v1435, %v2090
      %v2096 = vmul.f32 %v1436, %v2090
      %v2097 = vmul.f32 %v1437, %v2090
      %v2098 = vmul.f32 %v1438, %v2090
      %v2099 = vmul.f32 %v1439, %v2090
      %v2100 = vmul.f32 %v1440, %v2090
      %v2101 = vmul.f32 %v1441, %v2090
      %v2102 = vmul.f32 %v1442, %v2090
      %v2103 = vmul.f32 %v1443, %v2090
      %v2104 = vmul.f32 %v1444, %v2090
      %v2105 = vmul.f32 %v1445, %v2090
      %v2106 = vmul.f32 %v1446, %v2090
      %v2107 = vmul.f32 %v1447, %v2090
      %v2108 = vmul.f32 %v1448, %v2090
      %v2109 = vmul.f32 %v1449, %v2090
      %v2110 = vmul.f32 %v1450, %v2090
      %v2111 = vmul.f32 %v1451, %v2090
      %v2112 = vmul.f32 %v1452, %v2090
      %v2113 = vmul.f32 %v1453, %v2090
      %v2114 = vmul.f32 %v1454, %v2090
      %v2115 = vmul.f32 %v1455, %v2090
      %v2116 = vmul.f32 %v1456, %v2090
      %v2117 = vmul.f32 %v1457, %v2090
      %v2118 = vmul.f32 %v1458, %v2090
      %v2119 = vmul.f32 %v1459, %v2090
      %v2120 = vmul.f32 %v1460, %v2090
      %v2121 = vmul.f32 %v1461, %v2090
      %v2122 = vmul.f32 %v1462, %v2090
      %v2123 = vadd.f32 %v1919, %v2091
      %v2124 = vadd.f32 %v1920, %v2092
      %v2125 = vadd.f32 %v1921, %v2093
      %v2126 = vadd.f32 %v1922, %v2094
      %v2127 = vadd.f32 %v1923, %v2095
      %v2128 = vadd.f32 %v1924, %v2096
      %v2129 = vadd.f32 %v1925, %v2097
      %v2130 = vadd.f32 %v1926, %v2098
      %v2131 = vadd.f32 %v1927, %v2099
      %v2132 = vadd.f32 %v1928, %v2100
      %v2133 = vadd.f32 %v1929, %v2101
      %v2134 = vadd.f32 %v1930, %v2102
      %v2135 = vadd.f32 %v1931, %v2103
      %v2136 = vadd.f32 %v1932, %v2104
      %v2137 = vadd.f32 %v1933, %v2105
      %v2138 = vadd.f32 %v1934, %v2106
      %v2139 = vadd.f32 %v1935, %v2107
      %v2140 = vadd.f32 %v1936, %v2108
      %v2141 = vadd.f32 %v1937, %v2109
      %v2142 = vadd.f32 %v1938, %v2110
      %v2143 = vadd.f32 %v1939, %v2111
      %v2144 = vadd.f32 %v1940, %v2112
      %v2145 = vadd.f32 %v1941, %v2113
      %v2146 = vadd.f32 %v1942, %v2114
      %v2147 = vadd.f32 %v1943, %v2115
      %v2148 = vadd.f32 %v1944, %v2116
      %v2149 = vadd.f32 %v1945, %v2117
      %v2150 = vadd.f32 %v1946, %v2118
      %v2151 = vadd.f32 %v1947, %v2119
      %v2152 = vadd.f32 %v1948, %v2120
      %v2153 = vadd.f32 %v1949, %v2121
      %v2154 = vadd.f32 %v1950, %v2122
      %v2155 = vlaneseq
      %v2156 = vshrl.u32 %v2155, 7
      %v2157 = vsub.s32 0, %v2156
      %v2158 = vrot.slane %v1464, %v2157
      %v2159 = vmul.f32 %v1605, %v2158
      %v2160 = vmul.f32 %v1604, %v2158
      %v2161 = vmul.f32 %v1603, %v2158
      %v2162 = vmul.f32 %v1602, %v2158
      %v2163 = vmul.f32 %v1601, %v2158
      %v2164 = vmul.f32 %v1600, %v2158
      %v2165 = vmul.f32 %v1599, %v2158
      %v2166 = vmul.f32 %v1598, %v2158
      %v2167 = vmul.f32 %v1597, %v2158
      %v2168 = vmul.f32 %v1596, %v2158
      %v2169 = vmul.f32 %v1595, %v2158
      %v2170 = vmul.f32 %v1594, %v2158
      %v2171 = vmul.f32 %v1593, %v2158
      %v2172 = vmul.f32 %v1592, %v2158
      %v2173 = vmul.f32 %v1591, %v2158
      %v2174 = vmul.f32 %v1590, %v2158
      %v2175 = vmul.f32 %v1589, %v2158
      %v2176 = vmul.f32 %v1588, %v2158
      %v2177 = vmul.f32 %v1587, %v2158
      %v2178 = vmul.f32 %v1586, %v2158
      %v2179 = vmul.f32 %v1585, %v2158
      %v2180 = vmul.f32 %v1584, %v2158
      %v2181 = vmul.f32 %v1583, %v2158
      %v2182 = vmul.f32 %v1582, %v2158
      %v2183 = vmul.f32 %v1581, %v2158
      %v2184 = vmul.f32 %v1580, %v2158
      %v2185 = vmul.f32 %v1579, %v2158
      %v2186 = vmul.f32 %v1578, %v2158
      %v2187 = vmul.f32 %v1577, %v2158
      %v2188 = vmul.f32 %v1576, %v2158
      %v2189 = vmul.f32 %v1575, %v2158
      %v2190 = vmul.f32 %v1610, %v2158
      %v2191 = vadd.f32 %v1987, %v2159
      %v2192 = vadd.f32 %v1988, %v2160
      %v2193 = vadd.f32 %v1989, %v2161
      %v2194 = vadd.f32 %v1990, %v2162
      %v2195 = vadd.f32 %v1991, %v2163
      %v2196 = vadd.f32 %v1992, %v2164
      %v2197 = vadd.f32 %v1993, %v2165
      %v2198 = vadd.f32 %v1994, %v2166
      %v2199 = vadd.f32 %v1995, %v2167
      %v2200 = vadd.f32 %v1996, %v2168
      %v2201 = vadd.f32 %v1997, %v2169
      %v2202 = vadd.f32 %v1998, %v2170
      %v2203 = vadd.f32 %v1999, %v2171
      %v2204 = vadd.f32 %v2000, %v2172
      %v2205 = vadd.f32 %v2001, %v2173
      %v2206 = vadd.f32 %v2002, %v2174
      %v2207 = vadd.f32 %v2003, %v2175
      %v2208 = vadd.f32 %v2004, %v2176
      %v2209 = vadd.f32 %v2005, %v2177
      %v2210 = vadd.f32 %v2006, %v2178
      %v2211 = vadd.f32 %v2007, %v2179
      %v2212 = vadd.f32 %v2008, %v2180
      %v2213 = vadd.f32 %v2009, %v2181
      %v2214 = vadd.f32 %v2010, %v2182
      %v2215 = vadd.f32 %v2011, %v2183
      %v2216 = vadd.f32 %v2012, %v2184
      %v2217 = vadd.f32 %v2013, %v2185
      %v2218 = vadd.f32 %v2014, %v2186
      %v2219 = vadd.f32 %v2015, %v2187
      %v2220 = vadd.f32 %v2016, %v2188
      %v2221 = vadd.f32 %v2017, %v2189
      %v2222 = vadd.f32 %v2018, %v2190
      %vm2223 = vcmp.lt.s32.totalorder %v1131, 0
      %v2224 = vsub.s32 0, %v1131
      %v2225 = vsel %vm2223, %v2224, %v1131
      %v2226 = vshrl.u32 %v2225, 4
      %v2227 = vand.u32 %v2225, 15
      %v2228 = vsub.s32 0, %v2227
      %v2229 = vsel %vm2223, %v2228, %v2227
      %vm2230 = vcmp.lt.s32.totalorder %v1132, 0
      %v2231 = vsub.s32 0, %v1132
      %v2232 = vsel %vm2230, %v2231, %v1132
      %v2233 = vshrl.u32 %v2232, 4
      %v2234 = vand.u32 %v2232, 15
      %v2235 = vsub.s32 0, %v2234
      %v2236 = vsel %vm2230, %v2235, %v2234
      %vm2237 = vcmp.lt.s32.totalorder %v1133, 0
      %v2238 = vsub.s32 0, %v1133
      %v2239 = vsel %vm2237, %v2238, %v1133
      %v2240 = vshrl.u32 %v2239, 4
      %v2241 = vand.u32 %v2239, 15
      %v2242 = vsub.s32 0, %v2241
      %v2243 = vsel %vm2237, %v2242, %v2241
      %vm2244 = vcmp.lt.s32.totalorder %v1134, 0
      %v2245 = vsub.s32 0, %v1134
      %v2246 = vsel %vm2244, %v2245, %v1134
      %v2247 = vshrl.u32 %v2246, 4
      %v2248 = vand.u32 %v2246, 15
      %v2249 = vsub.s32 0, %v2248
      %v2250 = vsel %vm2244, %v2249, %v2248
      %vm2251 = vcmp.lt.s32.totalorder %v1135, 0
      %v2252 = vsub.s32 0, %v1135
      %v2253 = vsel %vm2251, %v2252, %v1135
      %v2254 = vshrl.u32 %v2253, 4
      %v2255 = vand.u32 %v2253, 15
      %v2256 = vsub.s32 0, %v2255
      %v2257 = vsel %vm2251, %v2256, %v2255
      %vm2258 = vcmp.lt.s32.totalorder %v1136, 0
      %v2259 = vsub.s32 0, %v1136
      %v2260 = vsel %vm2258, %v2259, %v1136
      %v2261 = vshrl.u32 %v2260, 4
      %v2262 = vand.u32 %v2260, 15
      %v2263 = vsub.s32 0, %v2262
      %v2264 = vsel %vm2258, %v2263, %v2262
      %vm2265 = vcmp.lt.s32.totalorder %v1137, 0
      %v2266 = vsub.s32 0, %v1137
      %v2267 = vsel %vm2265, %v2266, %v1137
      %v2268 = vshrl.u32 %v2267, 4
      %v2269 = vand.u32 %v2267, 15
      %v2270 = vsub.s32 0, %v2269
      %v2271 = vsel %vm2265, %v2270, %v2269
      %vm2272 = vcmp.lt.s32.totalorder %v1138, 0
      %v2273 = vsub.s32 0, %v1138
      %v2274 = vsel %vm2272, %v2273, %v1138
      %v2275 = vshrl.u32 %v2274, 4
      %v2276 = vand.u32 %v2274, 15
      %v2277 = vsub.s32 0, %v2276
      %v2278 = vsel %vm2272, %v2277, %v2276
      %vm2279 = vcmp.lt.s32.totalorder %v1139, 0
      %v2280 = vsub.s32 0, %v1139
      %v2281 = vsel %vm2279, %v2280, %v1139
      %v2282 = vshrl.u32 %v2281, 4
      %v2283 = vand.u32 %v2281, 15
      %v2284 = vsub.s32 0, %v2283
      %v2285 = vsel %vm2279, %v2284, %v2283
      %vm2286 = vcmp.lt.s32.totalorder %v1140, 0
      %v2287 = vsub.s32 0, %v1140
      %v2288 = vsel %vm2286, %v2287, %v1140
      %v2289 = vshrl.u32 %v2288, 4
      %v2290 = vand.u32 %v2288, 15
      %v2291 = vsub.s32 0, %v2290
      %v2292 = vsel %vm2286, %v2291, %v2290
      %vm2293 = vcmp.lt.s32.totalorder %v1141, 0
      %v2294 = vsub.s32 0, %v1141
      %v2295 = vsel %vm2293, %v2294, %v1141
      %v2296 = vshrl.u32 %v2295, 4
      %v2297 = vand.u32 %v2295, 15
      %v2298 = vsub.s32 0, %v2297
      %v2299 = vsel %vm2293, %v2298, %v2297
      %vm2300 = vcmp.lt.s32.totalorder %v1142, 0
      %v2301 = vsub.s32 0, %v1142
      %v2302 = vsel %vm2300, %v2301, %v1142
      %v2303 = vshrl.u32 %v2302, 4
      %v2304 = vand.u32 %v2302, 15
      %v2305 = vsub.s32 0, %v2304
      %v2306 = vsel %vm2300, %v2305, %v2304
      %vm2307 = vcmp.lt.s32.totalorder %v1143, 0
      %v2308 = vsub.s32 0, %v1143
      %v2309 = vsel %vm2307, %v2308, %v1143
      %v2310 = vshrl.u32 %v2309, 4
      %v2311 = vand.u32 %v2309, 15
      %v2312 = vsub.s32 0, %v2311
      %v2313 = vsel %vm2307, %v2312, %v2311
      %vm2314 = vcmp.lt.s32.totalorder %v1144, 0
      %v2315 = vsub.s32 0, %v1144
      %v2316 = vsel %vm2314, %v2315, %v1144
      %v2317 = vshrl.u32 %v2316, 4
      %v2318 = vand.u32 %v2316, 15
      %v2319 = vsub.s32 0, %v2318
      %v2320 = vsel %vm2314, %v2319, %v2318
      %vm2321 = vcmp.lt.s32.totalorder %v1145, 0
      %v2322 = vsub.s32 0, %v1145
      %v2323 = vsel %vm2321, %v2322, %v1145
      %v2324 = vshrl.u32 %v2323, 4
      %v2325 = vand.u32 %v2323, 15
      %v2326 = vsub.s32 0, %v2325
      %v2327 = vsel %vm2321, %v2326, %v2325
      %vm2328 = vcmp.lt.s32.totalorder %v1146, 0
      %v2329 = vsub.s32 0, %v1146
      %v2330 = vsel %vm2328, %v2329, %v1146
      %v2331 = vshrl.u32 %v2330, 4
      %v2332 = vand.u32 %v2330, 15
      %v2333 = vsub.s32 0, %v2332
      %v2334 = vsel %vm2328, %v2333, %v2332
      %vm2335 = vcmp.lt.s32.totalorder %v1147, 0
      %v2336 = vsub.s32 0, %v1147
      %v2337 = vsel %vm2335, %v2336, %v1147
      %v2338 = vshrl.u32 %v2337, 4
      %v2339 = vand.u32 %v2337, 15
      %v2340 = vsub.s32 0, %v2339
      %v2341 = vsel %vm2335, %v2340, %v2339
      %vm2342 = vcmp.lt.s32.totalorder %v1148, 0
      %v2343 = vsub.s32 0, %v1148
      %v2344 = vsel %vm2342, %v2343, %v1148
      %v2345 = vshrl.u32 %v2344, 4
      %v2346 = vand.u32 %v2344, 15
      %v2347 = vsub.s32 0, %v2346
      %v2348 = vsel %vm2342, %v2347, %v2346
      %vm2349 = vcmp.lt.s32.totalorder %v1149, 0
      %v2350 = vsub.s32 0, %v1149
      %v2351 = vsel %vm2349, %v2350, %v1149
      %v2352 = vshrl.u32 %v2351, 4
      %v2353 = vand.u32 %v2351, 15
      %v2354 = vsub.s32 0, %v2353
      %v2355 = vsel %vm2349, %v2354, %v2353
      %vm2356 = vcmp.lt.s32.totalorder %v1150, 0
      %v2357 = vsub.s32 0, %v1150
      %v2358 = vsel %vm2356, %v2357, %v1150
      %v2359 = vshrl.u32 %v2358, 4
      %v2360 = vand.u32 %v2358, 15
      %v2361 = vsub.s32 0, %v2360
      %v2362 = vsel %vm2356, %v2361, %v2360
      %vm2363 = vcmp.lt.s32.totalorder %v1151, 0
      %v2364 = vsub.s32 0, %v1151
      %v2365 = vsel %vm2363, %v2364, %v1151
      %v2366 = vshrl.u32 %v2365, 4
      %v2367 = vand.u32 %v2365, 15
      %v2368 = vsub.s32 0, %v2367
      %v2369 = vsel %vm2363, %v2368, %v2367
      %vm2370 = vcmp.lt.s32.totalorder %v1152, 0
      %v2371 = vsub.s32 0, %v1152
      %v2372 = vsel %vm2370, %v2371, %v1152
      %v2373 = vshrl.u32 %v2372, 4
      %v2374 = vand.u32 %v2372, 15
      %v2375 = vsub.s32 0, %v2374
      %v2376 = vsel %vm2370, %v2375, %v2374
      %vm2377 = vcmp.lt.s32.totalorder %v1153, 0
      %v2378 = vsub.s32 0, %v1153
      %v2379 = vsel %vm2377, %v2378, %v1153
      %v2380 = vshrl.u32 %v2379, 4
      %v2381 = vand.u32 %v2379, 15
      %v2382 = vsub.s32 0, %v2381
      %v2383 = vsel %vm2377, %v2382, %v2381
      %vm2384 = vcmp.lt.s32.totalorder %v1154, 0
      %v2385 = vsub.s32 0, %v1154
      %v2386 = vsel %vm2384, %v2385, %v1154
      %v2387 = vshrl.u32 %v2386, 4
      %v2388 = vand.u32 %v2386, 15
      %v2389 = vsub.s32 0, %v2388
      %v2390 = vsel %vm2384, %v2389, %v2388
      %vm2391 = vcmp.lt.s32.totalorder %v1155, 0
      %v2392 = vsub.s32 0, %v1155
      %v2393 = vsel %vm2391, %v2392, %v1155
      %v2394 = vshrl.u32 %v2393, 4
      %v2395 = vand.u32 %v2393, 15
      %v2396 = vsub.s32 0, %v2395
      %v2397 = vsel %vm2391, %v2396, %v2395
      %vm2398 = vcmp.lt.s32.totalorder %v1156, 0
      %v2399 = vsub.s32 0, %v1156
      %v2400 = vsel %vm2398, %v2399, %v1156
      %v2401 = vshrl.u32 %v2400, 4
      %v2402 = vand.u32 %v2400, 15
      %v2403 = vsub.s32 0, %v2402
      %v2404 = vsel %vm2398, %v2403, %v2402
      %vm2405 = vcmp.lt.s32.totalorder %v1157, 0
      %v2406 = vsub.s32 0, %v1157
      %v2407 = vsel %vm2405, %v2406, %v1157
      %v2408 = vshrl.u32 %v2407, 4
      %v2409 = vand.u32 %v2407, 15
      %v2410 = vsub.s32 0, %v2409
      %v2411 = vsel %vm2405, %v2410, %v2409
      %vm2412 = vcmp.lt.s32.totalorder %v1158, 0
      %v2413 = vsub.s32 0, %v1158
      %v2414 = vsel %vm2412, %v2413, %v1158
      %v2415 = vshrl.u32 %v2414, 4
      %v2416 = vand.u32 %v2414, 15
      %v2417 = vsub.s32 0, %v2416
      %v2418 = vsel %vm2412, %v2417, %v2416
      %vm2419 = vcmp.lt.s32.totalorder %v1159, 0
      %v2420 = vsub.s32 0, %v1159
      %v2421 = vsel %vm2419, %v2420, %v1159
      %v2422 = vshrl.u32 %v2421, 4
      %v2423 = vand.u32 %v2421, 15
      %v2424 = vsub.s32 0, %v2423
      %v2425 = vsel %vm2419, %v2424, %v2423
      %vm2426 = vcmp.lt.s32.totalorder %v1160, 0
      %v2427 = vsub.s32 0, %v1160
      %v2428 = vsel %vm2426, %v2427, %v1160
      %v2429 = vshrl.u32 %v2428, 4
      %v2430 = vand.u32 %v2428, 15
      %v2431 = vsub.s32 0, %v2430
      %v2432 = vsel %vm2426, %v2431, %v2430
      %vm2433 = vcmp.lt.s32.totalorder %v1161, 0
      %v2434 = vsub.s32 0, %v1161
      %v2435 = vsel %vm2433, %v2434, %v1161
      %v2436 = vshrl.u32 %v2435, 4
      %v2437 = vand.u32 %v2435, 15
      %v2438 = vsub.s32 0, %v2437
      %v2439 = vsel %vm2433, %v2438, %v2437
      %vm2440 = vcmp.lt.s32.totalorder %v1162, 0
      %v2441 = vsub.s32 0, %v1162
      %v2442 = vsel %vm2440, %v2441, %v1162
      %v2443 = vshrl.u32 %v2442, 4
      %v2444 = vand.u32 %v2442, 15
      %v2445 = vsub.s32 0, %v2444
      %v2446 = vsel %vm2440, %v2445, %v2444
      %vm2447 = vcmp.ne.s32.totalorder %v2229, 0
      %vm2448 = vcmp.ne.s32.totalorder %v2236, 0
      %vm2449 = vcmp.ne.s32.totalorder %v2243, 0
      %vm2450 = vcmp.ne.s32.totalorder %v2250, 0
      %vm2451 = vcmp.ne.s32.totalorder %v2257, 0
      %vm2452 = vcmp.ne.s32.totalorder %v2264, 0
      %vm2453 = vcmp.ne.s32.totalorder %v2271, 0
      %vm2454 = vcmp.ne.s32.totalorder %v2278, 0
      %vm2455 = vcmp.ne.s32.totalorder %v2285, 0
      %vm2456 = vcmp.ne.s32.totalorder %v2292, 0
      %vm2457 = vcmp.ne.s32.totalorder %v2299, 0
      %vm2458 = vcmp.ne.s32.totalorder %v2306, 0
      %vm2459 = vcmp.ne.s32.totalorder %v2313, 0
      %vm2460 = vcmp.ne.s32.totalorder %v2320, 0
      %vm2461 = vcmp.ne.s32.totalorder %v2327, 0
      %vm2462 = vcmp.ne.s32.totalorder %v2334, 0
      %vm2463 = vcmp.ne.s32.totalorder %v2341, 0
      %vm2464 = vcmp.ne.s32.totalorder %v2348, 0
      %vm2465 = vcmp.ne.s32.totalorder %v2355, 0
      %vm2466 = vcmp.ne.s32.totalorder %v2362, 0
      %vm2467 = vcmp.ne.s32.totalorder %v2369, 0
      %vm2468 = vcmp.ne.s32.totalorder %v2376, 0
      %vm2469 = vcmp.ne.s32.totalorder %v2383, 0
      %vm2470 = vcmp.ne.s32.totalorder %v2390, 0
      %vm2471 = vcmp.ne.s32.totalorder %v2397, 0
      %vm2472 = vcmp.ne.s32.totalorder %v2404, 0
      %vm2473 = vcmp.ne.s32.totalorder %v2411, 0
      %vm2474 = vcmp.ne.s32.totalorder %v2418, 0
      %vm2475 = vcmp.ne.s32.totalorder %v2425, 0
      %vm2476 = vcmp.ne.s32.totalorder %v2432, 0
      %vm2477 = vcmp.ne.s32.totalorder %v2439, 0
      %vm2478 = vcmp.ne.s32.totalorder %v2446, 0
      %vm2479 = vcmp.lt.s32.totalorder %v2229, 0
      %vm2480 = vcmp.lt.s32.totalorder %v2236, 0
      %vm2481 = vcmp.lt.s32.totalorder %v2243, 0
      %vm2482 = vcmp.lt.s32.totalorder %v2250, 0
      %vm2483 = vcmp.lt.s32.totalorder %v2257, 0
      %vm2484 = vcmp.lt.s32.totalorder %v2264, 0
      %vm2485 = vcmp.lt.s32.totalorder %v2271, 0
      %vm2486 = vcmp.lt.s32.totalorder %v2278, 0
      %vm2487 = vcmp.lt.s32.totalorder %v2285, 0
      %vm2488 = vcmp.lt.s32.totalorder %v2292, 0
      %vm2489 = vcmp.lt.s32.totalorder %v2299, 0
      %vm2490 = vcmp.lt.s32.totalorder %v2306, 0
      %vm2491 = vcmp.lt.s32.totalorder %v2313, 0
      %vm2492 = vcmp.lt.s32.totalorder %v2320, 0
      %vm2493 = vcmp.lt.s32.totalorder %v2327, 0
      %vm2494 = vcmp.lt.s32.totalorder %v2334, 0
      %vm2495 = vcmp.lt.s32.totalorder %v2341, 0
      %vm2496 = vcmp.lt.s32.totalorder %v2348, 0
      %vm2497 = vcmp.lt.s32.totalorder %v2355, 0
      %vm2498 = vcmp.lt.s32.totalorder %v2362, 0
      %vm2499 = vcmp.lt.s32.totalorder %v2369, 0
      %vm2500 = vcmp.lt.s32.totalorder %v2376, 0
      %vm2501 = vcmp.lt.s32.totalorder %v2383, 0
      %vm2502 = vcmp.lt.s32.totalorder %v2390, 0
      %vm2503 = vcmp.lt.s32.totalorder %v2397, 0
      %vm2504 = vcmp.lt.s32.totalorder %v2404, 0
      %vm2505 = vcmp.lt.s32.totalorder %v2411, 0
      %vm2506 = vcmp.lt.s32.totalorder %v2418, 0
      %vm2507 = vcmp.lt.s32.totalorder %v2425, 0
      %vm2508 = vcmp.lt.s32.totalorder %v2432, 0
      %vm2509 = vcmp.lt.s32.totalorder %v2439, 0
      %vm2510 = vcmp.lt.s32.totalorder %v2446, 0
      %vm2511 = vmand %vm2479, %vm2447
      %vm2512 = vmand %vm2480, %vm2448
      %vm2513 = vmand %vm2481, %vm2449
      %vm2514 = vmand %vm2482, %vm2450
      %vm2515 = vmand %vm2483, %vm2451
      %vm2516 = vmand %vm2484, %vm2452
      %vm2517 = vmand %vm2485, %vm2453
      %vm2518 = vmand %vm2486, %vm2454
      %vm2519 = vmand %vm2487, %vm2455
      %vm2520 = vmand %vm2488, %vm2456
      %vm2521 = vmand %vm2489, %vm2457
      %vm2522 = vmand %vm2490, %vm2458
      %vm2523 = vmand %vm2491, %vm2459
      %vm2524 = vmand %vm2492, %vm2460
      %vm2525 = vmand %vm2493, %vm2461
      %vm2526 = vmand %vm2494, %vm2462
      %vm2527 = vmand %vm2495, %vm2463
      %vm2528 = vmand %vm2496, %vm2464
      %vm2529 = vmand %vm2497, %vm2465
      %vm2530 = vmand %vm2498, %vm2466
      %vm2531 = vmand %vm2499, %vm2467
      %vm2532 = vmand %vm2500, %vm2468
      %vm2533 = vmand %vm2501, %vm2469
      %vm2534 = vmand %vm2502, %vm2470
      %vm2535 = vmand %vm2503, %vm2471
      %vm2536 = vmand %vm2504, %vm2472
      %vm2537 = vmand %vm2505, %vm2473
      %vm2538 = vmand %vm2506, %vm2474
      %vm2539 = vmand %vm2507, %vm2475
      %vm2540 = vmand %vm2508, %vm2476
      %vm2541 = vmand %vm2509, %vm2477
      %vm2542 = vmand %vm2510, %vm2478
      %v2543 = vadd.s32 %v2229, 16
      %v2544 = vadd.s32 %v2236, 16
      %v2545 = vadd.s32 %v2243, 16
      %v2546 = vadd.s32 %v2250, 16
      %v2547 = vadd.s32 %v2257, 16
      %v2548 = vadd.s32 %v2264, 16
      %v2549 = vadd.s32 %v2271, 16
      %v2550 = vadd.s32 %v2278, 16
      %v2551 = vadd.s32 %v2285, 16
      %v2552 = vadd.s32 %v2292, 16
      %v2553 = vadd.s32 %v2299, 16
      %v2554 = vadd.s32 %v2306, 16
      %v2555 = vadd.s32 %v2313, 16
      %v2556 = vadd.s32 %v2320, 16
      %v2557 = vadd.s32 %v2327, 16
      %v2558 = vadd.s32 %v2334, 16
      %v2559 = vadd.s32 %v2341, 16
      %v2560 = vadd.s32 %v2348, 16
      %v2561 = vadd.s32 %v2355, 16
      %v2562 = vadd.s32 %v2362, 16
      %v2563 = vadd.s32 %v2369, 16
      %v2564 = vadd.s32 %v2376, 16
      %v2565 = vadd.s32 %v2383, 16
      %v2566 = vadd.s32 %v2390, 16
      %v2567 = vadd.s32 %v2397, 16
      %v2568 = vadd.s32 %v2404, 16
      %v2569 = vadd.s32 %v2411, 16
      %v2570 = vadd.s32 %v2418, 16
      %v2571 = vadd.s32 %v2425, 16
      %v2572 = vadd.s32 %v2432, 16
      %v2573 = vadd.s32 %v2439, 16
      %v2574 = vadd.s32 %v2446, 16
      %v2575 = vsel %vm2511, %v2543, %v2229
      %v2576 = vsel %vm2512, %v2544, %v2236
      %v2577 = vsel %vm2513, %v2545, %v2243
      %v2578 = vsel %vm2514, %v2546, %v2250
      %v2579 = vsel %vm2515, %v2547, %v2257
      %v2580 = vsel %vm2516, %v2548, %v2264
      %v2581 = vsel %vm2517, %v2549, %v2271
      %v2582 = vsel %vm2518, %v2550, %v2278
      %v2583 = vsel %vm2519, %v2551, %v2285
      %v2584 = vsel %vm2520, %v2552, %v2292
      %v2585 = vsel %vm2521, %v2553, %v2299
      %v2586 = vsel %vm2522, %v2554, %v2306
      %v2587 = vsel %vm2523, %v2555, %v2313
      %v2588 = vsel %vm2524, %v2556, %v2320
      %v2589 = vsel %vm2525, %v2557, %v2327
      %v2590 = vsel %vm2526, %v2558, %v2334
      %v2591 = vsel %vm2527, %v2559, %v2341
      %v2592 = vsel %vm2528, %v2560, %v2348
      %v2593 = vsel %vm2529, %v2561, %v2355
      %v2594 = vsel %vm2530, %v2562, %v2362
      %v2595 = vsel %vm2531, %v2563, %v2369
      %v2596 = vsel %vm2532, %v2564, %v2376
      %v2597 = vsel %vm2533, %v2565, %v2383
      %v2598 = vsel %vm2534, %v2566, %v2390
      %v2599 = vsel %vm2535, %v2567, %v2397
      %v2600 = vsel %vm2536, %v2568, %v2404
      %v2601 = vsel %vm2537, %v2569, %v2411
      %v2602 = vsel %vm2538, %v2570, %v2418
      %v2603 = vsel %vm2539, %v2571, %v2425
      %v2604 = vsel %vm2540, %v2572, %v2432
      %v2605 = vsel %vm2541, %v2573, %v2439
      %v2606 = vsel %vm2542, %v2574, %v2446
      %vm2607 = vcmp.gt.s32.totalorder %v2575, 0
      %vm2608 = vcmp.gt.s32.totalorder %v2576, 0
      %vm2609 = vcmp.gt.s32.totalorder %v2577, 0
      %vm2610 = vcmp.gt.s32.totalorder %v2578, 0
      %vm2611 = vcmp.gt.s32.totalorder %v2579, 0
      %vm2612 = vcmp.gt.s32.totalorder %v2580, 0
      %vm2613 = vcmp.gt.s32.totalorder %v2581, 0
      %vm2614 = vcmp.gt.s32.totalorder %v2582, 0
      %vm2615 = vcmp.gt.s32.totalorder %v2583, 0
      %vm2616 = vcmp.gt.s32.totalorder %v2584, 0
      %vm2617 = vcmp.gt.s32.totalorder %v2585, 0
      %vm2618 = vcmp.gt.s32.totalorder %v2586, 0
      %vm2619 = vcmp.gt.s32.totalorder %v2587, 0
      %vm2620 = vcmp.gt.s32.totalorder %v2588, 0
      %vm2621 = vcmp.gt.s32.totalorder %v2589, 0
      %vm2622 = vcmp.gt.s32.totalorder %v2590, 0
      %vm2623 = vcmp.gt.s32.totalorder %v2591, 0
      %vm2624 = vcmp.gt.s32.totalorder %v2592, 0
      %vm2625 = vcmp.gt.s32.totalorder %v2593, 0
      %vm2626 = vcmp.gt.s32.totalorder %v2594, 0
      %vm2627 = vcmp.gt.s32.totalorder %v2595, 0
      %vm2628 = vcmp.gt.s32.totalorder %v2596, 0
      %vm2629 = vcmp.gt.s32.totalorder %v2597, 0
      %vm2630 = vcmp.gt.s32.totalorder %v2598, 0
      %vm2631 = vcmp.gt.s32.totalorder %v2599, 0
      %vm2632 = vcmp.gt.s32.totalorder %v2600, 0
      %vm2633 = vcmp.gt.s32.totalorder %v2601, 0
      %vm2634 = vcmp.gt.s32.totalorder %v2602, 0
      %vm2635 = vcmp.gt.s32.totalorder %v2603, 0
      %vm2636 = vcmp.gt.s32.totalorder %v2604, 0
      %vm2637 = vcmp.gt.s32.totalorder %v2605, 0
      %vm2638 = vcmp.gt.s32.totalorder %v2606, 0
      %v2639 = vsel %vm2607, 1, 0
      %v2640 = vsel %vm2608, 1, 0
      %v2641 = vsel %vm2609, 1, 0
      %v2642 = vsel %vm2610, 1, 0
      %v2643 = vsel %vm2611, 1, 0
      %v2644 = vsel %vm2612, 1, 0
      %v2645 = vsel %vm2613, 1, 0
      %v2646 = vsel %vm2614, 1, 0
      %v2647 = vsel %vm2615, 1, 0
      %v2648 = vsel %vm2616, 1, 0
      %v2649 = vsel %vm2617, 1, 0
      %v2650 = vsel %vm2618, 1, 0
      %v2651 = vsel %vm2619, 1, 0
      %v2652 = vsel %vm2620, 1, 0
      %v2653 = vsel %vm2621, 1, 0
      %v2654 = vsel %vm2622, 1, 0
      %v2655 = vsel %vm2623, 1, 0
      %v2656 = vsel %vm2624, 1, 0
      %v2657 = vsel %vm2625, 1, 0
      %v2658 = vsel %vm2626, 1, 0
      %v2659 = vsel %vm2627, 1, 0
      %v2660 = vsel %vm2628, 1, 0
      %v2661 = vsel %vm2629, 1, 0
      %v2662 = vsel %vm2630, 1, 0
      %v2663 = vsel %vm2631, 1, 0
      %v2664 = vsel %vm2632, 1, 0
      %v2665 = vsel %vm2633, 1, 0
      %v2666 = vsel %vm2634, 1, 0
      %v2667 = vsel %vm2635, 1, 0
      %v2668 = vsel %vm2636, 1, 0
      %v2669 = vsel %vm2637, 1, 0
      %v2670 = vsel %vm2638, 1, 0
      %vm2671 = vcmp.eq.s32.totalorder %v2639, 1
      %vm2672 = vcmp.eq.s32.totalorder %v2640, 1
      %vm2673 = vcmp.eq.s32.totalorder %v2641, 1
      %vm2674 = vcmp.eq.s32.totalorder %v2642, 1
      %vm2675 = vcmp.eq.s32.totalorder %v2643, 1
      %vm2676 = vcmp.eq.s32.totalorder %v2644, 1
      %vm2677 = vcmp.eq.s32.totalorder %v2645, 1
      %vm2678 = vcmp.eq.s32.totalorder %v2646, 1
      %vm2679 = vcmp.eq.s32.totalorder %v2647, 1
      %vm2680 = vcmp.eq.s32.totalorder %v2648, 1
      %vm2681 = vcmp.eq.s32.totalorder %v2649, 1
      %vm2682 = vcmp.eq.s32.totalorder %v2650, 1
      %vm2683 = vcmp.eq.s32.totalorder %v2651, 1
      %vm2684 = vcmp.eq.s32.totalorder %v2652, 1
      %vm2685 = vcmp.eq.s32.totalorder %v2653, 1
      %vm2686 = vcmp.eq.s32.totalorder %v2654, 1
      %vm2687 = vcmp.eq.s32.totalorder %v2655, 1
      %vm2688 = vcmp.eq.s32.totalorder %v2656, 1
      %vm2689 = vcmp.eq.s32.totalorder %v2657, 1
      %vm2690 = vcmp.eq.s32.totalorder %v2658, 1
      %vm2691 = vcmp.eq.s32.totalorder %v2659, 1
      %vm2692 = vcmp.eq.s32.totalorder %v2660, 1
      %vm2693 = vcmp.eq.s32.totalorder %v2661, 1
      %vm2694 = vcmp.eq.s32.totalorder %v2662, 1
      %vm2695 = vcmp.eq.s32.totalorder %v2663, 1
      %vm2696 = vcmp.eq.s32.totalorder %v2664, 1
      %vm2697 = vcmp.eq.s32.totalorder %v2665, 1
      %vm2698 = vcmp.eq.s32.totalorder %v2666, 1
      %vm2699 = vcmp.eq.s32.totalorder %v2667, 1
      %vm2700 = vcmp.eq.s32.totalorder %v2668, 1
      %vm2701 = vcmp.eq.s32.totalorder %v2669, 1
      %vm2702 = vcmp.eq.s32.totalorder %v2670, 1
      %v2703 = vsel %vm2671, %v2055, 0.0
      %v2704 = vsel %vm2672, %v2056, 0.0
      %v2705 = vsel %vm2673, %v2057, 0.0
      %v2706 = vsel %vm2674, %v2058, 0.0
      %v2707 = vsel %vm2675, %v2059, 0.0
      %v2708 = vsel %vm2676, %v2060, 0.0
      %v2709 = vsel %vm2677, %v2061, 0.0
      %v2710 = vsel %vm2678, %v2062, 0.0
      %v2711 = vsel %vm2679, %v2063, 0.0
      %v2712 = vsel %vm2680, %v2064, 0.0
      %v2713 = vsel %vm2681, %v2065, 0.0
      %v2714 = vsel %vm2682, %v2066, 0.0
      %v2715 = vsel %vm2683, %v2067, 0.0
      %v2716 = vsel %vm2684, %v2068, 0.0
      %v2717 = vsel %vm2685, %v2069, 0.0
      %v2718 = vsel %vm2686, %v2070, 0.0
      %v2719 = vsel %vm2687, %v2071, 0.0
      %v2720 = vsel %vm2688, %v2072, 0.0
      %v2721 = vsel %vm2689, %v2073, 0.0
      %v2722 = vsel %vm2690, %v2074, 0.0
      %v2723 = vsel %vm2691, %v2075, 0.0
      %v2724 = vsel %vm2692, %v2076, 0.0
      %v2725 = vsel %vm2693, %v2077, 0.0
      %v2726 = vsel %vm2694, %v2078, 0.0
      %v2727 = vsel %vm2695, %v2079, 0.0
      %v2728 = vsel %vm2696, %v2080, 0.0
      %v2729 = vsel %vm2697, %v2081, 0.0
      %v2730 = vsel %vm2698, %v2082, 0.0
      %v2731 = vsel %vm2699, %v2083, 0.0
      %v2732 = vsel %vm2700, %v2084, 0.0
      %v2733 = vsel %vm2701, %v2085, 0.0
      %v2734 = vsel %vm2702, %v2086, 0.0
      %v2735 = vadd.f32 %v2123, %v2703
      %v2736 = vadd.f32 %v2124, %v2704
      %v2737 = vadd.f32 %v2125, %v2705
      %v2738 = vadd.f32 %v2126, %v2706
      %v2739 = vadd.f32 %v2127, %v2707
      %v2740 = vadd.f32 %v2128, %v2708
      %v2741 = vadd.f32 %v2129, %v2709
      %v2742 = vadd.f32 %v2130, %v2710
      %v2743 = vadd.f32 %v2131, %v2711
      %v2744 = vadd.f32 %v2132, %v2712
      %v2745 = vadd.f32 %v2133, %v2713
      %v2746 = vadd.f32 %v2134, %v2714
      %v2747 = vadd.f32 %v2135, %v2715
      %v2748 = vadd.f32 %v2136, %v2716
      %v2749 = vadd.f32 %v2137, %v2717
      %v2750 = vadd.f32 %v2138, %v2718
      %v2751 = vadd.f32 %v2139, %v2719
      %v2752 = vadd.f32 %v2140, %v2720
      %v2753 = vadd.f32 %v2141, %v2721
      %v2754 = vadd.f32 %v2142, %v2722
      %v2755 = vadd.f32 %v2143, %v2723
      %v2756 = vadd.f32 %v2144, %v2724
      %v2757 = vadd.f32 %v2145, %v2725
      %v2758 = vadd.f32 %v2146, %v2726
      %v2759 = vadd.f32 %v2147, %v2727
      %v2760 = vadd.f32 %v2148, %v2728
      %v2761 = vadd.f32 %v2149, %v2729
      %v2762 = vadd.f32 %v2150, %v2730
      %v2763 = vadd.f32 %v2151, %v2731
      %v2764 = vadd.f32 %v2152, %v2732
      %v2765 = vadd.f32 %v2153, %v2733
      %v2766 = vadd.f32 %v2154, %v2734
      %vm2767 = vcmp.lt.s32.totalorder %v2575, 15
      %vm2768 = vcmp.lt.s32.totalorder %v2576, 15
      %vm2769 = vcmp.lt.s32.totalorder %v2577, 15
      %vm2770 = vcmp.lt.s32.totalorder %v2578, 15
      %vm2771 = vcmp.lt.s32.totalorder %v2579, 15
      %vm2772 = vcmp.lt.s32.totalorder %v2580, 15
      %vm2773 = vcmp.lt.s32.totalorder %v2581, 15
      %vm2774 = vcmp.lt.s32.totalorder %v2582, 15
      %vm2775 = vcmp.lt.s32.totalorder %v2583, 15
      %vm2776 = vcmp.lt.s32.totalorder %v2584, 15
      %vm2777 = vcmp.lt.s32.totalorder %v2585, 15
      %vm2778 = vcmp.lt.s32.totalorder %v2586, 15
      %vm2779 = vcmp.lt.s32.totalorder %v2587, 15
      %vm2780 = vcmp.lt.s32.totalorder %v2588, 15
      %vm2781 = vcmp.lt.s32.totalorder %v2589, 15
      %vm2782 = vcmp.lt.s32.totalorder %v2590, 15
      %vm2783 = vcmp.lt.s32.totalorder %v2591, 15
      %vm2784 = vcmp.lt.s32.totalorder %v2592, 15
      %vm2785 = vcmp.lt.s32.totalorder %v2593, 15
      %vm2786 = vcmp.lt.s32.totalorder %v2594, 15
      %vm2787 = vcmp.lt.s32.totalorder %v2595, 15
      %vm2788 = vcmp.lt.s32.totalorder %v2596, 15
      %vm2789 = vcmp.lt.s32.totalorder %v2597, 15
      %vm2790 = vcmp.lt.s32.totalorder %v2598, 15
      %vm2791 = vcmp.lt.s32.totalorder %v2599, 15
      %vm2792 = vcmp.lt.s32.totalorder %v2600, 15
      %vm2793 = vcmp.lt.s32.totalorder %v2601, 15
      %vm2794 = vcmp.lt.s32.totalorder %v2602, 15
      %vm2795 = vcmp.lt.s32.totalorder %v2603, 15
      %vm2796 = vcmp.lt.s32.totalorder %v2604, 15
      %vm2797 = vcmp.lt.s32.totalorder %v2605, 15
      %vm2798 = vcmp.lt.s32.totalorder %v2606, 15
      %v2799 = vsel %vm2767, 1, 0
      %v2800 = vsel %vm2768, 1, 0
      %v2801 = vsel %vm2769, 1, 0
      %v2802 = vsel %vm2770, 1, 0
      %v2803 = vsel %vm2771, 1, 0
      %v2804 = vsel %vm2772, 1, 0
      %v2805 = vsel %vm2773, 1, 0
      %v2806 = vsel %vm2774, 1, 0
      %v2807 = vsel %vm2775, 1, 0
      %v2808 = vsel %vm2776, 1, 0
      %v2809 = vsel %vm2777, 1, 0
      %v2810 = vsel %vm2778, 1, 0
      %v2811 = vsel %vm2779, 1, 0
      %v2812 = vsel %vm2780, 1, 0
      %v2813 = vsel %vm2781, 1, 0
      %v2814 = vsel %vm2782, 1, 0
      %v2815 = vsel %vm2783, 1, 0
      %v2816 = vsel %vm2784, 1, 0
      %v2817 = vsel %vm2785, 1, 0
      %v2818 = vsel %vm2786, 1, 0
      %v2819 = vsel %vm2787, 1, 0
      %v2820 = vsel %vm2788, 1, 0
      %v2821 = vsel %vm2789, 1, 0
      %v2822 = vsel %vm2790, 1, 0
      %v2823 = vsel %vm2791, 1, 0
      %v2824 = vsel %vm2792, 1, 0
      %v2825 = vsel %vm2793, 1, 0
      %v2826 = vsel %vm2794, 1, 0
      %v2827 = vsel %vm2795, 1, 0
      %v2828 = vsel %vm2796, 1, 0
      %v2829 = vsel %vm2797, 1, 0
      %v2830 = vsel %vm2798, 1, 0
      %vm2831 = vcmp.eq.s32.totalorder %v2799, 1
      %vm2832 = vcmp.eq.s32.totalorder %v2800, 1
      %vm2833 = vcmp.eq.s32.totalorder %v2801, 1
      %vm2834 = vcmp.eq.s32.totalorder %v2802, 1
      %vm2835 = vcmp.eq.s32.totalorder %v2803, 1
      %vm2836 = vcmp.eq.s32.totalorder %v2804, 1
      %vm2837 = vcmp.eq.s32.totalorder %v2805, 1
      %vm2838 = vcmp.eq.s32.totalorder %v2806, 1
      %vm2839 = vcmp.eq.s32.totalorder %v2807, 1
      %vm2840 = vcmp.eq.s32.totalorder %v2808, 1
      %vm2841 = vcmp.eq.s32.totalorder %v2809, 1
      %vm2842 = vcmp.eq.s32.totalorder %v2810, 1
      %vm2843 = vcmp.eq.s32.totalorder %v2811, 1
      %vm2844 = vcmp.eq.s32.totalorder %v2812, 1
      %vm2845 = vcmp.eq.s32.totalorder %v2813, 1
      %vm2846 = vcmp.eq.s32.totalorder %v2814, 1
      %vm2847 = vcmp.eq.s32.totalorder %v2815, 1
      %vm2848 = vcmp.eq.s32.totalorder %v2816, 1
      %vm2849 = vcmp.eq.s32.totalorder %v2817, 1
      %vm2850 = vcmp.eq.s32.totalorder %v2818, 1
      %vm2851 = vcmp.eq.s32.totalorder %v2819, 1
      %vm2852 = vcmp.eq.s32.totalorder %v2820, 1
      %vm2853 = vcmp.eq.s32.totalorder %v2821, 1
      %vm2854 = vcmp.eq.s32.totalorder %v2822, 1
      %vm2855 = vcmp.eq.s32.totalorder %v2823, 1
      %vm2856 = vcmp.eq.s32.totalorder %v2824, 1
      %vm2857 = vcmp.eq.s32.totalorder %v2825, 1
      %vm2858 = vcmp.eq.s32.totalorder %v2826, 1
      %vm2859 = vcmp.eq.s32.totalorder %v2827, 1
      %vm2860 = vcmp.eq.s32.totalorder %v2828, 1
      %vm2861 = vcmp.eq.s32.totalorder %v2829, 1
      %vm2862 = vcmp.eq.s32.totalorder %v2830, 1
      %v2863 = vsel %vm2831, %v2191, 0.0
      %v2864 = vsel %vm2832, %v2192, 0.0
      %v2865 = vsel %vm2833, %v2193, 0.0
      %v2866 = vsel %vm2834, %v2194, 0.0
      %v2867 = vsel %vm2835, %v2195, 0.0
      %v2868 = vsel %vm2836, %v2196, 0.0
      %v2869 = vsel %vm2837, %v2197, 0.0
      %v2870 = vsel %vm2838, %v2198, 0.0
      %v2871 = vsel %vm2839, %v2199, 0.0
      %v2872 = vsel %vm2840, %v2200, 0.0
      %v2873 = vsel %vm2841, %v2201, 0.0
      %v2874 = vsel %vm2842, %v2202, 0.0
      %v2875 = vsel %vm2843, %v2203, 0.0
      %v2876 = vsel %vm2844, %v2204, 0.0
      %v2877 = vsel %vm2845, %v2205, 0.0
      %v2878 = vsel %vm2846, %v2206, 0.0
      %v2879 = vsel %vm2847, %v2207, 0.0
      %v2880 = vsel %vm2848, %v2208, 0.0
      %v2881 = vsel %vm2849, %v2209, 0.0
      %v2882 = vsel %vm2850, %v2210, 0.0
      %v2883 = vsel %vm2851, %v2211, 0.0
      %v2884 = vsel %vm2852, %v2212, 0.0
      %v2885 = vsel %vm2853, %v2213, 0.0
      %v2886 = vsel %vm2854, %v2214, 0.0
      %v2887 = vsel %vm2855, %v2215, 0.0
      %v2888 = vsel %vm2856, %v2216, 0.0
      %v2889 = vsel %vm2857, %v2217, 0.0
      %v2890 = vsel %vm2858, %v2218, 0.0
      %v2891 = vsel %vm2859, %v2219, 0.0
      %v2892 = vsel %vm2860, %v2220, 0.0
      %v2893 = vsel %vm2861, %v2221, 0.0
      %v2894 = vsel %vm2862, %v2222, 0.0
      %v2895 = vadd.f32 %v2735, %v2863
      %v2896 = vadd.f32 %v2736, %v2864
      %v2897 = vadd.f32 %v2737, %v2865
      %v2898 = vadd.f32 %v2738, %v2866
      %v2899 = vadd.f32 %v2739, %v2867
      %v2900 = vadd.f32 %v2740, %v2868
      %v2901 = vadd.f32 %v2741, %v2869
      %v2902 = vadd.f32 %v2742, %v2870
      %v2903 = vadd.f32 %v2743, %v2871
      %v2904 = vadd.f32 %v2744, %v2872
      %v2905 = vadd.f32 %v2745, %v2873
      %v2906 = vadd.f32 %v2746, %v2874
      %v2907 = vadd.f32 %v2747, %v2875
      %v2908 = vadd.f32 %v2748, %v2876
      %v2909 = vadd.f32 %v2749, %v2877
      %v2910 = vadd.f32 %v2750, %v2878
      %v2911 = vadd.f32 %v2751, %v2879
      %v2912 = vadd.f32 %v2752, %v2880
      %v2913 = vadd.f32 %v2753, %v2881
      %v2914 = vadd.f32 %v2754, %v2882
      %v2915 = vadd.f32 %v2755, %v2883
      %v2916 = vadd.f32 %v2756, %v2884
      %v2917 = vadd.f32 %v2757, %v2885
      %v2918 = vadd.f32 %v2758, %v2886
      %v2919 = vadd.f32 %v2759, %v2887
      %v2920 = vadd.f32 %v2760, %v2888
      %v2921 = vadd.f32 %v2761, %v2889
      %v2922 = vadd.f32 %v2762, %v2890
      %v2923 = vadd.f32 %v2763, %v2891
      %v2924 = vadd.f32 %v2764, %v2892
      %v2925 = vadd.f32 %v2765, %v2893
      %v2926 = vadd.f32 %v2766, %v2894
      %v2927 = vld [vmem:[%s7] sm:$0x1]
      %v2929 = vlaneseq
      %v2930 = vshrl.u32 %v2929, 7
      %v2931 = vsub.s32 0, %v2930
      %v2932 = vrot.slane %v2927, %v2931
      %v2934 = vmul.f32 %v2895, %v2932
      %v2935 = vmul.f32 %v2896, %v2932
      %v2936 = vmul.f32 %v2897, %v2932
      %v2937 = vmul.f32 %v2898, %v2932
      %v2938 = vmul.f32 %v2899, %v2932
      %v2939 = vmul.f32 %v2900, %v2932
      %v2940 = vmul.f32 %v2901, %v2932
      %v2941 = vmul.f32 %v2902, %v2932
      %v2942 = vmul.f32 %v2903, %v2932
      %v2943 = vmul.f32 %v2904, %v2932
      %v2944 = vmul.f32 %v2905, %v2932
      %v2945 = vmul.f32 %v2906, %v2932
      %v2946 = vmul.f32 %v2907, %v2932
      %v2947 = vmul.f32 %v2908, %v2932
      %v2948 = vmul.f32 %v2909, %v2932
      %v2949 = vmul.f32 %v2910, %v2932
      %v2950 = vmul.f32 %v2911, %v2932
      %v2951 = vmul.f32 %v2912, %v2932
      %v2952 = vmul.f32 %v2913, %v2932
      %v2953 = vmul.f32 %v2914, %v2932
      %v2954 = vmul.f32 %v2915, %v2932
      %v2955 = vmul.f32 %v2916, %v2932
      %v2956 = vmul.f32 %v2917, %v2932
      %v2957 = vmul.f32 %v2918, %v2932
      %v2958 = vmul.f32 %v2919, %v2932
      %v2959 = vmul.f32 %v2920, %v2932
      %v2960 = vmul.f32 %v2921, %v2932
      %v2961 = vmul.f32 %v2922, %v2932
      %v2962 = vmul.f32 %v2923, %v2932
      %v2963 = vmul.f32 %v2924, %v2932
      %v2964 = vmul.f32 %v2925, %v2932
      %v2965 = vmul.f32 %v2926, %v2932
      %v2966 = vld [vmem:[%s8] sm:$0x1]
      %v2968 = vlaneseq
      %v2969 = vshrl.u32 %v2968, 7
      %v2970 = vsub.s32 0, %v2969
      %v2971 = vrot.slane %v2966, %v2970
      %v2973 = vadd.f32 %v2934, %v2971
      %v2974 = vadd.f32 %v2935, %v2971
      %v2975 = vadd.f32 %v2936, %v2971
      %v2976 = vadd.f32 %v2937, %v2971
      %v2977 = vadd.f32 %v2938, %v2971
      %v2978 = vadd.f32 %v2939, %v2971
      %v2979 = vadd.f32 %v2940, %v2971
      %v2980 = vadd.f32 %v2941, %v2971
      %v2981 = vadd.f32 %v2942, %v2971
      %v2982 = vadd.f32 %v2943, %v2971
      %v2983 = vadd.f32 %v2944, %v2971
      %v2984 = vadd.f32 %v2945, %v2971
      %v2985 = vadd.f32 %v2946, %v2971
      %v2986 = vadd.f32 %v2947, %v2971
      %v2987 = vadd.f32 %v2948, %v2971
      %v2988 = vadd.f32 %v2949, %v2971
      %v2989 = vadd.f32 %v2950, %v2971
      %v2990 = vadd.f32 %v2951, %v2971
      %v2991 = vadd.f32 %v2952, %v2971
      %v2992 = vadd.f32 %v2953, %v2971
      %v2993 = vadd.f32 %v2954, %v2971
      %v2994 = vadd.f32 %v2955, %v2971
      %v2995 = vadd.f32 %v2956, %v2971
      %v2996 = vadd.f32 %v2957, %v2971
      %v2997 = vadd.f32 %v2958, %v2971
      %v2998 = vadd.f32 %v2959, %v2971
      %v2999 = vadd.f32 %v2960, %v2971
      %v3000 = vadd.f32 %v2961, %v2971
      %v3001 = vadd.f32 %v2962, %v2971
      %v3002 = vadd.f32 %v2963, %v2971
      %v3003 = vadd.f32 %v2964, %v2971
      %v3004 = vadd.f32 %v2965, %v2971
      %v3005 = vmax.f32 %v2973, 0.0
      %v3006 = vmax.f32 %v2974, 0.0
      %v3007 = vmax.f32 %v2975, 0.0
      %v3008 = vmax.f32 %v2976, 0.0
      %v3009 = vmax.f32 %v2977, 0.0
      %v3010 = vmax.f32 %v2978, 0.0
      %v3011 = vmax.f32 %v2979, 0.0
      %v3012 = vmax.f32 %v2980, 0.0
      %v3013 = vmax.f32 %v2981, 0.0
      %v3014 = vmax.f32 %v2982, 0.0
      %v3015 = vmax.f32 %v2983, 0.0
      %v3016 = vmax.f32 %v2984, 0.0
      %v3017 = vmax.f32 %v2985, 0.0
      %v3018 = vmax.f32 %v2986, 0.0
      %v3019 = vmax.f32 %v2987, 0.0
      %v3020 = vmax.f32 %v2988, 0.0
      %v3021 = vmax.f32 %v2989, 0.0
      %v3022 = vmax.f32 %v2990, 0.0
      %v3023 = vmax.f32 %v2991, 0.0
      %v3024 = vmax.f32 %v2992, 0.0
      %v3025 = vmax.f32 %v2993, 0.0
      %v3026 = vmax.f32 %v2994, 0.0
      %v3027 = vmax.f32 %v2995, 0.0
      %v3028 = vmax.f32 %v2996, 0.0
      %v3029 = vmax.f32 %v2997, 0.0
      %v3030 = vmax.f32 %v2998, 0.0
      %v3031 = vmax.f32 %v2999, 0.0
      %v3032 = vmax.f32 %v3000, 0.0
      %v3033 = vmax.f32 %v3001, 0.0
      %v3034 = vmax.f32 %v3002, 0.0
      %v3035 = vmax.f32 %v3003, 0.0
      %v3036 = vmax.f32 %v3004, 0.0
      %v3037 = vmin.f32 %v3005, 6.0
      %v3038 = vmin.f32 %v3006, 6.0
      %v3039 = vmin.f32 %v3007, 6.0
      %v3040 = vmin.f32 %v3008, 6.0
      %v3041 = vmin.f32 %v3009, 6.0
      %v3042 = vmin.f32 %v3010, 6.0
      %v3043 = vmin.f32 %v3011, 6.0
      %v3044 = vmin.f32 %v3012, 6.0
      %v3045 = vmin.f32 %v3013, 6.0
      %v3046 = vmin.f32 %v3014, 6.0
      %v3047 = vmin.f32 %v3015, 6.0
      %v3048 = vmin.f32 %v3016, 6.0
      %v3049 = vmin.f32 %v3017, 6.0
      %v3050 = vmin.f32 %v3018, 6.0
      %v3051 = vmin.f32 %v3019, 6.0
      %v3052 = vmin.f32 %v3020, 6.0
      %v3053 = vmin.f32 %v3021, 6.0
      %v3054 = vmin.f32 %v3022, 6.0
      %v3055 = vmin.f32 %v3023, 6.0
      %v3056 = vmin.f32 %v3024, 6.0
      %v3057 = vmin.f32 %v3025, 6.0
      %v3058 = vmin.f32 %v3026, 6.0
      %v3059 = vmin.f32 %v3027, 6.0
      %v3060 = vmin.f32 %v3028, 6.0
      %v3061 = vmin.f32 %v3029, 6.0
      %v3062 = vmin.f32 %v3030, 6.0
      %v3063 = vmin.f32 %v3031, 6.0
      %v3064 = vmin.f32 %v3032, 6.0
      %v3065 = vmin.f32 %v3033, 6.0
      %v3066 = vmin.f32 %v3034, 6.0
      %v3067 = vmin.f32 %v3035, 6.0
      %v3068 = vmin.f32 %v3036, 6.0
      %v3069 = vld [vmem:[%s9] sm:$0xff]
      %v3070 = vld [vmem:[%s9 + $0x8] sm:$0xff]
      %v3071 = vld [vmem:[%s9 + $0x10] sm:$0xff]
      %v3072 = vld [vmem:[%s9 + $0x18] sm:$0xff]
      %vm3073 = vcmask 261120
      %v3075 = vsel %vm3073, %v3037, 0
      %v3078 = vsel %vm3073, %v3038, 0
      %v3081 = vsel %vm3073, %v3039, 0
      %v3084 = vsel %vm3073, %v3040, 0
      %v3087 = vsel %vm3073, %v3041, 0
      %v3090 = vsel %vm3073, %v3042, 0
      %v3093 = vsel %vm3073, %v3043, 0
      %v3096 = vsel %vm3073, %v3044, 0
      %v3099 = vsel %vm3073, %v3045, 0
      %v3102 = vsel %vm3073, %v3046, 0
      %v3105 = vsel %vm3073, %v3047, 0
      %v3108 = vsel %vm3073, %v3048, 0
      %v3111 = vsel %vm3073, %v3049, 0
      %v3114 = vsel %vm3073, %v3050, 0
      %v3117 = vsel %vm3073, %v3051, 0
      %v3120 = vsel %vm3073, %v3052, 0
      %v3123 = vsel %vm3073, %v3053, 0
      %v3126 = vsel %vm3073, %v3054, 0
      %v3129 = vsel %vm3073, %v3055, 0
      %v3132 = vsel %vm3073, %v3056, 0
      %v3135 = vsel %vm3073, %v3057, 0
      %v3138 = vsel %vm3073, %v3058, 0
      %v3141 = vsel %vm3073, %v3059, 0
      %v3144 = vsel %vm3073, %v3060, 0
      %v3147 = vsel %vm3073, %v3061, 0
      %v3150 = vsel %vm3073, %v3062, 0
      %v3153 = vsel %vm3073, %v3063, 0
      %v3156 = vsel %vm3073, %v3064, 0
      %v3159 = vsel %vm3073, %v3065, 0
      %v3162 = vsel %vm3073, %v3066, 0
      %v3165 = vsel %vm3073, %v3067, 0
      %v3168 = vsel %vm3073, %v3068, 0
      %3170 = vmatprep.subr.mxu0 0.0
      %3171 = vmatpush1.msra.mxu0 0.0
      %3172 = vmatprep.subr.mxu0 0.0
      %3173 = vmatpush1.msra.mxu0 0.0
      %3174 = vmatprep.subr.mxu0 0.0
      %3175 = vmatpush1.msra.mxu0 0.0
      %3176 = vmatprep.subr.mxu0 0.0
      %3177 = vmatpush1.msra.mxu0 0.0
      %3178 = vmatprep.subr.mxu0 0.0
      %3179 = vmatpush1.msra.mxu0 0.0
      %3180 = vmatprep.subr.mxu0 0.0
      %3181 = vmatpush1.msra.mxu0 0.0
      %3182 = vmatprep.subr.mxu0 0.0
      %3183 = vmatpush1.msra.mxu0 0.0
      %3184 = vmatprep.subr.mxu0 0.0
      %3185 = vmatpush1.msra.mxu0 0.0
      %3186 = vmatprep.subr.mxu0 0.0
      %3187 = vmatpush1.msra.mxu0 0.0
      %3188 = vmatprep.subr.mxu0 0.0
      %3189 = vmatpush1.msra.mxu0 0.0
      %3190 = vmatprep.subr.mxu0 0.0
      %3191 = vmatpush1.msra.mxu0 0.0
      %3192 = vmatprep.subr.mxu0 0.0
      %3193 = vmatpush1.msra.mxu0 0.0
      %3194 = vmatprep.subr.mxu0 0.0
      %3195 = vmatpush1.msra.mxu0 %v3072
      %3196 = vmatprep.subr.mxu0 0.0
      %3197 = vmatpush1.msra.mxu0 %v3071
      %3198 = vmatprep.subr.mxu0 0.0
      %3199 = vmatpush1.msra.mxu0 %v3070
      %3200 = vmatprep.subr.mxu0 0.0
      %3201 = vmatpush1.msra.mxu0 %v3069
      %3202 = vmatprep.subr.mxu0 0.0
      %3203 = vmatpush2.msra.mxu0 0.0
      %3204 = vmatprep.subr.mxu0 0.0
      %3205 = vmatpush2.msra.mxu0 0.0
      %3206 = vmatprep.subr.mxu0 0.0
      %3207 = vmatpush2.msra.mxu0 0.0
      %3208 = vmatprep.subr.mxu0 0.0
      %3209 = vmatpush2.msra.mxu0 0.0
      %3210 = vmatprep.subr.mxu0 0.0
      %3211 = vmatpush2.msra.mxu0 0.0
      %3212 = vmatprep.subr.mxu0 0.0
      %3213 = vmatpush2.msra.mxu0 0.0
      %3214 = vmatprep.subr.mxu0 0.0
      %3215 = vmatpush2.msra.mxu0 0.0
      %3216 = vmatprep.subr.mxu0 0.0
      %3217 = vmatpush2.msra.mxu0 0.0
      %3218 = vmatprep.subr.mxu0 0.0
      %3219 = vmatpush2.msra.mxu0 0.0
      %3220 = vmatprep.subr.mxu0 0.0
      %3221 = vmatpush2.msra.mxu0 0.0
      %3222 = vmatprep.subr.mxu0 0.0
      %3223 = vmatpush2.msra.mxu0 0.0
      %3224 = vmatprep.subr.mxu0 0.0
      %3225 = vmatpush2.msra.mxu0 0.0
      %3226 = vmatprep.subr.mxu0 0.0
      %3227 = vmatpush2.msra.mxu0 0.0
      %3228 = vmatprep.subr.mxu0 0.0
      %3229 = vmatpush2.msra.mxu0 0.0
      %3230 = vmatprep.subr.mxu0 0.0
      %3231 = vmatpush2.msra.mxu0 0.0
      %3232 = vmatprep.subr.mxu0 0.0
      %3233 = vmatpush2.msra.mxu0 0.0
      %3234 = vmatprep.mubr.f32.mxu0 0.0
      %3235 = vmatmul.mubr.f32.gmra.mxu0 %v3075
      %v3236 = vpop.f32.mrf.mxu0
      %v3237 = vadd.f32 0.0, %v3236
      %v3238 = vpop.f32.mrf.mxu0
      %3239 = vmatprep.mubr.f32.mxu0 0.0
      %3240 = vmatmul.mubr.f32.gmra.mxu0 %v3078
      %v3241 = vpop.f32.mrf.mxu0
      %v3242 = vadd.f32 0.0, %v3241
      %v3243 = vpop.f32.mrf.mxu0
      %3244 = vmatprep.mubr.f32.mxu0 0.0
      %3245 = vmatmul.mubr.f32.gmra.mxu0 %v3081
      %v3246 = vpop.f32.mrf.mxu0
      %v3247 = vadd.f32 0.0, %v3246
      %v3248 = vpop.f32.mrf.mxu0
      %3249 = vmatprep.mubr.f32.mxu0 0.0
      %3250 = vmatmul.mubr.f32.gmra.mxu0 %v3084
      %v3251 = vpop.f32.mrf.mxu0
      %v3252 = vadd.f32 0.0, %v3251
      %v3253 = vpop.f32.mrf.mxu0
      %3254 = vmatprep.mubr.f32.mxu0 0.0
      %3255 = vmatmul.mubr.f32.gmra.mxu0 %v3087
      %v3256 = vpop.f32.mrf.mxu0
      %v3257 = vadd.f32 0.0, %v3256
      %v3258 = vpop.f32.mrf.mxu0
      %3259 = vmatprep.mubr.f32.mxu0 0.0
      %3260 = vmatmul.mubr.f32.gmra.mxu0 %v3090
      %v3261 = vpop.f32.mrf.mxu0
      %v3262 = vadd.f32 0.0, %v3261
      %v3263 = vpop.f32.mrf.mxu0
      %3264 = vmatprep.mubr.f32.mxu0 0.0
      %3265 = vmatmul.mubr.f32.gmra.mxu0 %v3093
      %v3266 = vpop.f32.mrf.mxu0
      %v3267 = vadd.f32 0.0, %v3266
      %v3268 = vpop.f32.mrf.mxu0
      %3269 = vmatprep.mubr.f32.mxu0 0.0
      %3270 = vmatmul.mubr.f32.gmra.mxu0 %v3096
      %v3271 = vpop.f32.mrf.mxu0
      %v3272 = vadd.f32 0.0, %v3271
      %v3273 = vpop.f32.mrf.mxu0
      %3274 = vmatprep.mubr.f32.mxu0 0.0
      %3275 = vmatmul.mubr.f32.gmra.mxu0 %v3099
      %v3276 = vpop.f32.mrf.mxu0
      %v3277 = vadd.f32 0.0, %v3276
      %v3278 = vpop.f32.mrf.mxu0
      %3279 = vmatprep.mubr.f32.mxu0 0.0
      %3280 = vmatmul.mubr.f32.gmra.mxu0 %v3102
      %v3281 = vpop.f32.mrf.mxu0
      %v3282 = vadd.f32 0.0, %v3281
      %v3283 = vpop.f32.mrf.mxu0
      %3284 = vmatprep.mubr.f32.mxu0 0.0
      %3285 = vmatmul.mubr.f32.gmra.mxu0 %v3105
      %v3286 = vpop.f32.mrf.mxu0
      %v3287 = vadd.f32 0.0, %v3286
      %v3288 = vpop.f32.mrf.mxu0
      %3289 = vmatprep.mubr.f32.mxu0 0.0
      %3290 = vmatmul.mubr.f32.gmra.mxu0 %v3108
      %v3291 = vpop.f32.mrf.mxu0
      %v3292 = vadd.f32 0.0, %v3291
      %v3293 = vpop.f32.mrf.mxu0
      %3294 = vmatprep.mubr.f32.mxu0 0.0
      %3295 = vmatmul.mubr.f32.gmra.mxu0 %v3111
      %v3296 = vpop.f32.mrf.mxu0
      %v3297 = vadd.f32 0.0, %v3296
      %v3298 = vpop.f32.mrf.mxu0
      %3299 = vmatprep.mubr.f32.mxu0 0.0
      %3300 = vmatmul.mubr.f32.gmra.mxu0 %v3114
      %v3301 = vpop.f32.mrf.mxu0
      %v3302 = vadd.f32 0.0, %v3301
      %v3303 = vpop.f32.mrf.mxu0
      %3304 = vmatprep.mubr.f32.mxu0 0.0
      %3305 = vmatmul.mubr.f32.gmra.mxu0 %v3117
      %v3306 = vpop.f32.mrf.mxu0
      %v3307 = vadd.f32 0.0, %v3306
      %v3308 = vpop.f32.mrf.mxu0
      %3309 = vmatprep.mubr.f32.mxu0 0.0
      %3310 = vmatmul.mubr.f32.gmra.mxu0 %v3120
      %v3311 = vpop.f32.mrf.mxu0
      %v3312 = vadd.f32 0.0, %v3311
      %v3313 = vpop.f32.mrf.mxu0
      %3314 = vmatprep.mubr.f32.mxu0 0.0
      %3315 = vmatmul.mubr.f32.gmra.mxu0 %v3123
      %v3316 = vpop.f32.mrf.mxu0
      %v3317 = vadd.f32 0.0, %v3316
      %v3318 = vpop.f32.mrf.mxu0
      %3319 = vmatprep.mubr.f32.mxu0 0.0
      %3320 = vmatmul.mubr.f32.gmra.mxu0 %v3126
      %v3321 = vpop.f32.mrf.mxu0
      %v3322 = vadd.f32 0.0, %v3321
      %v3323 = vpop.f32.mrf.mxu0
      %3324 = vmatprep.mubr.f32.mxu0 0.0
      %3325 = vmatmul.mubr.f32.gmra.mxu0 %v3129
      %v3326 = vpop.f32.mrf.mxu0
      %v3327 = vadd.f32 0.0, %v3326
      %v3328 = vpop.f32.mrf.mxu0
      %3329 = vmatprep.mubr.f32.mxu0 0.0
      %3330 = vmatmul.mubr.f32.gmra.mxu0 %v3132
      %v3331 = vpop.f32.mrf.mxu0
      %v3332 = vadd.f32 0.0, %v3331
      %v3333 = vpop.f32.mrf.mxu0
      %3334 = vmatprep.mubr.f32.mxu0 0.0
      %3335 = vmatmul.mubr.f32.gmra.mxu0 %v3135
      %v3336 = vpop.f32.mrf.mxu0
      %v3337 = vadd.f32 0.0, %v3336
      %v3338 = vpop.f32.mrf.mxu0
      %3339 = vmatprep.mubr.f32.mxu0 0.0
      %3340 = vmatmul.mubr.f32.gmra.mxu0 %v3138
      %v3341 = vpop.f32.mrf.mxu0
      %v3342 = vadd.f32 0.0, %v3341
      %v3343 = vpop.f32.mrf.mxu0
      %3344 = vmatprep.mubr.f32.mxu0 0.0
      %3345 = vmatmul.mubr.f32.gmra.mxu0 %v3141
      %v3346 = vpop.f32.mrf.mxu0
      %v3347 = vadd.f32 0.0, %v3346
      %v3348 = vpop.f32.mrf.mxu0
      %3349 = vmatprep.mubr.f32.mxu0 0.0
      %3350 = vmatmul.mubr.f32.gmra.mxu0 %v3144
      %v3351 = vpop.f32.mrf.mxu0
      %v3352 = vadd.f32 0.0, %v3351
      %v3353 = vpop.f32.mrf.mxu0
      %3354 = vmatprep.mubr.f32.mxu0 0.0
      %3355 = vmatmul.mubr.f32.gmra.mxu0 %v3147
      %v3356 = vpop.f32.mrf.mxu0
      %v3357 = vadd.f32 0.0, %v3356
      %v3358 = vpop.f32.mrf.mxu0
      %3359 = vmatprep.mubr.f32.mxu0 0.0
      %3360 = vmatmul.mubr.f32.gmra.mxu0 %v3150
      %v3361 = vpop.f32.mrf.mxu0
      %v3362 = vadd.f32 0.0, %v3361
      %v3363 = vpop.f32.mrf.mxu0
      %3364 = vmatprep.mubr.f32.mxu0 0.0
      %3365 = vmatmul.mubr.f32.gmra.mxu0 %v3153
      %v3366 = vpop.f32.mrf.mxu0
      %v3367 = vadd.f32 0.0, %v3366
      %v3368 = vpop.f32.mrf.mxu0
      %3369 = vmatprep.mubr.f32.mxu0 0.0
      %3370 = vmatmul.mubr.f32.gmra.mxu0 %v3156
      %v3371 = vpop.f32.mrf.mxu0
      %v3372 = vadd.f32 0.0, %v3371
      %v3373 = vpop.f32.mrf.mxu0
      %3374 = vmatprep.mubr.f32.mxu0 0.0
      %3375 = vmatmul.mubr.f32.gmra.mxu0 %v3159
      %v3376 = vpop.f32.mrf.mxu0
      %v3377 = vadd.f32 0.0, %v3376
      %v3378 = vpop.f32.mrf.mxu0
      %3379 = vmatprep.mubr.f32.mxu0 0.0
      %3380 = vmatmul.mubr.f32.gmra.mxu0 %v3162
      %v3381 = vpop.f32.mrf.mxu0
      %v3382 = vadd.f32 0.0, %v3381
      %v3383 = vpop.f32.mrf.mxu0
      %3384 = vmatprep.mubr.f32.mxu0 0.0
      %3385 = vmatmul.mubr.f32.gmra.mxu0 %v3165
      %v3386 = vpop.f32.mrf.mxu0
      %v3387 = vadd.f32 0.0, %v3386
      %v3388 = vpop.f32.mrf.mxu0
      %3389 = vmatprep.mubr.f32.mxu0 0.0
      %3390 = vmatmul.mubr.f32.gmra.mxu0 %v3168
      %v3391 = vpop.f32.mrf.mxu0
      %v3392 = vadd.f32 0.0, %v3391
      %v3393 = vpop.f32.mrf.mxu0
      %3394 = vdwg.mxu0
      %v3395 = vld [vmem:[%s10] sm:$0x1]
      %v3397 = vlaneseq
      %v3398 = vshrl.u32 %v3397, 7
      %v3399 = vsub.s32 0, %v3398
      %v3400 = vrot.slane %v3395, %v3399
      %v3402 = vmul.f32 %v3237, %v3400
      %v3403 = vmul.f32 %v3242, %v3400
      %v3404 = vmul.f32 %v3247, %v3400
      %v3405 = vmul.f32 %v3252, %v3400
      %v3406 = vmul.f32 %v3257, %v3400
      %v3407 = vmul.f32 %v3262, %v3400
      %v3408 = vmul.f32 %v3267, %v3400
      %v3409 = vmul.f32 %v3272, %v3400
      %v3410 = vmul.f32 %v3277, %v3400
      %v3411 = vmul.f32 %v3282, %v3400
      %v3412 = vmul.f32 %v3287, %v3400
      %v3413 = vmul.f32 %v3292, %v3400
      %v3414 = vmul.f32 %v3297, %v3400
      %v3415 = vmul.f32 %v3302, %v3400
      %v3416 = vmul.f32 %v3307, %v3400
      %v3417 = vmul.f32 %v3312, %v3400
      %v3418 = vmul.f32 %v3317, %v3400
      %v3419 = vmul.f32 %v3322, %v3400
      %v3420 = vmul.f32 %v3327, %v3400
      %v3421 = vmul.f32 %v3332, %v3400
      %v3422 = vmul.f32 %v3337, %v3400
      %v3423 = vmul.f32 %v3342, %v3400
      %v3424 = vmul.f32 %v3347, %v3400
      %v3425 = vmul.f32 %v3352, %v3400
      %v3426 = vmul.f32 %v3357, %v3400
      %v3427 = vmul.f32 %v3362, %v3400
      %v3428 = vmul.f32 %v3367, %v3400
      %v3429 = vmul.f32 %v3372, %v3400
      %v3430 = vmul.f32 %v3377, %v3400
      %v3431 = vmul.f32 %v3382, %v3400
      %v3432 = vmul.f32 %v3387, %v3400
      %v3433 = vmul.f32 %v3392, %v3400
      %v3434 = vld [vmem:[%s11] sm:$0x1]
      %v3436 = vlaneseq
      %v3437 = vshrl.u32 %v3436, 7
      %v3438 = vsub.s32 0, %v3437
      %v3439 = vrot.slane %v3434, %v3438
      %v3441 = vadd.f32 %v3402, %v3439
      %v3442 = vadd.f32 %v3403, %v3439
      %v3443 = vadd.f32 %v3404, %v3439
      %v3444 = vadd.f32 %v3405, %v3439
      %v3445 = vadd.f32 %v3406, %v3439
      %v3446 = vadd.f32 %v3407, %v3439
      %v3447 = vadd.f32 %v3408, %v3439
      %v3448 = vadd.f32 %v3409, %v3439
      %v3449 = vadd.f32 %v3410, %v3439
      %v3450 = vadd.f32 %v3411, %v3439
      %v3451 = vadd.f32 %v3412, %v3439
      %v3452 = vadd.f32 %v3413, %v3439
      %v3453 = vadd.f32 %v3414, %v3439
      %v3454 = vadd.f32 %v3415, %v3439
      %v3455 = vadd.f32 %v3416, %v3439
      %v3456 = vadd.f32 %v3417, %v3439
      %v3457 = vadd.f32 %v3418, %v3439
      %v3458 = vadd.f32 %v3419, %v3439
      %v3459 = vadd.f32 %v3420, %v3439
      %v3460 = vadd.f32 %v3421, %v3439
      %v3461 = vadd.f32 %v3422, %v3439
      %v3462 = vadd.f32 %v3423, %v3439
      %v3463 = vadd.f32 %v3424, %v3439
      %v3464 = vadd.f32 %v3425, %v3439
      %v3465 = vadd.f32 %v3426, %v3439
      %v3466 = vadd.f32 %v3427, %v3439
      %v3467 = vadd.f32 %v3428, %v3439
      %v3468 = vadd.f32 %v3429, %v3439
      %v3469 = vadd.f32 %v3430, %v3439
      %v3470 = vadd.f32 %v3431, %v3439
      %v3471 = vadd.f32 %v3432, %v3439
      %v3472 = vadd.f32 %v3433, %v3439
      %v3473 = vadd.f32 %v3441, %v581
      %v3474 = vadd.f32 %v3442, %v582
      %v3475 = vadd.f32 %v3443, %v583
      %v3476 = vadd.f32 %v3444, %v584
      %v3477 = vadd.f32 %v3445, %v585
      %v3478 = vadd.f32 %v3446, %v586
      %v3479 = vadd.f32 %v3447, %v587
      %v3480 = vadd.f32 %v3448, %v588
      %v3481 = vadd.f32 %v3449, %v589
      %v3482 = vadd.f32 %v3450, %v590
      %v3483 = vadd.f32 %v3451, %v591
      %v3484 = vadd.f32 %v3452, %v592
      %v3485 = vadd.f32 %v3453, %v593
      %v3486 = vadd.f32 %v3454, %v594
      %v3487 = vadd.f32 %v3455, %v595
      %v3488 = vadd.f32 %v3456, %v596
      %v3489 = vadd.f32 %v3457, %v597
      %v3490 = vadd.f32 %v3458, %v598
      %v3491 = vadd.f32 %v3459, %v599
      %v3492 = vadd.f32 %v3460, %v600
      %v3493 = vadd.f32 %v3461, %v601
      %v3494 = vadd.f32 %v3462, %v602
      %v3495 = vadd.f32 %v3463, %v603
      %v3496 = vadd.f32 %v3464, %v604
      %v3497 = vadd.f32 %v3465, %v605
      %v3498 = vadd.f32 %v3466, %v606
      %v3499 = vadd.f32 %v3467, %v607
      %v3500 = vadd.f32 %v3468, %v608
      %v3501 = vadd.f32 %v3469, %v609
      %v3502 = vadd.f32 %v3470, %v610
      %v3503 = vadd.f32 %v3471, %v611
      %v3504 = vadd.f32 %v3472, %v612
      %3505 = vst.msk [vmem:[%s579] sm:$0xff] %vm618, %v3473
      %3506 = vst.msk [vmem:[%s579 + $0x8] sm:$0xff] %vm618, %v3474
      %3507 = vst.msk [vmem:[%s579 + $0x10] sm:$0xff] %vm618, %v3475
      %3508 = vst.msk [vmem:[%s579 + $0x18] sm:$0xff] %vm618, %v3476
      %3509 = vst.msk [vmem:[%s579 + $0x20] sm:$0xff] %vm618, %v3477
      %3510 = vst.msk [vmem:[%s579 + $0x28] sm:$0xff] %vm618, %v3478
      %3511 = vst.msk [vmem:[%s579 + $0x30] sm:$0xff] %vm618, %v3479
      %3512 = vst.msk [vmem:[%s579 + $0x38] sm:$0xff] %vm618, %v3480
      %3513 = vst.msk [vmem:[%s579 + $0x40] sm:$0xff] %vm618, %v3481
      %3514 = vst.msk [vmem:[%s579 + $0x48] sm:$0xff] %vm618, %v3482
      %3515 = vst.msk [vmem:[%s579 + $0x50] sm:$0xff] %vm618, %v3483
      %3516 = vst.msk [vmem:[%s579 + $0x58] sm:$0xff] %vm618, %v3484
      %3517 = vst.msk [vmem:[%s579 + $0x60] sm:$0xff] %vm618, %v3485
      %3518 = vst.msk [vmem:[%s579 + $0x68] sm:$0xff] %vm618, %v3486
      %3519 = vst.msk [vmem:[%s579 + $0x70] sm:$0xff] %vm618, %v3487
      %3520 = vst.msk [vmem:[%s579 + $0x78] sm:$0xff] %vm618, %v3488
      %3521 = vst.msk [vmem:[%s579 + $0x80] sm:$0xff] %vm618, %v3489
      %3522 = vst.msk [vmem:[%s579 + $0x88] sm:$0xff] %vm618, %v3490
      %3523 = vst.msk [vmem:[%s579 + $0x90] sm:$0xff] %vm618, %v3491
      %3524 = vst.msk [vmem:[%s579 + $0x98] sm:$0xff] %vm618, %v3492
      %3525 = vst.msk [vmem:[%s579 + $0xa0] sm:$0xff] %vm618, %v3493
      %3526 = vst.msk [vmem:[%s579 + $0xa8] sm:$0xff] %vm618, %v3494
      %3527 = vst.msk [vmem:[%s579 + $0xb0] sm:$0xff] %vm618, %v3495
      %3528 = vst.msk [vmem:[%s579 + $0xb8] sm:$0xff] %vm618, %v3496
      %3529 = vst.msk [vmem:[%s579 + $0xc0] sm:$0xff] %vm618, %v3497
      %3530 = vst.msk [vmem:[%s579 + $0xc8] sm:$0xff] %vm618, %v3498
      %3531 = vst.msk [vmem:[%s579 + $0xd0] sm:$0xff] %vm618, %v3499
      %3532 = vst.msk [vmem:[%s579 + $0xd8] sm:$0xff] %vm618, %v3500
      %3533 = vst.msk [vmem:[%s579 + $0xe0] sm:$0xff] %vm618, %v3501
      %3534 = vst.msk [vmem:[%s579 + $0xe8] sm:$0xff] %vm618, %v3502
      %3535 = vst.msk [vmem:[%s579 + $0xf0] sm:$0xff] %vm618, %v3503
      %3536 = vst.msk [vmem:[%s579 + $0xf8] sm:$0xff] %vm618, %v3504
      %s3537 = smul.u32 32, %s28
      %p3538 = scmp.lt.s32.totalorder %s27, 1
      %s3539 = scalar_select %p3538, %s27, 1
      %p3540 = scmp.lt.s32.totalorder %s3537, 31
      %s3541 = scalar_select %p3540, %s3537, 31
      %s3542 = smul.addr %s3539, 32
      %s3543 = sadd.s32 %s3541, %s3542
      %s3544 = smul.addr %s3543, 8
      %s3545 = scalar_lea.vmem %s12, %s3544
      // Predicated region
      $region69: #{tpu_custom_call.1} parent=67 // pred_check
        %p3546 = pneg %p344
      $region70: #{tpu_custom_call.1} parent=67 // pred_check_branch
        %3548 = sbr.rel (%p3546) target = $region72
      $region71: #{tpu_custom_call.1} parent=67 // pred_region
        %s3549 = smul.u32 32, %s28
      $region72: #{tpu_custom_call.1} parent=67 // pred_fallthru
        _
    $region68: #{tpu_custom_call.1} parent=5 // pred_fallthru
      _
    %p3550 = scmp.le.s32.totalorder 2, %s18
    // Predicated region
    $region73: #{tpu_custom_call.1} parent=5 // pred_check
      %p3551 = pneg %p3550
    $region74: #{tpu_custom_call.1} parent=5 // pred_check_branch
      %3553 = sbr.rel (%p3551) target = $region76
    $region75: #{tpu_custom_call.1} parent=5 // pred_region
      %s3554 = ssub.s32 %s18, 2
      // Predicated region
      $region77: #{tpu_custom_call.1} parent=75 // pred_check
        %p3555 = pneg %p350
      $region78: #{tpu_custom_call.1} parent=75 // pred_check_branch
        %3557 = sbr.rel (%p3555) target = $region80
      $region79: #{tpu_custom_call.1} parent=75 // pred_region
        %s3558 = smul.u32 32, %s30
        %p3559 = scmp.lt.s32.totalorder %s29, 1
        %s3560 = scalar_select %p3559, %s29, 1
        %p3561 = scmp.lt.s32.totalorder %s3558, 31
        %s3562 = scalar_select %p3561, %s3558, 31
        %s3563 = smul.addr %s3560, 32
        %s3564 = sadd.s32 %s3562, %s3563
        %s3565 = smul.addr %s3564, 8
        %s3566 = scalar_lea.vmem %s12, %s3565
      $region80: #{tpu_custom_call.1} parent=75 // pred_fallthru
        _
    $region76: #{tpu_custom_call.1} parent=5 // pred_fallthru
      _
  $region6: #{tpu_custom_call.1} parent=0 // loop_footer
    %s22 = sadd.s32 1, %s18
  $region7: #{tpu_custom_call.1} parent=0 // loop_footer_branch
    %17 = sbr.rel target = $region3
  $region8: #{tpu_custom_call.1} parent=0 // loop_exit
    _

</llo_original>
